<compile_context>
chip_gen: v7x
topology: tpu7x:2x2x1
jax: 0.10.0
libtpu: 0.0.40
codegen_flags: <defaults>
</compile_context>

<pallas_src>
import math
import jax
import jax.numpy as jnp
from jax.experimental import pallas as pl
from jax.experimental.pallas import tpu as pltpu

# ---------------- small synthetic config (mirrors Dia structure, scaled down) ----------------
B, S, T = 2, 16, 8          # batch, source (text) length, target (audio) length
C = 4                       # number of codebooks / channels (Dia: 9)
D = 32                      # model width (encoder & decoder)
H = 4                       # query heads
KVH_DEC = 2                 # decoder self-attention KV heads (GQA)
HD = 8                      # head dim
F = 64                      # MLP hidden size
TEXT_VOCAB = 64
AUDIO_VOCAB = 40
N_ENC = 2
N_DEC = 2
EPS = 1e-5
IGNORE = -100               # ignore_index (PyTorch cross-entropy convention)


# ---------------------------------- in-kernel helpers ----------------------------------
def _rmsnorm(x, w):
    # x: (M, D) f32, w: (1, D) f32
    var = jnp.mean(x * x, axis=-1, keepdims=True)
    return x * jax.lax.rsqrt(var + EPS) * w


def _rope(x, cos, sin):
    # x, cos, sin: (Tseq, HD) f32; cos/sin already duplicated across both halves.
    half = x.shape[-1] // 2
    x1 = x[:, :half]
    x2 = x[:, half:]
    rot = jnp.concatenate([-x2, x1], axis=-1)
    return x * cos + rot * sin


def _mha(q_proj, k_proj, v_proj, cos_q, sin_q, cos_k, sin_k, nq, nkv, causal):
    # q_proj: (Tq, nq*HD) f32; k_proj/v_proj: (Tk, nkv*HD) f32
    rep = nq // nkv
    tq, tk = q_proj.shape[0], k_proj.shape[0]
    scale = 1.0 / math.sqrt(HD)
    mask = None
    if causal:
        ri = jax.lax.broadcasted_iota(jnp.int32, (tq, tk), 0)
        ci = jax.lax.broadcasted_iota(jnp.int32, (tq, tk), 1)
        mask = ri >= ci
    k_heads = [_rope(k_proj[:, g * HD:(g + 1) * HD], cos_k, sin_k) for g in range(nkv)]
    v_heads = [v_proj[:, g * HD:(g + 1) * HD] for g in range(nkv)]
    outs = []
    for hh in range(nq):  # small static unroll; GQA head sharing via hh // rep (no jnp.repeat)
        qh = _rope(q_proj[:, hh * HD:(hh + 1) * HD], cos_q, sin_q)
        kh = k_heads[hh // rep]
        vh = v_heads[hh // rep]
        s = jax.lax.dot_general(qh.astype(jnp.bfloat16), kh.astype(jnp.bfloat16),
                                (((1,), (1,)), ((), ())),
                                preferred_element_type=jnp.float32) * scale
        if causal:
            s = jnp.where(mask, s, -1e30)
        mx = jnp.max(s, axis=-1, keepdims=True)
        p = jnp.exp(s - mx)
        denom = jnp.sum(p, axis=-1, keepdims=True)
        o = jnp.dot(p.astype(jnp.bfloat16), vh.astype(jnp.bfloat16),
                    preferred_element_type=jnp.float32)
        outs.append(o * pl.reciprocal(denom, approx=True))
    return jnp.concatenate(outs, axis=-1)  # (Tq, nq*HD) f32


def _mlp(h, wi, wo):
    # gated-SiLU MLP; wi: (D, 2F) bf16, wo: (F, D) bf16
    gu = jnp.dot(h.astype(jnp.bfloat16), wi, preferred_element_type=jnp.float32)
    f = wo.shape[0]
    a = jax.nn.silu(gu[:, :f]) * gu[:, f:]
    return jnp.dot(a.astype(jnp.bfloat16), wo, preferred_element_type=jnp.float32)


# ---------------------------------- fused encoder stack ----------------------------------
def _encoder_stack_kernel(x0_ref, cos_ref, sin_ref,
                          pre_sa_ref, wqkv_ref, wo_sa_ref,
                          post_sa_ref, wi_ref, wo_mlp_ref, enc_norm_ref,
                          out_ref, x_acc):
    l = pl.program_id(1)
    nl = pl.num_programs(1)

    @pl.when(l == 0)
    def _():
        x_acc[...] = x0_ref[0]

    x = x_acc[...]
    cos = cos_ref[0]
    sin = sin_ref[0]

    # self attention (fused QKV projection)
    h = _rmsnorm(x, pre_sa_ref[0])
    qkv = jnp.dot(h.astype(jnp.bfloat16), wqkv_ref[0],
                  preferred_element_type=jnp.float32)                 # (S, 3*H*HD)
    q_proj = qkv[:, :H * HD]
    k_proj = qkv[:, H * HD:2 * H * HD]
    v_proj = qkv[:, 2 * H * HD:]
    attn = _mha(q_proj, k_proj, v_proj, cos, sin, cos, sin, H, H, causal=False)
    x = x + jnp.dot(attn.astype(jnp.bfloat16), wo_sa_ref[0],
                    preferred_element_type=jnp.float32)

    # MLP
    h2 = _rmsnorm(x, post_sa_ref[0])
    x = x + _mlp(h2, wi_ref[0], wo_mlp_ref[0])

    x_acc[...] = x

    @pl.when(l == nl - 1)
    def _():
        out_ref[0] = _rmsnorm(x, enc_norm_ref[...]).astype(out_ref.dtype)


def encoder_stack(params, x0, cos_s, sin_s):
    enc = params['enc']
    return pl.pallas_call(
        _encoder_stack_kernel,
        out_shape=jax.ShapeDtypeStruct((B, S, D), jnp.bfloat16),
        grid=(B, N_ENC),
        in_specs=[
            pl.BlockSpec((1, S, D), lambda b, l: (b, 0, 0)),            # x0
            pl.BlockSpec((1, S, HD), lambda b, l: (b, 0, 0)),           # cos
            pl.BlockSpec((1, S, HD), lambda b, l: (b, 0, 0)),           # sin
            pl.BlockSpec((1, 1, D), lambda b, l: (l, 0, 0)),            # pre_sa_norm
            pl.BlockSpec((1, D, 3 * H * HD), lambda b, l: (l, 0, 0)),   # wqkv
            pl.BlockSpec((1, H * HD, D), lambda b, l: (l, 0, 0)),       # wo_attn
            pl.BlockSpec((1, 1, D), lambda b, l: (l, 0, 0)),            # post_sa_norm
            pl.BlockSpec((1, D, 2 * F), lambda b, l: (l, 0, 0)),        # wi
            pl.BlockSpec((1, F, D), lambda b, l: (l, 0, 0)),            # wo_mlp
            pl.BlockSpec((1, D), lambda b, l: (0, 0)),                  # final enc_norm
        ],
        out_specs=pl.BlockSpec((1, S, D), lambda b, l: (b, 0, 0)),
        scratch_shapes=[pltpu.VMEM((S, D), jnp.float32)],
        compiler_params=pltpu.CompilerParams(
            dimension_semantics=("parallel", "arbitrary")),
    )(x0, cos_s, sin_s, enc['pre_sa_norm'], enc['wqkv'], enc['wo_attn'],
      enc['post_sa_norm'], enc['wi'], enc['wo_mlp'], params['enc_norm'])


# ---------------------------------- fused decoder stack ----------------------------------
def _decoder_stack_kernel(x0_ref, enc_ref, cos_t_ref, sin_t_ref, cos_s_ref, sin_s_ref,
                          pre_sa_ref, wqkv_sa_ref, wo_sa_ref,
                          pre_ca_ref, wq_ca_ref, wkv_ca_ref, wo_ca_ref,
                          pre_mlp_ref, wi_ref, wo_mlp_ref, dec_norm_ref,
                          out_ref, x_acc):
    l = pl.program_id(1)
    nl = pl.num_programs(1)

    @pl.when(l == 0)
    def _():
        x_acc[...] = x0_ref[0]

    x = x_acc[...]
    cos_t, sin_t = cos_t_ref[0], sin_t_ref[0]
    cos_s, sin_s = cos_s_ref[0], sin_s_ref[0]
    enc = enc_ref[0]                                                   # (S, D) bf16

    # causal self attention (GQA, fused QKV, in-kernel causal mask)
    h = _rmsnorm(x, pre_sa_ref[0])
    qkv = jnp.dot(h.astype(jnp.bfloat16), wqkv_sa_ref[0],
                  preferred_element_type=jnp.float32)                  # (T, (H+2*KVH)*HD)
    q_proj = qkv[:, :H * HD]
    k_proj = qkv[:, H * HD:(H + KVH_DEC) * HD]
    v_proj = qkv[:, (H + KVH_DEC) * HD:]
    attn = _mha(q_proj, k_proj, v_proj, cos_t, sin_t, cos_t, sin_t,
                H, KVH_DEC, causal=True)
    x = x + jnp.dot(attn.astype(jnp.bfloat16), wo_sa_ref[0],
                    preferred_element_type=jnp.float32)

    # cross attention on encoder output (full attention, fused KV projection)
    h = _rmsnorm(x, pre_ca_ref[0])
    q_proj = jnp.dot(h.astype(jnp.bfloat16), wq_ca_ref[0],
                     preferred_element_type=jnp.float32)               # (T, H*HD)
    kv = jnp.dot(enc, wkv_ca_ref[0], preferred_element_type=jnp.float32)  # (S, 2*H*HD)
    k_proj = kv[:, :H * HD]
    v_proj = kv[:, H * HD:]
    attn = _mha(q_proj, k_proj, v_proj, cos_t, sin_t, cos_s, sin_s,
                H, H, causal=False)
    x = x + jnp.dot(attn.astype(jnp.bfloat16), wo_ca_ref[0],
                    preferred_element_type=jnp.float32)

    # MLP
    h = _rmsnorm(x, pre_mlp_ref[0])
    x = x + _mlp(h, wi_ref[0], wo_mlp_ref[0])

    x_acc[...] = x

    @pl.when(l == nl - 1)
    def _():
        out_ref[0] = _rmsnorm(x, dec_norm_ref[...]).astype(out_ref.dtype)  # bf16 directly


def decoder_stack(params, x0, enc_out, cos_t, sin_t, cos_s, sin_s):
    dec = params['dec']
    return pl.pallas_call(
        _decoder_stack_kernel,
        out_shape=jax.ShapeDtypeStruct((B, T, D), jnp.bfloat16),
        grid=(B, N_DEC),
        in_specs=[
            pl.BlockSpec((1, T, D), lambda b, l: (b, 0, 0)),                       # x0
            pl.BlockSpec((1, S, D), lambda b, l: (b, 0, 0)),                       # enc_out
            pl.BlockSpec((1, T, HD), lambda b, l: (b, 0, 0)),                      # cos_t
            pl.BlockSpec((1, T, HD), lambda b, l: (b, 0, 0)),                      # sin_t
            pl.BlockSpec((1, S, HD), lambda b, l: (b, 0, 0)),                      # cos_s
            pl.BlockSpec((1, S, HD), lambda b, l: (b, 0, 0)),                      # sin_s
            pl.BlockSpec((1, 1, D), lambda b, l: (l, 0, 0)),                       # pre_sa_norm
            pl.BlockSpec((1, D, (H + 2 * KVH_DEC) * HD), lambda b, l: (l, 0, 0)),  # wqkv_sa
            pl.BlockSpec((1, H * HD, D), lambda b, l: (l, 0, 0)),                  # wo_sa
            pl.BlockSpec((1, 1, D), lambda b, l: (l, 0, 0)),                       # pre_ca_norm
            pl.BlockSpec((1, D, H * HD), lambda b, l: (l, 0, 0)),                  # wq_ca
            pl.BlockSpec((1, D, 2 * H * HD), lambda b, l: (l, 0, 0)),              # wkv_ca
            pl.BlockSpec((1, H * HD, D), lambda b, l: (l, 0, 0)),                  # wo_ca
            pl.BlockSpec((1, 1, D), lambda b, l: (l, 0, 0)),                       # pre_mlp_norm
            pl.BlockSpec((1, D, 2 * F), lambda b, l: (l, 0, 0)),                   # wi
            pl.BlockSpec((1, F, D), lambda b, l: (l, 0, 0)),                       # wo_mlp
            pl.BlockSpec((1, D), lambda b, l: (0, 0)),                             # final dec_norm
        ],
        out_specs=pl.BlockSpec((1, T, D), lambda b, l: (b, 0, 0)),
        scratch_shapes=[pltpu.VMEM((T, D), jnp.float32)],
        compiler_params=pltpu.CompilerParams(
            dimension_semantics=("parallel", "arbitrary")),
    )(x0, enc_out, cos_t, sin_t, cos_s, sin_s,
      dec['pre_sa_norm'], dec['wqkv_sa'], dec['wo_sa'],
      dec['pre_ca_norm'], dec['wq_ca'], dec['wkv_ca'], dec['wo_ca'],
      dec['pre_mlp_norm'], dec['wi'], dec['wo_mlp'], params['dec_norm'])


# ---------------------------------- fused per-codebook linear cross-entropy ----------------------------------
def _ce_stack_kernel(h_ref, w_ref, t_ref, loss_ref):
    # h: (N, D) bf16; w: (1, V, D) bf16 (codebook c); t: (1, 1, N) int32 (lane-dense targets)
    c = pl.program_id(0)
    logits_t = jax.lax.dot_general(w_ref[0], h_ref[...], (((1,), (1,)), ((), ())),
                                   preferred_element_type=jnp.float32)   # (V, N)
    t = t_ref[0]                                                          # (1, N)
    mx = jnp.max(logits_t, axis=0, keepdims=True)                         # (1, N)
    lse = mx + jnp.log(jnp.sum(jnp.exp(logits_t - mx), axis=0, keepdims=True))
    row = jax.lax.broadcasted_iota(jnp.int32, logits_t.shape, 0)          # (V, N)
    tgt_logit = jnp.sum(jnp.where(row == t, logits_t, 0.0), axis=0, keepdims=True)
    valid = (t != IGNORE).astype(jnp.float32)                             # (1, N)
    nll = (lse - tgt_logit) * valid
    ci_sum = jnp.sum(nll, axis=1, keepdims=True)                          # (1, 1)
    cnt = jnp.sum(valid, axis=1, keepdims=True)                           # (1, 1)
    ci = ci_sum / jnp.maximum(cnt, 1.0)

    @pl.when(c == 0)
    def _():
        loss_ref[...] = jnp.zeros_like(loss_ref)

    loss_ref[...] += ci * (1.0 / C)


def fused_ce(h_bf16, w_cvd, t_ce):
    n = h_bf16.shape[0]
    v = w_cvd.shape[1]
    out = pl.pallas_call(
        _ce_stack_kernel,
        out_shape=jax.ShapeDtypeStruct((1, 1), jnp.float32),
        grid=(C,),
        in_specs=[
            pl.BlockSpec((n, D), lambda c: (0, 0)),      # hidden (resident across codebooks)
            pl.BlockSpec((1, v, D), lambda c: (c, 0, 0)),
            pl.BlockSpec((1, 1, n), lambda c: (c, 0, 0)),
        ],
        out_specs=pl.BlockSpec((1, 1), lambda c: (0, 0)),
        compiler_params=pltpu.CompilerParams(dimension_semantics=("arbitrary",)),
    )(h_bf16, w_cvd, t_ce)
    return out[0, 0]


# ---------------------------------- JAX glue (embeddings, RoPE tables, wiring) ----------------------------------
def rope_tables(positions):
    # positions: (B, Tseq) int -> cos, sin each (B, Tseq, HD) with values duplicated across halves
    half = HD // 2
    fraction = (2.0 * jnp.arange(half, dtype=jnp.float32)) / HD
    timescale = 10000.0 ** fraction                                     # (half,)
    sinusoid = positions[..., None].astype(jnp.float32) / timescale     # (B, Tseq, half)
    sin = jnp.sin(sinusoid)
    cos = jnp.cos(sinusoid)
    return (jnp.concatenate([cos, cos], axis=-1),
            jnp.concatenate([sin, sin], axis=-1))


def tts_forward(params, x_ids, src_positions, enc_self_attn_mask, tgt, actual_tgt,
                tgt_pos, dec_self_attn_mask, dec_cross_attn_mask):
    # Attention masks (full for encoder/cross, causal for decoder self-attn, exactly as the Dia
    # training driver builds them) are regenerated inside the fused kernels.
    # TODO(synk): data-dependent padding masks would need to be passed as extra kernel blocks.
    del enc_self_attn_mask, dec_self_attn_mask, dec_cross_attn_mask

    cos_s, sin_s = rope_tables(src_positions)
    cos_t, sin_t = rope_tables(tgt_pos)

    # encoder
    x_enc = params['enc_embed'][x_ids]                                  # (B, S, D) f32
    enc_out = encoder_stack(params, x_enc, cos_s, sin_s)                # (B, S, D) bf16

    # decoder (summed per-codebook embeddings)
    x_dec = jnp.zeros((B, T, D), jnp.float32)
    for c in range(C):
        x_dec = x_dec + params['dec_embed'][c][tgt[:, :, c]]
    hidden = decoder_stack(params, x_dec, enc_out, cos_t, sin_t, cos_s, sin_s)  # (B,T,D) bf16

    # shift: prediction at step t supervises token t+1; last step ignored via ignore_index=-100
    t_sh = jnp.concatenate(
        [actual_tgt[:, 1:], jnp.full((B, 1, C), IGNORE, actual_tgt.dtype)], axis=1)  # (B,T,C)
    t_ce = t_sh.transpose(2, 0, 1).reshape(C, 1, B * T).astype(jnp.int32)
    h = hidden.reshape(B * T, D)                                        # bf16
    loss = fused_ce(h, params['logits_dense'], t_ce)
    return {'loss': loss}


# ---------------------------------- deterministic parameter init ----------------------------------
def init_params(key):
    keys = iter(jax.random.split(key, 64))

    def w(shape, scale=0.02, dtype=jnp.bfloat16):
        return (scale * jax.random.normal(next(keys), shape, dtype=jnp.float32)).astype(dtype)

    params = {
        'enc_embed': w((TEXT_VOCAB, D), dtype=jnp.float32),
        'dec_embed': w((C, AUDIO_VOCAB, D), dtype=jnp.float32),
        'enc': {
            'pre_sa_norm': jnp.ones((N_ENC, 1, D), jnp.float32),
            'wqkv': w((N_ENC, D, 3 * H * HD)),
            'wo_attn': w((N_ENC, H * HD, D)),
            'post_sa_norm': jnp.ones((N_ENC, 1, D), jnp.float32),
            'wi': w((N_ENC, D, 2 * F)),
            'wo_mlp': w((N_ENC, F, D)),
        },
        'enc_norm': jnp.ones((1, D), jnp.float32),
        'dec': {
            'pre_sa_norm': jnp.ones((N_DEC, 1, D), jnp.float32),
            'wqkv_sa': w((N_DEC, D, (H + 2 * KVH_DEC) * HD)),
            'wo_sa': w((N_DEC, H * HD, D)),
            'pre_ca_norm': jnp.ones((N_DEC, 1, D), jnp.float32),
            'wq_ca': w((N_DEC, D, H * HD)),
            'wkv_ca': w((N_DEC, D, 2 * H * HD)),
            'wo_ca': w((N_DEC, H * HD, D)),
            'pre_mlp_norm': jnp.ones((N_DEC, 1, D), jnp.float32),
            'wi': w((N_DEC, D, 2 * F)),
            'wo_mlp': w((N_DEC, F, D)),
        },
        'dec_norm': jnp.ones((1, D), jnp.float32),
        'logits_dense': w((C, AUDIO_VOCAB, D)),   # (codebook, vocab, D) bf16 classifier
    }
    return params


if __name__ == "__main__":
    root = jax.random.PRNGKey(0)
    k_par, k_x, k_tgt, k_atgt = jax.random.split(root, 4)

    params = init_params(k_par)

    x_ids = jax.random.randint(k_x, (B, S), 0, TEXT_VOCAB, dtype=jnp.int32)
    src_positions = jnp.broadcast_to(jnp.arange(S, dtype=jnp.int32), (B, S))
    enc_self_attn_mask = jnp.ones((B, 1, S, S), dtype=jnp.bool_)

    tgt = jax.random.randint(k_tgt, (B, T, C), 0, AUDIO_VOCAB, dtype=jnp.int32)
    actual_tgt = jax.random.randint(k_atgt, (B, T, C), 0, AUDIO_VOCAB, dtype=jnp.int32)
    tgt_pos = jnp.broadcast_to(jnp.arange(T, dtype=jnp.int32), (B, T))
    dec_self_attn_mask = jnp.broadcast_to(jnp.tril(jnp.ones((T, T), jnp.bool_)), (B, 1, T, T))
    dec_cross_attn_mask = jnp.ones((B, 1, T, S), dtype=jnp.bool_)

    fwd = jax.jit(tts_forward)
    out = fwd(params, x_ids, src_positions, enc_self_attn_mask, tgt, actual_tgt,
              tgt_pos, dec_self_attn_mask, dec_cross_attn_mask)
    loss = jax.block_until_ready(out['loss'])
    assert jnp.isfinite(loss), f"non-finite loss: {loss}"
    print("KERNEL_OK")
</pallas_src>

<mosaic_0001>
module attributes {stable_mosaic.version = 11 : i64} {
  func.func @_encoder_stack_kernel(%arg0: i32, %arg1: i32, %arg2: memref<1x16x32xf32, #tpu.memory_space<vmem>>, %arg3: memref<1x16x8xf32, #tpu.memory_space<vmem>>, %arg4: memref<1x16x8xf32, #tpu.memory_space<vmem>>, %arg5: memref<1x1x32xf32, #tpu.memory_space<vmem>>, %arg6: memref<1x32x96xbf16, #tpu.memory_space<vmem>>, %arg7: memref<1x32x32xbf16, #tpu.memory_space<vmem>>, %arg8: memref<1x1x32xf32, #tpu.memory_space<vmem>>, %arg9: memref<1x32x128xbf16, #tpu.memory_space<vmem>>, %arg10: memref<1x64x32xbf16, #tpu.memory_space<vmem>>, %arg11: memref<1x32xf32, #tpu.memory_space<vmem>>, %arg12: memref<1x16x32xbf16, #tpu.memory_space<vmem>>, %arg13: memref<16x32xf32, #tpu.memory_space<vmem>>) attributes {dimension_semantics = [#tpu.dimension_semantics<parallel>, #tpu.dimension_semantics<arbitrary>], iteration_bounds = array<i64: 2, 2>, scalar_prefetch = 0 : i64, scratch_operands = 1 : i64, tpu.core_type = #tpu.core_type<tc>, window_params = [{transform_indices = @transform_0, window_bounds = array<i64: 1, 16, 32>}, {transform_indices = @transform_1, window_bounds = array<i64: 1, 16, 8>}, {transform_indices = @transform_2, window_bounds = array<i64: 1, 16, 8>}, {transform_indices = @transform_3, window_bounds = array<i64: 1, 1, 32>}, {transform_indices = @transform_4, window_bounds = array<i64: 1, 32, 96>}, {transform_indices = @transform_5, window_bounds = array<i64: 1, 32, 32>}, {transform_indices = @transform_6, window_bounds = array<i64: 1, 1, 32>}, {transform_indices = @transform_7, window_bounds = array<i64: 1, 32, 128>}, {transform_indices = @transform_8, window_bounds = array<i64: 1, 64, 32>}, {pipeline_mode = #tpu.pipeline_mode<synchronous>, transform_indices = @transform_9, window_bounds = array<i64: 1, 32>}, {transform_indices = @transform_10, window_bounds = array<i64: 1, 16, 32>}]} {
    %c0_i32 = arith.constant 0 : i32
    %0 = arith.cmpi eq, %arg1, %c0_i32 : i32
    %1 = arith.extui %0 : i1 to i32
    %c0_i32_0 = arith.constant 0 : i32
    %2 = arith.cmpi ne, %1, %c0_i32_0 : i32
    scf.if %2 {
      %c0_67 = arith.constant 0 : index
      %c0_68 = arith.constant 0 : index
      %c0_69 = arith.constant 0 : index
      %219 = vector.load %arg2[%c0_67, %c0_68, %c0_69] : memref<1x16x32xf32, #tpu.memory_space<vmem>>, vector<1x16x32xf32>
      %220 = vector.shape_cast %219 : vector<1x16x32xf32> to vector<16x32xf32>
      %c0_70 = arith.constant 0 : index
      %c0_71 = arith.constant 0 : index
      %221 = vector.load %arg13[%c0_70, %c0_71] : memref<16x32xf32, #tpu.memory_space<vmem>>, vector<16x32xf32>
      tpu.vector_store %arg13[%c0_70, %c0_71], %220 {strides = array<i32>} : memref<16x32xf32, #tpu.memory_space<vmem>>, vector<16x32xf32>,
    } else {
    }
    %c0 = arith.constant 0 : index
    %c0_1 = arith.constant 0 : index
    %3 = vector.load %arg13[%c0, %c0_1] : memref<16x32xf32, #tpu.memory_space<vmem>>, vector<16x32xf32>
    %c0_2 = arith.constant 0 : index
    %c0_3 = arith.constant 0 : index
    %c0_4 = arith.constant 0 : index
    %4 = vector.load %arg3[%c0_2, %c0_3, %c0_4] : memref<1x16x8xf32, #tpu.memory_space<vmem>>, vector<1x16x8xf32>
    %5 = vector.shape_cast %4 : vector<1x16x8xf32> to vector<16x8xf32>
    %c0_5 = arith.constant 0 : index
    %c0_6 = arith.constant 0 : index
    %c0_7 = arith.constant 0 : index
    %6 = vector.load %arg4[%c0_5, %c0_6, %c0_7] : memref<1x16x8xf32, #tpu.memory_space<vmem>>, vector<1x16x8xf32>
    %7 = vector.shape_cast %6 : vector<1x16x8xf32> to vector<16x8xf32>
    %c0_8 = arith.constant 0 : index
    %c0_9 = arith.constant 0 : index
    %c0_10 = arith.constant 0 : index
    %8 = vector.load %arg5[%c0_8, %c0_9, %c0_10] : memref<1x1x32xf32, #tpu.memory_space<vmem>>, vector<1x1x32xf32>
    %9 = vector.shape_cast %8 : vector<1x1x32xf32> to vector<1x32xf32>
    %10 = arith.mulf %3, %3 : vector<16x32xf32>
    %cst = arith.constant dense<0.000000e+00> : vector<16xf32>
    %11 = vector.multi_reduction <add>, %10, %cst [1] : vector<16x32xf32> to vector<16xf32>
    %12 = vector.shape_cast %11 : vector<16xf32> to vector<16x1xf32>
    %cst_11 = arith.constant 3.200000e+01 : f32
    %13 = vector.broadcast %cst_11 : f32 to vector<16x1xf32>
    %14 = arith.divf %12, %13 : vector<16x1xf32>
    %cst_12 = arith.constant 9.99999974E-6 : f32
    %15 = vector.broadcast %cst_12 : f32 to vector<16x1xf32>
    %16 = arith.addf %14, %15 : vector<16x1xf32>
    %17 = math.rsqrt %16 : vector<16x1xf32>
    %18 = vector.broadcast %17 : vector<16x1xf32> to vector<16x32xf32>
    %19 = arith.mulf %3, %18 : vector<16x32xf32>
    %20 = vector.broadcast %9 : vector<1x32xf32> to vector<16x32xf32>
    %21 = arith.mulf %19, %20 : vector<16x32xf32>
    %22 = arith.truncf %21 : vector<16x32xf32> to vector<16x32xbf16>
    %c0_13 = arith.constant 0 : index
    %c0_14 = arith.constant 0 : index
    %c0_15 = arith.constant 0 : index
    %23 = vector.load %arg6[%c0_13, %c0_14, %c0_15] : memref<1x32x96xbf16, #tpu.memory_space<vmem>>, vector<1x32x96xbf16>
    %24 = vector.shape_cast %23 : vector<1x32x96xbf16> to vector<32x96xbf16>
    %cst_16 = arith.constant dense<0.000000e+00> : vector<16x96xf32>
    %25 = tpu.matmul %22, %24, %cst_16 {dimension_numbers = #tpu.dot_dimension_numbers<[1], [0], [0], [1], [0, 0, 1, 1], [], []>} : vector<16x32xbf16>, vector<32x96xbf16>, vector<16x96xf32> -> vector<16x96xf32>
    %26 = vector.extract_strided_slice %25 {offsets = [0, 0], sizes = [16, 32], strides = [1, 1]} : vector<16x96xf32> to vector<16x32xf32>
    %27 = vector.extract_strided_slice %25 {offsets = [0, 32], sizes = [16, 32], strides = [1, 1]} : vector<16x96xf32> to vector<16x32xf32>
    %28 = vector.extract_strided_slice %25 {offsets = [0, 64], sizes = [16, 32], strides = [1, 1]} : vector<16x96xf32> to vector<16x32xf32>
    %29 = vector.extract_strided_slice %27 {offsets = [0, 0], sizes = [16, 8], strides = [1, 1]} : vector<16x32xf32> to vector<16x8xf32>
    %30 = vector.extract_strided_slice %29 {offsets = [0, 0], sizes = [16, 4], strides = [1, 1]} : vector<16x8xf32> to vector<16x4xf32>
    %31 = vector.extract_strided_slice %29 {offsets = [0, 4], sizes = [16, 4], strides = [1, 1]} : vector<16x8xf32> to vector<16x4xf32>
    %cst_17 = arith.constant 0.000000e+00 : f32
    %32 = vector.broadcast %cst_17 : f32 to vector<16x4xf32>
    %33 = arith.subf %32, %31 : vector<16x4xf32>
    %34 = tpu.concatenate %33, %30 in 1 : vector<16x4xf32>, vector<16x4xf32> -> vector<16x8xf32>
    %35 = arith.mulf %29, %5 : vector<16x8xf32>
    %36 = arith.mulf %34, %7 : vector<16x8xf32>
    %37 = arith.addf %35, %36 : vector<16x8xf32>
    %38 = vector.extract_strided_slice %27 {offsets = [0, 8], sizes = [16, 8], strides = [1, 1]} : vector<16x32xf32> to vector<16x8xf32>
    %39 = vector.extract_strided_slice %38 {offsets = [0, 0], sizes = [16, 4], strides = [1, 1]} : vector<16x8xf32> to vector<16x4xf32>
    %40 = vector.extract_strided_slice %38 {offsets = [0, 4], sizes = [16, 4], strides = [1, 1]} : vector<16x8xf32> to vector<16x4xf32>
    %cst_18 = arith.constant 0.000000e+00 : f32
    %41 = vector.broadcast %cst_18 : f32 to vector<16x4xf32>
    %42 = arith.subf %41, %40 : vector<16x4xf32>
    %43 = tpu.concatenate %42, %39 in 1 : vector<16x4xf32>, vector<16x4xf32> -> vector<16x8xf32>
    %44 = arith.mulf %38, %5 : vector<16x8xf32>
    %45 = arith.mulf %43, %7 : vector<16x8xf32>
    %46 = arith.addf %44, %45 : vector<16x8xf32>
    %47 = vector.extract_strided_slice %27 {offsets = [0, 16], sizes = [16, 8], strides = [1, 1]} : vector<16x32xf32> to vector<16x8xf32>
    %48 = vector.extract_strided_slice %47 {offsets = [0, 0], sizes = [16, 4], strides = [1, 1]} : vector<16x8xf32> to vector<16x4xf32>
    %49 = vector.extract_strided_slice %47 {offsets = [0, 4], sizes = [16, 4], strides = [1, 1]} : vector<16x8xf32> to vector<16x4xf32>
    %cst_19 = arith.constant 0.000000e+00 : f32
    %50 = vector.broadcast %cst_19 : f32 to vector<16x4xf32>
    %51 = arith.subf %50, %49 : vector<16x4xf32>
    %52 = tpu.concatenate %51, %48 in 1 : vector<16x4xf32>, vector<16x4xf32> -> vector<16x8xf32>
    %53 = arith.mulf %47, %5 : vector<16x8xf32>
    %54 = arith.mulf %52, %7 : vector<16x8xf32>
    %55 = arith.addf %53, %54 : vector<16x8xf32>
    %56 = vector.extract_strided_slice %27 {offsets = [0, 24], sizes = [16, 8], strides = [1, 1]} : vector<16x32xf32> to vector<16x8xf32>
    %57 = vector.extract_strided_slice %56 {offsets = [0, 0], sizes = [16, 4], strides = [1, 1]} : vector<16x8xf32> to vector<16x4xf32>
    %58 = vector.extract_strided_slice %56 {offsets = [0, 4], sizes = [16, 4], strides = [1, 1]} : vector<16x8xf32> to vector<16x4xf32>
    %cst_20 = arith.constant 0.000000e+00 : f32
    %59 = vector.broadcast %cst_20 : f32 to vector<16x4xf32>
    %60 = arith.subf %59, %58 : vector<16x4xf32>
    %61 = tpu.concatenate %60, %57 in 1 : vector<16x4xf32>, vector<16x4xf32> -> vector<16x8xf32>
    %62 = arith.mulf %56, %5 : vector<16x8xf32>
    %63 = arith.mulf %61, %7 : vector<16x8xf32>
    %64 = arith.addf %62, %63 : vector<16x8xf32>
    %65 = vector.extract_strided_slice %28 {offsets = [0, 0], sizes = [16, 8], strides = [1, 1]} : vector<16x32xf32> to vector<16x8xf32>
    %66 = vector.extract_strided_slice %28 {offsets = [0, 8], sizes = [16, 8], strides = [1, 1]} : vector<16x32xf32> to vector<16x8xf32>
    %67 = vector.extract_strided_slice %28 {offsets = [0, 16], sizes = [16, 8], strides = [1, 1]} : vector<16x32xf32> to vector<16x8xf32>
    %68 = vector.extract_strided_slice %28 {offsets = [0, 24], sizes = [16, 8], strides = [1, 1]} : vector<16x32xf32> to vector<16x8xf32>
    %69 = vector.extract_strided_slice %26 {offsets = [0, 0], sizes = [16, 8], strides = [1, 1]} : vector<16x32xf32> to vector<16x8xf32>
    %70 = vector.extract_strided_slice %69 {offsets = [0, 0], sizes = [16, 4], strides = [1, 1]} : vector<16x8xf32> to vector<16x4xf32>
    %71 = vector.extract_strided_slice %69 {offsets = [0, 4], sizes = [16, 4], strides = [1, 1]} : vector<16x8xf32> to vector<16x4xf32>
    %cst_21 = arith.constant 0.000000e+00 : f32
    %72 = vector.broadcast %cst_21 : f32 to vector<16x4xf32>
    %73 = arith.subf %72, %71 : vector<16x4xf32>
    %74 = tpu.concatenate %73, %70 in 1 : vector<16x4xf32>, vector<16x4xf32> -> vector<16x8xf32>
    %75 = arith.mulf %69, %5 : vector<16x8xf32>
    %76 = arith.mulf %74, %7 : vector<16x8xf32>
    %77 = arith.addf %75, %76 : vector<16x8xf32>
    %78 = arith.truncf %77 : vector<16x8xf32> to vector<16x8xbf16>
    %79 = arith.truncf %37 : vector<16x8xf32> to vector<16x8xbf16>
    %cst_22 = arith.constant dense<0.000000e+00> : vector<16x16xf32>
    %80 = tpu.matmul %78, %79, %cst_22 {dimension_numbers = #tpu.dot_dimension_numbers<[1], [1], [0], [0], [0, 0, 1, 0], [], []>} : vector<16x8xbf16>, vector<16x8xbf16>, vector<16x16xf32> -> vector<16x16xf32>
    %cst_23 = arith.constant 0.353553385 : f32
    %81 = vector.broadcast %cst_23 : f32 to vector<16x16xf32>
    %82 = arith.mulf %80, %81 : vector<16x16xf32>
    %cst_24 = arith.constant dense<0xFF800000> : vector<16xf32>
    %83 = vector.multi_reduction <maximumf>, %82, %cst_24 [1] : vector<16x16xf32> to vector<16xf32>
    %84 = vector.shape_cast %83 : vector<16xf32> to vector<16x1xf32>
    %85 = vector.broadcast %84 : vector<16x1xf32> to vector<16x16xf32>
    %86 = arith.subf %82, %85 : vector<16x16xf32>
    %87 = math.exp %86 : vector<16x16xf32>
    %cst_25 = arith.constant dense<0.000000e+00> : vector<16xf32>
    %88 = vector.multi_reduction <add>, %87, %cst_25 [1] : vector<16x16xf32> to vector<16xf32>
    %89 = vector.shape_cast %88 : vector<16xf32> to vector<16x1xf32>
    %90 = arith.truncf %87 : vector<16x16xf32> to vector<16x16xbf16>
    %91 = arith.truncf %65 : vector<16x8xf32> to vector<16x8xbf16>
    %cst_26 = arith.constant dense<0.000000e+00> : vector<16x8xf32>
    %92 = tpu.matmul %90, %91, %cst_26 {dimension_numbers = #tpu.dot_dimension_numbers<[1], [0], [0], [1], [0, 0, 1, 1], [], []>} : vector<16x16xbf16>, vector<16x8xbf16>, vector<16x8xf32> -> vector<16x8xf32>
    %93 = tpu.reciprocal %89 {approx = true} : vector<16x1xf32> -> vector<16x1xf32>
    %94 = vector.broadcast %93 : vector<16x1xf32> to vector<16x8xf32>
    %95 = arith.mulf %92, %94 : vector<16x8xf32>
    %96 = vector.extract_strided_slice %26 {offsets = [0, 8], sizes = [16, 8], strides = [1, 1]} : vector<16x32xf32> to vector<16x8xf32>
    %97 = vector.extract_strided_slice %96 {offsets = [0, 0], sizes = [16, 4], strides = [1, 1]} : vector<16x8xf32> to vector<16x4xf32>
    %98 = vector.extract_strided_slice %96 {offsets = [0, 4], sizes = [16, 4], strides = [1, 1]} : vector<16x8xf32> to vector<16x4xf32>
    %cst_27 = arith.constant 0.000000e+00 : f32
    %99 = vector.broadcast %cst_27 : f32 to vector<16x4xf32>
    %100 = arith.subf %99, %98 : vector<16x4xf32>
    %101 = tpu.concatenate %100, %97 in 1 : vector<16x4xf32>, vector<16x4xf32> -> vector<16x8xf32>
    %102 = arith.mulf %96, %5 : vector<16x8xf32>
    %103 = arith.mulf %101, %7 : vector<16x8xf32>
    %104 = arith.addf %102, %103 : vector<16x8xf32>
    %105 = arith.truncf %104 : vector<16x8xf32> to vector<16x8xbf16>
    %106 = arith.truncf %46 : vector<16x8xf32> to vector<16x8xbf16>
    %cst_28 = arith.constant dense<0.000000e+00> : vector<16x16xf32>
    %107 = tpu.matmul %105, %106, %cst_28 {dimension_numbers = #tpu.dot_dimension_numbers<[1], [1], [0], [0], [0, 0, 1, 0], [], []>} : vector<16x8xbf16>, vector<16x8xbf16>, vector<16x16xf32> -> vector<16x16xf32>
    %cst_29 = arith.constant 0.353553385 : f32
    %108 = vector.broadcast %cst_29 : f32 to vector<16x16xf32>
    %109 = arith.mulf %107, %108 : vector<16x16xf32>
    %cst_30 = arith.constant dense<0xFF800000> : vector<16xf32>
    %110 = vector.multi_reduction <maximumf>, %109, %cst_30 [1] : vector<16x16xf32> to vector<16xf32>
    %111 = vector.shape_cast %110 : vector<16xf32> to vector<16x1xf32>
    %112 = vector.broadcast %111 : vector<16x1xf32> to vector<16x16xf32>
    %113 = arith.subf %109, %112 : vector<16x16xf32>
    %114 = math.exp %113 : vector<16x16xf32>
    %cst_31 = arith.constant dense<0.000000e+00> : vector<16xf32>
    %115 = vector.multi_reduction <add>, %114, %cst_31 [1] : vector<16x16xf32> to vector<16xf32>
    %116 = vector.shape_cast %115 : vector<16xf32> to vector<16x1xf32>
    %117 = arith.truncf %114 : vector<16x16xf32> to vector<16x16xbf16>
    %118 = arith.truncf %66 : vector<16x8xf32> to vector<16x8xbf16>
    %cst_32 = arith.constant dense<0.000000e+00> : vector<16x8xf32>
    %119 = tpu.matmul %117, %118, %cst_32 {dimension_numbers = #tpu.dot_dimension_numbers<[1], [0], [0], [1], [0, 0, 1, 1], [], []>} : vector<16x16xbf16>, vector<16x8xbf16>, vector<16x8xf32> -> vector<16x8xf32>
    %120 = tpu.reciprocal %116 {approx = true} : vector<16x1xf32> -> vector<16x1xf32>
    %121 = vector.broadcast %120 : vector<16x1xf32> to vector<16x8xf32>
    %122 = arith.mulf %119, %121 : vector<16x8xf32>
    %123 = vector.extract_strided_slice %26 {offsets = [0, 16], sizes = [16, 8], strides = [1, 1]} : vector<16x32xf32> to vector<16x8xf32>
    %124 = vector.extract_strided_slice %123 {offsets = [0, 0], sizes = [16, 4], strides = [1, 1]} : vector<16x8xf32> to vector<16x4xf32>
    %125 = vector.extract_strided_slice %123 {offsets = [0, 4], sizes = [16, 4], strides = [1, 1]} : vector<16x8xf32> to vector<16x4xf32>
    %cst_33 = arith.constant 0.000000e+00 : f32
    %126 = vector.broadcast %cst_33 : f32 to vector<16x4xf32>
    %127 = arith.subf %126, %125 : vector<16x4xf32>
    %128 = tpu.concatenate %127, %124 in 1 : vector<16x4xf32>, vector<16x4xf32> -> vector<16x8xf32>
    %129 = arith.mulf %123, %5 : vector<16x8xf32>
    %130 = arith.mulf %128, %7 : vector<16x8xf32>
    %131 = arith.addf %129, %130 : vector<16x8xf32>
    %132 = arith.truncf %131 : vector<16x8xf32> to vector<16x8xbf16>
    %133 = arith.truncf %55 : vector<16x8xf32> to vector<16x8xbf16>
    %cst_34 = arith.constant dense<0.000000e+00> : vector<16x16xf32>
    %134 = tpu.matmul %132, %133, %cst_34 {dimension_numbers = #tpu.dot_dimension_numbers<[1], [1], [0], [0], [0, 0, 1, 0], [], []>} : vector<16x8xbf16>, vector<16x8xbf16>, vector<16x16xf32> -> vector<16x16xf32>
    %cst_35 = arith.constant 0.353553385 : f32
    %135 = vector.broadcast %cst_35 : f32 to vector<16x16xf32>
    %136 = arith.mulf %134, %135 : vector<16x16xf32>
    %cst_36 = arith.constant dense<0xFF800000> : vector<16xf32>
    %137 = vector.multi_reduction <maximumf>, %136, %cst_36 [1] : vector<16x16xf32> to vector<16xf32>
    %138 = vector.shape_cast %137 : vector<16xf32> to vector<16x1xf32>
    %139 = vector.broadcast %138 : vector<16x1xf32> to vector<16x16xf32>
    %140 = arith.subf %136, %139 : vector<16x16xf32>
    %141 = math.exp %140 : vector<16x16xf32>
    %cst_37 = arith.constant dense<0.000000e+00> : vector<16xf32>
    %142 = vector.multi_reduction <add>, %141, %cst_37 [1] : vector<16x16xf32> to vector<16xf32>
    %143 = vector.shape_cast %142 : vector<16xf32> to vector<16x1xf32>
    %144 = arith.truncf %141 : vector<16x16xf32> to vector<16x16xbf16>
    %145 = arith.truncf %67 : vector<16x8xf32> to vector<16x8xbf16>
    %cst_38 = arith.constant dense<0.000000e+00> : vector<16x8xf32>
    %146 = tpu.matmul %144, %145, %cst_38 {dimension_numbers = #tpu.dot_dimension_numbers<[1], [0], [0], [1], [0, 0, 1, 1], [], []>} : vector<16x16xbf16>, vector<16x8xbf16>, vector<16x8xf32> -> vector<16x8xf32>
    %147 = tpu.reciprocal %143 {approx = true} : vector<16x1xf32> -> vector<16x1xf32>
    %148 = vector.broadcast %147 : vector<16x1xf32> to vector<16x8xf32>
    %149 = arith.mulf %146, %148 : vector<16x8xf32>
    %150 = vector.extract_strided_slice %26 {offsets = [0, 24], sizes = [16, 8], strides = [1, 1]} : vector<16x32xf32> to vector<16x8xf32>
    %151 = vector.extract_strided_slice %150 {offsets = [0, 0], sizes = [16, 4], strides = [1, 1]} : vector<16x8xf32> to vector<16x4xf32>
    %152 = vector.extract_strided_slice %150 {offsets = [0, 4], sizes = [16, 4], strides = [1, 1]} : vector<16x8xf32> to vector<16x4xf32>
    %cst_39 = arith.constant 0.000000e+00 : f32
    %153 = vector.broadcast %cst_39 : f32 to vector<16x4xf32>
    %154 = arith.subf %153, %152 : vector<16x4xf32>
    %155 = tpu.concatenate %154, %151 in 1 : vector<16x4xf32>, vector<16x4xf32> -> vector<16x8xf32>
    %156 = arith.mulf %150, %5 : vector<16x8xf32>
    %157 = arith.mulf %155, %7 : vector<16x8xf32>
    %158 = arith.addf %156, %157 : vector<16x8xf32>
    %159 = arith.truncf %158 : vector<16x8xf32> to vector<16x8xbf16>
    %160 = arith.truncf %64 : vector<16x8xf32> to vector<16x8xbf16>
    %cst_40 = arith.constant dense<0.000000e+00> : vector<16x16xf32>
    %161 = tpu.matmul %159, %160, %cst_40 {dimension_numbers = #tpu.dot_dimension_numbers<[1], [1], [0], [0], [0, 0, 1, 0], [], []>} : vector<16x8xbf16>, vector<16x8xbf16>, vector<16x16xf32> -> vector<16x16xf32>
    %cst_41 = arith.constant 0.353553385 : f32
    %162 = vector.broadcast %cst_41 : f32 to vector<16x16xf32>
    %163 = arith.mulf %161, %162 : vector<16x16xf32>
    %cst_42 = arith.constant dense<0xFF800000> : vector<16xf32>
    %164 = vector.multi_reduction <maximumf>, %163, %cst_42 [1] : vector<16x16xf32> to vector<16xf32>
    %165 = vector.shape_cast %164 : vector<16xf32> to vector<16x1xf32>
    %166 = vector.broadcast %165 : vector<16x1xf32> to vector<16x16xf32>
    %167 = arith.subf %163, %166 : vector<16x16xf32>
    %168 = math.exp %167 : vector<16x16xf32>
    %cst_43 = arith.constant dense<0.000000e+00> : vector<16xf32>
    %169 = vector.multi_reduction <add>, %168, %cst_43 [1] : vector<16x16xf32> to vector<16xf32>
    %170 = vector.shape_cast %169 : vector<16xf32> to vector<16x1xf32>
    %171 = arith.truncf %168 : vector<16x16xf32> to vector<16x16xbf16>
    %172 = arith.truncf %68 : vector<16x8xf32> to vector<16x8xbf16>
    %cst_44 = arith.constant dense<0.000000e+00> : vector<16x8xf32>
    %173 = tpu.matmul %171, %172, %cst_44 {dimension_numbers = #tpu.dot_dimension_numbers<[1], [0], [0], [1], [0, 0, 1, 1], [], []>} : vector<16x16xbf16>, vector<16x8xbf16>, vector<16x8xf32> -> vector<16x8xf32>
    %174 = tpu.reciprocal %170 {approx = true} : vector<16x1xf32> -> vector<16x1xf32>
    %175 = vector.broadcast %174 : vector<16x1xf32> to vector<16x8xf32>
    %176 = arith.mulf %173, %175 : vector<16x8xf32>
    %177 = tpu.concatenate %95, %122, %149, %176 in 1 : vector<16x8xf32>, vector<16x8xf32>, vector<16x8xf32>, vector<16x8xf32> -> vector<16x32xf32>
    %178 = arith.truncf %177 : vector<16x32xf32> to vector<16x32xbf16>
    %c0_45 = arith.constant 0 : index
    %c0_46 = arith.constant 0 : index
    %c0_47 = arith.constant 0 : index
    %179 = vector.load %arg7[%c0_45, %c0_46, %c0_47] : memref<1x32x32xbf16, #tpu.memory_space<vmem>>, vector<1x32x32xbf16>
    %180 = vector.shape_cast %179 : vector<1x32x32xbf16> to vector<32x32xbf16>
    %cst_48 = arith.constant dense<0.000000e+00> : vector<16x32xf32>
    %181 = tpu.matmul %178, %180, %cst_48 {dimension_numbers = #tpu.dot_dimension_numbers<[1], [0], [0], [1], [0, 0, 1, 1], [], []>} : vector<16x32xbf16>, vector<32x32xbf16>, vector<16x32xf32> -> vector<16x32xf32>
    %182 = arith.addf %3, %181 : vector<16x32xf32>
    %c0_49 = arith.constant 0 : index
    %c0_50 = arith.constant 0 : index
    %c0_51 = arith.constant 0 : index
    %183 = vector.load %arg8[%c0_49, %c0_50, %c0_51] : memref<1x1x32xf32, #tpu.memory_space<vmem>>, vector<1x1x32xf32>
    %184 = vector.shape_cast %183 : vector<1x1x32xf32> to vector<1x32xf32>
    %185 = arith.mulf %182, %182 : vector<16x32xf32>
    %cst_52 = arith.constant dense<0.000000e+00> : vector<16xf32>
    %186 = vector.multi_reduction <add>, %185, %cst_52 [1] : vector<16x32xf32> to vector<16xf32>
    %187 = vector.shape_cast %186 : vector<16xf32> to vector<16x1xf32>
    %cst_53 = arith.constant 3.200000e+01 : f32
    %188 = vector.broadcast %cst_53 : f32 to vector<16x1xf32>
    %189 = arith.divf %187, %188 : vector<16x1xf32>
    %cst_54 = arith.constant 9.99999974E-6 : f32
    %190 = vector.broadcast %cst_54 : f32 to vector<16x1xf32>
    %191 = arith.addf %189, %190 : vector<16x1xf32>
    %192 = math.rsqrt %191 : vector<16x1xf32>
    %193 = vector.broadcast %192 : vector<16x1xf32> to vector<16x32xf32>
    %194 = arith.mulf %182, %193 : vector<16x32xf32>
    %195 = vector.broadcast %184 : vector<1x32xf32> to vector<16x32xf32>
    %196 = arith.mulf %194, %195 : vector<16x32xf32>
    %c0_55 = arith.constant 0 : index
    %c0_56 = arith.constant 0 : index
    %c0_57 = arith.constant 0 : index
    %197 = vector.load %arg9[%c0_55, %c0_56, %c0_57] : memref<1x32x128xbf16, #tpu.memory_space<vmem>>, vector<1x32x128xbf16>
    %198 = vector.shape_cast %197 : vector<1x32x128xbf16> to vector<32x128xbf16>
    %c0_58 = arith.constant 0 : index
    %c0_59 = arith.constant 0 : index
    %c0_60 = arith.constant 0 : index
    %199 = vector.load %arg10[%c0_58, %c0_59, %c0_60] : memref<1x64x32xbf16, #tpu.memory_space<vmem>>, vector<1x64x32xbf16>
    %200 = vector.shape_cast %199 : vector<1x64x32xbf16> to vector<64x32xbf16>
    %201 = arith.truncf %196 : vector<16x32xf32> to vector<16x32xbf16>
    %cst_61 = arith.constant dense<0.000000e+00> : vector<16x128xf32>
    %202 = tpu.matmul %201, %198, %cst_61 {dimension_numbers = #tpu.dot_dimension_numbers<[1], [0], [0], [1], [0, 0, 1, 1], [], []>} : vector<16x32xbf16>, vector<32x128xbf16>, vector<16x128xf32> -> vector<16x128xf32>
    %203 = vector.extract_strided_slice %202 {offsets = [0, 0], sizes = [16, 64], strides = [1, 1]} : vector<16x128xf32> to vector<16x64xf32>
    %204 = arith.negf %203 : vector<16x64xf32>
    %205 = math.exp %204 : vector<16x64xf32>
    %cst_62 = arith.constant 1.000000e+00 : f32
    %206 = vector.broadcast %cst_62 : f32 to vector<16x64xf32>
    %207 = arith.addf %206, %205 : vector<16x64xf32>
    %208 = arith.divf %206, %207 : vector<16x64xf32>
    %209 = arith.mulf %203, %208 : vector<16x64xf32>
    %210 = vector.extract_strided_slice %202 {offsets = [0, 64], sizes = [16, 64], strides = [1, 1]} : vector<16x128xf32> to vector<16x64xf32>
    %211 = arith.mulf %209, %210 : vector<16x64xf32>
    %212 = arith.truncf %211 : vector<16x64xf32> to vector<16x64xbf16>
    %cst_63 = arith.constant dense<0.000000e+00> : vector<16x32xf32>
    %213 = tpu.matmul %212, %200, %cst_63 {dimension_numbers = #tpu.dot_dimension_numbers<[1], [0], [0], [1], [0, 0, 1, 1], [], []>} : vector<16x64xbf16>, vector<64x32xbf16>, vector<16x32xf32> -> vector<16x32xf32>
    %214 = arith.addf %182, %213 : vector<16x32xf32>
    %c0_64 = arith.constant 0 : index
    %c0_65 = arith.constant 0 : index
    %215 = vector.load %arg13[%c0_64, %c0_65] : memref<16x32xf32, #tpu.memory_space<vmem>>, vector<16x32xf32>
    tpu.vector_store %arg13[%c0_64, %c0_65], %214 {strides = array<i32>} : memref<16x32xf32, #tpu.memory_space<vmem>>, vector<16x32xf32>,
    %c1_i32 = arith.constant 1 : i32
    %216 = arith.cmpi eq, %arg1, %c1_i32 : i32
    %217 = arith.extui %216 : i1 to i32
    %c0_i32_66 = arith.constant 0 : i32
    %218 = arith.cmpi ne, %217, %c0_i32_66 : i32
    scf.if %218 {
      %c0_67 = arith.constant 0 : index
      %c0_68 = arith.constant 0 : index
      %219 = vector.load %arg11[%c0_67, %c0_68] : memref<1x32xf32, #tpu.memory_space<vmem>>, vector<1x32xf32>
      %220 = arith.mulf %214, %214 : vector<16x32xf32>
      %cst_69 = arith.constant dense<0.000000e+00> : vector<16xf32>
      %221 = vector.multi_reduction <add>, %220, %cst_69 [1] : vector<16x32xf32> to vector<16xf32>
      %222 = vector.shape_cast %221 : vector<16xf32> to vector<16x1xf32>
      %cst_70 = arith.constant 3.200000e+01 : f32
      %223 = vector.broadcast %cst_70 : f32 to vector<16x1xf32>
      %224 = arith.divf %222, %223 : vector<16x1xf32>
      %cst_71 = arith.constant 9.99999974E-6 : f32
      %225 = vector.broadcast %cst_71 : f32 to vector<16x1xf32>
      %226 = arith.addf %224, %225 : vector<16x1xf32>
      %227 = math.rsqrt %226 : vector<16x1xf32>
      %228 = vector.broadcast %227 : vector<16x1xf32> to vector<16x32xf32>
      %229 = arith.mulf %214, %228 : vector<16x32xf32>
      %230 = vector.broadcast %219 : vector<1x32xf32> to vector<16x32xf32>
      %231 = arith.mulf %229, %230 : vector<16x32xf32>
      %232 = arith.truncf %231 : vector<16x32xf32> to vector<16x32xbf16>
      %c0_72 = arith.constant 0 : index
      %c0_73 = arith.constant 0 : index
      %c0_74 = arith.constant 0 : index
      %233 = vector.load %arg12[%c0_72, %c0_73, %c0_74] : memref<1x16x32xbf16, #tpu.memory_space<vmem>>, vector<1x16x32xbf16>
      %234 = vector.shape_cast %233 : vector<1x16x32xbf16> to vector<16x32xbf16>
      %235 = vector.shape_cast %232 : vector<16x32xbf16> to vector<1x16x32xbf16>
      tpu.vector_store %arg12[%c0_72, %c0_73, %c0_74], %235 {strides = array<i32>} : memref<1x16x32xbf16, #tpu.memory_space<vmem>>, vector<1x16x32xbf16>,
    } else {
    }
    return
  }
  func.func @transform_0(%arg0: i32, %arg1: i32) -> (i32, i32, i32) {
    %c0_i32 = arith.constant 0 : i32
    %c0_i32_0 = arith.constant 0 : i32
    %c0_i32_1 = arith.constant 0 : i32
    return %arg0, %c0_i32, %c0_i32_0 : i32, i32, i32
  }
  func.func @transform_1(%arg0: i32, %arg1: i32) -> (i32, i32, i32) {
    %c0_i32 = arith.constant 0 : i32
    %c0_i32_0 = arith.constant 0 : i32
    %c0_i32_1 = arith.constant 0 : i32
    return %arg0, %c0_i32, %c0_i32_0 : i32, i32, i32
  }
  func.func @transform_2(%arg0: i32, %arg1: i32) -> (i32, i32, i32) {
    %c0_i32 = arith.constant 0 : i32
    %c0_i32_0 = arith.constant 0 : i32
    %c0_i32_1 = arith.constant 0 : i32
    return %arg0, %c0_i32, %c0_i32_0 : i32, i32, i32
  }
  func.func @transform_3(%arg0: i32, %arg1: i32) -> (i32, i32, i32) {
    %c0_i32 = arith.constant 0 : i32
    %c0_i32_0 = arith.constant 0 : i32
    %c0_i32_1 = arith.constant 0 : i32
    return %arg1, %c0_i32, %c0_i32_0 : i32, i32, i32
  }
  func.func @transform_4(%arg0: i32, %arg1: i32) -> (i32, i32, i32) {
    %c0_i32 = arith.constant 0 : i32
    %c0_i32_0 = arith.constant 0 : i32
    %c0_i32_1 = arith.constant 0 : i32
    return %arg1, %c0_i32, %c0_i32_0 : i32, i32, i32
  }
  func.func @transform_5(%arg0: i32, %arg1: i32) -> (i32, i32, i32) {
    %c0_i32 = arith.constant 0 : i32
    %c0_i32_0 = arith.constant 0 : i32
    %c0_i32_1 = arith.constant 0 : i32
    return %arg1, %c0_i32, %c0_i32_0 : i32, i32, i32
  }
  func.func @transform_6(%arg0: i32, %arg1: i32) -> (i32, i32, i32) {
    %c0_i32 = arith.constant 0 : i32
    %c0_i32_0 = arith.constant 0 : i32
    %c0_i32_1 = arith.constant 0 : i32
    return %arg1, %c0_i32, %c0_i32_0 : i32, i32, i32
  }
  func.func @transform_7(%arg0: i32, %arg1: i32) -> (i32, i32, i32) {
    %c0_i32 = arith.constant 0 : i32
    %c0_i32_0 = arith.constant 0 : i32
    %c0_i32_1 = arith.constant 0 : i32
    return %arg1, %c0_i32, %c0_i32_0 : i32, i32, i32
  }
  func.func @transform_8(%arg0: i32, %arg1: i32) -> (i32, i32, i32) {
    %c0_i32 = arith.constant 0 : i32
    %c0_i32_0 = arith.constant 0 : i32
    %c0_i32_1 = arith.constant 0 : i32
    return %arg1, %c0_i32, %c0_i32_0 : i32, i32, i32
  }
  func.func @transform_9(%arg0: i32, %arg1: i32) -> (i32, i32) {
    %c0_i32 = arith.constant 0 : i32
    %c0_i32_0 = arith.constant 0 : i32
    %c0_i32_1 = arith.constant 0 : i32
    return %c0_i32, %c0_i32_0 : i32, i32
  }
  func.func @transform_10(%arg0: i32, %arg1: i32) -> (i32, i32, i32) {
    %c0_i32 = arith.constant 0 : i32
    %c0_i32_0 = arith.constant 0 : i32
    %c0_i32_1 = arith.constant 0 : i32
    return %arg0, %c0_i32, %c0_i32_0 : i32, i32, i32
  }
}

module attributes {stable_mosaic.version = 11 : i64} {
  func.func @_decoder_stack_kernel(%arg0: i32, %arg1: i32, %arg2: memref<1x8x32xf32, #tpu.memory_space<vmem>>, %arg3: memref<1x16x32xbf16, #tpu.memory_space<vmem>>, %arg4: memref<1x8x8xf32, #tpu.memory_space<vmem>>, %arg5: memref<1x8x8xf32, #tpu.memory_space<vmem>>, %arg6: memref<1x16x8xf32, #tpu.memory_space<vmem>>, %arg7: memref<1x16x8xf32, #tpu.memory_space<vmem>>, %arg8: memref<1x1x32xf32, #tpu.memory_space<vmem>>, %arg9: memref<1x32x64xbf16, #tpu.memory_space<vmem>>, %arg10: memref<1x32x32xbf16, #tpu.memory_space<vmem>>, %arg11: memref<1x1x32xf32, #tpu.memory_space<vmem>>, %arg12: memref<1x32x32xbf16, #tpu.memory_space<vmem>>, %arg13: memref<1x32x64xbf16, #tpu.memory_space<vmem>>, %arg14: memref<1x32x32xbf16, #tpu.memory_space<vmem>>, %arg15: memref<1x1x32xf32, #tpu.memory_space<vmem>>, %arg16: memref<1x32x128xbf16, #tpu.memory_space<vmem>>, %arg17: memref<1x64x32xbf16, #tpu.memory_space<vmem>>, %arg18: memref<1x32xf32, #tpu.memory_space<vmem>>, %arg19: memref<1x8x32xbf16, #tpu.memory_space<vmem>>, %arg20: memref<8x32xf32, #tpu.memory_space<vmem>>) attributes {dimension_semantics = [#tpu.dimension_semantics<parallel>, #tpu.dimension_semantics<arbitrary>], iteration_bounds = array<i64: 2, 2>, scalar_prefetch = 0 : i64, scratch_operands = 1 : i64, tpu.core_type = #tpu.core_type<tc>, window_params = [{transform_indices = @transform_0, window_bounds = array<i64: 1, 8, 32>}, {transform_indices = @transform_1, window_bounds = array<i64: 1, 16, 32>}, {transform_indices = @transform_2, window_bounds = array<i64: 1, 8, 8>}, {transform_indices = @transform_3, window_bounds = array<i64: 1, 8, 8>}, {transform_indices = @transform_4, window_bounds = array<i64: 1, 16, 8>}, {transform_indices = @transform_5, window_bounds = array<i64: 1, 16, 8>}, {transform_indices = @transform_6, window_bounds = array<i64: 1, 1, 32>}, {transform_indices = @transform_7, window_bounds = array<i64: 1, 32, 64>}, {transform_indices = @transform_8, window_bounds = array<i64: 1, 32, 32>}, {transform_indices = @transform_9, window_bounds = array<i64: 1, 1, 32>}, {transform_indices = @transform_10, window_bounds = array<i64: 1, 32, 32>}, {transform_indices = @transform_11, window_bounds = array<i64: 1, 32, 64>}, {transform_indices = @transform_12, window_bounds = array<i64: 1, 32, 32>}, {transform_indices = @transform_13, window_bounds = array<i64: 1, 1, 32>}, {transform_indices = @transform_14, window_bounds = array<i64: 1, 32, 128>}, {transform_indices = @transform_15, window_bounds = array<i64: 1, 64, 32>}, {pipeline_mode = #tpu.pipeline_mode<synchronous>, transform_indices = @transform_16, window_bounds = array<i64: 1, 32>}, {transform_indices = @transform_17, window_bounds = array<i64: 1, 8, 32>}]} {
    %c0_i32 = arith.constant 0 : i32
    %0 = arith.cmpi eq, %arg1, %c0_i32 : i32
    %1 = arith.extui %0 : i1 to i32
    %c0_i32_0 = arith.constant 0 : i32
    %2 = arith.cmpi ne, %1, %c0_i32_0 : i32
    scf.if %2 {
      %c0_124 = arith.constant 0 : index
      %c0_125 = arith.constant 0 : index
      %c0_126 = arith.constant 0 : index
      %393 = vector.load %arg2[%c0_124, %c0_125, %c0_126] : memref<1x8x32xf32, #tpu.memory_space<vmem>>, vector<1x8x32xf32>
      %394 = vector.shape_cast %393 : vector<1x8x32xf32> to vector<8x32xf32>
      %c0_127 = arith.constant 0 : index
      %c0_128 = arith.constant 0 : index
      %395 = vector.load %arg20[%c0_127, %c0_128] : memref<8x32xf32, #tpu.memory_space<vmem>>, vector<8x32xf32>
      tpu.vector_store %arg20[%c0_127, %c0_128], %394 {strides = array<i32>} : memref<8x32xf32, #tpu.memory_space<vmem>>, vector<8x32xf32>,
    } else {
    }
    %c0 = arith.constant 0 : index
    %c0_1 = arith.constant 0 : index
    %3 = vector.load %arg20[%c0, %c0_1] : memref<8x32xf32, #tpu.memory_space<vmem>>, vector<8x32xf32>
    %c0_2 = arith.constant 0 : index
    %c0_3 = arith.constant 0 : index
    %c0_4 = arith.constant 0 : index
    %4 = vector.load %arg4[%c0_2, %c0_3, %c0_4] : memref<1x8x8xf32, #tpu.memory_space<vmem>>, vector<1x8x8xf32>
    %5 = vector.shape_cast %4 : vector<1x8x8xf32> to vector<8x8xf32>
    %c0_5 = arith.constant 0 : index
    %c0_6 = arith.constant 0 : index
    %c0_7 = arith.constant 0 : index
    %6 = vector.load %arg5[%c0_5, %c0_6, %c0_7] : memref<1x8x8xf32, #tpu.memory_space<vmem>>, vector<1x8x8xf32>
    %7 = vector.shape_cast %6 : vector<1x8x8xf32> to vector<8x8xf32>
    %c0_8 = arith.constant 0 : index
    %c0_9 = arith.constant 0 : index
    %c0_10 = arith.constant 0 : index
    %8 = vector.load %arg6[%c0_8, %c0_9, %c0_10] : memref<1x16x8xf32, #tpu.memory_space<vmem>>, vector<1x16x8xf32>
    %9 = vector.shape_cast %8 : vector<1x16x8xf32> to vector<16x8xf32>
    %c0_11 = arith.constant 0 : index
    %c0_12 = arith.constant 0 : index
    %c0_13 = arith.constant 0 : index
    %10 = vector.load %arg7[%c0_11, %c0_12, %c0_13] : memref<1x16x8xf32, #tpu.memory_space<vmem>>, vector<1x16x8xf32>
    %11 = vector.shape_cast %10 : vector<1x16x8xf32> to vector<16x8xf32>
    %c0_14 = arith.constant 0 : index
    %c0_15 = arith.constant 0 : index
    %c0_16 = arith.constant 0 : index
    %12 = vector.load %arg3[%c0_14, %c0_15, %c0_16] : memref<1x16x32xbf16, #tpu.memory_space<vmem>>, vector<1x16x32xbf16>
    %13 = vector.shape_cast %12 : vector<1x16x32xbf16> to vector<16x32xbf16>
    %c0_17 = arith.constant 0 : index
    %c0_18 = arith.constant 0 : index
    %c0_19 = arith.constant 0 : index
    %14 = vector.load %arg8[%c0_17, %c0_18, %c0_19] : memref<1x1x32xf32, #tpu.memory_space<vmem>>, vector<1x1x32xf32>
    %15 = vector.shape_cast %14 : vector<1x1x32xf32> to vector<1x32xf32>
    %16 = arith.mulf %3, %3 : vector<8x32xf32>
    %cst = arith.constant dense<0.000000e+00> : vector<8xf32>
    %17 = vector.multi_reduction <add>, %16, %cst [1] : vector<8x32xf32> to vector<8xf32>
    %18 = vector.shape_cast %17 : vector<8xf32> to vector<8x1xf32>
    %cst_20 = arith.constant 3.200000e+01 : f32
    %19 = vector.broadcast %cst_20 : f32 to vector<8x1xf32>
    %20 = arith.divf %18, %19 : vector<8x1xf32>
    %cst_21 = arith.constant 9.99999974E-6 : f32
    %21 = vector.broadcast %cst_21 : f32 to vector<8x1xf32>
    %22 = arith.addf %20, %21 : vector<8x1xf32>
    %23 = math.rsqrt %22 : vector<8x1xf32>
    %24 = vector.broadcast %23 : vector<8x1xf32> to vector<8x32xf32>
    %25 = arith.mulf %3, %24 : vector<8x32xf32>
    %26 = vector.broadcast %15 : vector<1x32xf32> to vector<8x32xf32>
    %27 = arith.mulf %25, %26 : vector<8x32xf32>
    %28 = arith.truncf %27 : vector<8x32xf32> to vector<8x32xbf16>
    %c0_22 = arith.constant 0 : index
    %c0_23 = arith.constant 0 : index
    %c0_24 = arith.constant 0 : index
    %29 = vector.load %arg9[%c0_22, %c0_23, %c0_24] : memref<1x32x64xbf16, #tpu.memory_space<vmem>>, vector<1x32x64xbf16>
    %30 = vector.shape_cast %29 : vector<1x32x64xbf16> to vector<32x64xbf16>
    %cst_25 = arith.constant dense<0.000000e+00> : vector<8x64xf32>
    %31 = tpu.matmul %28, %30, %cst_25 {dimension_numbers = #tpu.dot_dimension_numbers<[1], [0], [0], [1], [0, 0, 1, 1], [], []>} : vector<8x32xbf16>, vector<32x64xbf16>, vector<8x64xf32> -> vector<8x64xf32>
    %32 = vector.extract_strided_slice %31 {offsets = [0, 0], sizes = [8, 32], strides = [1, 1]} : vector<8x64xf32> to vector<8x32xf32>
    %33 = vector.extract_strided_slice %31 {offsets = [0, 32], sizes = [8, 16], strides = [1, 1]} : vector<8x64xf32> to vector<8x16xf32>
    %34 = vector.extract_strided_slice %31 {offsets = [0, 48], sizes = [8, 16], strides = [1, 1]} : vector<8x64xf32> to vector<8x16xf32>
    %35 = tpu.iota {dimensions = array<i32: 0>} : vector<8x8xi32>
    %36 = tpu.iota {dimensions = array<i32: 1>} : vector<8x8xi32>
    %37 = arith.cmpi sge, %35, %36 : vector<8x8xi32>
    %38 = vector.extract_strided_slice %33 {offsets = [0, 0], sizes = [8, 8], strides = [1, 1]} : vector<8x16xf32> to vector<8x8xf32>
    %39 = vector.extract_strided_slice %38 {offsets = [0, 0], sizes = [8, 4], strides = [1, 1]} : vector<8x8xf32> to vector<8x4xf32>
    %40 = vector.extract_strided_slice %38 {offsets = [0, 4], sizes = [8, 4], strides = [1, 1]} : vector<8x8xf32> to vector<8x4xf32>
    %cst_26 = arith.constant 0.000000e+00 : f32
    %41 = vector.broadcast %cst_26 : f32 to vector<8x4xf32>
    %42 = arith.subf %41, %40 : vector<8x4xf32>
    %43 = tpu.concatenate %42, %39 in 1 : vector<8x4xf32>, vector<8x4xf32> -> vector<8x8xf32>
    %44 = arith.mulf %38, %5 : vector<8x8xf32>
    %45 = arith.mulf %43, %7 : vector<8x8xf32>
    %46 = arith.addf %44, %45 : vector<8x8xf32>
    %47 = vector.extract_strided_slice %33 {offsets = [0, 8], sizes = [8, 8], strides = [1, 1]} : vector<8x16xf32> to vector<8x8xf32>
    %48 = vector.extract_strided_slice %47 {offsets = [0, 0], sizes = [8, 4], strides = [1, 1]} : vector<8x8xf32> to vector<8x4xf32>
    %49 = vector.extract_strided_slice %47 {offsets = [0, 4], sizes = [8, 4], strides = [1, 1]} : vector<8x8xf32> to vector<8x4xf32>
    %cst_27 = arith.constant 0.000000e+00 : f32
    %50 = vector.broadcast %cst_27 : f32 to vector<8x4xf32>
    %51 = arith.subf %50, %49 : vector<8x4xf32>
    %52 = tpu.concatenate %51, %48 in 1 : vector<8x4xf32>, vector<8x4xf32> -> vector<8x8xf32>
    %53 = arith.mulf %47, %5 : vector<8x8xf32>
    %54 = arith.mulf %52, %7 : vector<8x8xf32>
    %55 = arith.addf %53, %54 : vector<8x8xf32>
    %56 = vector.extract_strided_slice %34 {offsets = [0, 0], sizes = [8, 8], strides = [1, 1]} : vector<8x16xf32> to vector<8x8xf32>
    %57 = vector.extract_strided_slice %34 {offsets = [0, 8], sizes = [8, 8], strides = [1, 1]} : vector<8x16xf32> to vector<8x8xf32>
    %58 = vector.extract_strided_slice %32 {offsets = [0, 0], sizes = [8, 8], strides = [1, 1]} : vector<8x32xf32> to vector<8x8xf32>
    %59 = vector.extract_strided_slice %58 {offsets = [0, 0], sizes = [8, 4], strides = [1, 1]} : vector<8x8xf32> to vector<8x4xf32>
    %60 = vector.extract_strided_slice %58 {offsets = [0, 4], sizes = [8, 4], strides = [1, 1]} : vector<8x8xf32> to vector<8x4xf32>
    %cst_28 = arith.constant 0.000000e+00 : f32
    %61 = vector.broadcast %cst_28 : f32 to vector<8x4xf32>
    %62 = arith.subf %61, %60 : vector<8x4xf32>
    %63 = tpu.concatenate %62, %59 in 1 : vector<8x4xf32>, vector<8x4xf32> -> vector<8x8xf32>
    %64 = arith.mulf %58, %5 : vector<8x8xf32>
    %65 = arith.mulf %63, %7 : vector<8x8xf32>
    %66 = arith.addf %64, %65 : vector<8x8xf32>
    %67 = arith.truncf %66 : vector<8x8xf32> to vector<8x8xbf16>
    %68 = arith.truncf %46 : vector<8x8xf32> to vector<8x8xbf16>
    %cst_29 = arith.constant dense<0.000000e+00> : vector<8x8xf32>
    %69 = tpu.matmul %67, %68, %cst_29 {dimension_numbers = #tpu.dot_dimension_numbers<[1], [1], [0], [0], [0, 0, 1, 0], [], []>} : vector<8x8xbf16>, vector<8x8xbf16>, vector<8x8xf32> -> vector<8x8xf32>
    %cst_30 = arith.constant 0.353553385 : f32
    %70 = vector.broadcast %cst_30 : f32 to vector<8x8xf32>
    %71 = arith.mulf %69, %70 : vector<8x8xf32>
    %cst_31 = arith.constant -1.000000e+30 : f32
    %72 = vector.broadcast %cst_31 : f32 to vector<8x8xf32>
    %73 = arith.select %37, %71, %72 : vector<8x8xi1>, vector<8x8xf32>
    %cst_32 = arith.constant dense<0xFF800000> : vector<8xf32>
    %74 = vector.multi_reduction <maximumf>, %73, %cst_32 [1] : vector<8x8xf32> to vector<8xf32>
    %75 = vector.shape_cast %74 : vector<8xf32> to vector<8x1xf32>
    %76 = vector.broadcast %75 : vector<8x1xf32> to vector<8x8xf32>
    %77 = arith.subf %73, %76 : vector<8x8xf32>
    %78 = math.exp %77 : vector<8x8xf32>
    %cst_33 = arith.constant dense<0.000000e+00> : vector<8xf32>
    %79 = vector.multi_reduction <add>, %78, %cst_33 [1] : vector<8x8xf32> to vector<8xf32>
    %80 = vector.shape_cast %79 : vector<8xf32> to vector<8x1xf32>
    %81 = arith.truncf %78 : vector<8x8xf32> to vector<8x8xbf16>
    %82 = arith.truncf %56 : vector<8x8xf32> to vector<8x8xbf16>
    %cst_34 = arith.constant dense<0.000000e+00> : vector<8x8xf32>
    %83 = tpu.matmul %81, %82, %cst_34 {dimension_numbers = #tpu.dot_dimension_numbers<[1], [0], [0], [1], [0, 0, 1, 1], [], []>} : vector<8x8xbf16>, vector<8x8xbf16>, vector<8x8xf32> -> vector<8x8xf32>
    %84 = tpu.reciprocal %80 {approx = true} : vector<8x1xf32> -> vector<8x1xf32>
    %85 = vector.broadcast %84 : vector<8x1xf32> to vector<8x8xf32>
    %86 = arith.mulf %83, %85 : vector<8x8xf32>
    %87 = vector.extract_strided_slice %32 {offsets = [0, 8], sizes = [8, 8], strides = [1, 1]} : vector<8x32xf32> to vector<8x8xf32>
    %88 = vector.extract_strided_slice %87 {offsets = [0, 0], sizes = [8, 4], strides = [1, 1]} : vector<8x8xf32> to vector<8x4xf32>
    %89 = vector.extract_strided_slice %87 {offsets = [0, 4], sizes = [8, 4], strides = [1, 1]} : vector<8x8xf32> to vector<8x4xf32>
    %cst_35 = arith.constant 0.000000e+00 : f32
    %90 = vector.broadcast %cst_35 : f32 to vector<8x4xf32>
    %91 = arith.subf %90, %89 : vector<8x4xf32>
    %92 = tpu.concatenate %91, %88 in 1 : vector<8x4xf32>, vector<8x4xf32> -> vector<8x8xf32>
    %93 = arith.mulf %87, %5 : vector<8x8xf32>
    %94 = arith.mulf %92, %7 : vector<8x8xf32>
    %95 = arith.addf %93, %94 : vector<8x8xf32>
    %96 = arith.truncf %95 : vector<8x8xf32> to vector<8x8xbf16>
    %97 = arith.truncf %46 : vector<8x8xf32> to vector<8x8xbf16>
    %cst_36 = arith.constant dense<0.000000e+00> : vector<8x8xf32>
    %98 = tpu.matmul %96, %97, %cst_36 {dimension_numbers = #tpu.dot_dimension_numbers<[1], [1], [0], [0], [0, 0, 1, 0], [], []>} : vector<8x8xbf16>, vector<8x8xbf16>, vector<8x8xf32> -> vector<8x8xf32>
    %cst_37 = arith.constant 0.353553385 : f32
    %99 = vector.broadcast %cst_37 : f32 to vector<8x8xf32>
    %100 = arith.mulf %98, %99 : vector<8x8xf32>
    %cst_38 = arith.constant -1.000000e+30 : f32
    %101 = vector.broadcast %cst_38 : f32 to vector<8x8xf32>
    %102 = arith.select %37, %100, %101 : vector<8x8xi1>, vector<8x8xf32>
    %cst_39 = arith.constant dense<0xFF800000> : vector<8xf32>
    %103 = vector.multi_reduction <maximumf>, %102, %cst_39 [1] : vector<8x8xf32> to vector<8xf32>
    %104 = vector.shape_cast %103 : vector<8xf32> to vector<8x1xf32>
    %105 = vector.broadcast %104 : vector<8x1xf32> to vector<8x8xf32>
    %106 = arith.subf %102, %105 : vector<8x8xf32>
    %107 = math.exp %106 : vector<8x8xf32>
    %cst_40 = arith.constant dense<0.000000e+00> : vector<8xf32>
    %108 = vector.multi_reduction <add>, %107, %cst_40 [1] : vector<8x8xf32> to vector<8xf32>
    %109 = vector.shape_cast %108 : vector<8xf32> to vector<8x1xf32>
    %110 = arith.truncf %107 : vector<8x8xf32> to vector<8x8xbf16>
    %111 = arith.truncf %56 : vector<8x8xf32> to vector<8x8xbf16>
    %cst_41 = arith.constant dense<0.000000e+00> : vector<8x8xf32>
    %112 = tpu.matmul %110, %111, %cst_41 {dimension_numbers = #tpu.dot_dimension_numbers<[1], [0], [0], [1], [0, 0, 1, 1], [], []>} : vector<8x8xbf16>, vector<8x8xbf16>, vector<8x8xf32> -> vector<8x8xf32>
    %113 = tpu.reciprocal %109 {approx = true} : vector<8x1xf32> -> vector<8x1xf32>
    %114 = vector.broadcast %113 : vector<8x1xf32> to vector<8x8xf32>
    %115 = arith.mulf %112, %114 : vector<8x8xf32>
    %116 = vector.extract_strided_slice %32 {offsets = [0, 16], sizes = [8, 8], strides = [1, 1]} : vector<8x32xf32> to vector<8x8xf32>
    %117 = vector.extract_strided_slice %116 {offsets = [0, 0], sizes = [8, 4], strides = [1, 1]} : vector<8x8xf32> to vector<8x4xf32>
    %118 = vector.extract_strided_slice %116 {offsets = [0, 4], sizes = [8, 4], strides = [1, 1]} : vector<8x8xf32> to vector<8x4xf32>
    %cst_42 = arith.constant 0.000000e+00 : f32
    %119 = vector.broadcast %cst_42 : f32 to vector<8x4xf32>
    %120 = arith.subf %119, %118 : vector<8x4xf32>
    %121 = tpu.concatenate %120, %117 in 1 : vector<8x4xf32>, vector<8x4xf32> -> vector<8x8xf32>
    %122 = arith.mulf %116, %5 : vector<8x8xf32>
    %123 = arith.mulf %121, %7 : vector<8x8xf32>
    %124 = arith.addf %122, %123 : vector<8x8xf32>
    %125 = arith.truncf %124 : vector<8x8xf32> to vector<8x8xbf16>
    %126 = arith.truncf %55 : vector<8x8xf32> to vector<8x8xbf16>
    %cst_43 = arith.constant dense<0.000000e+00> : vector<8x8xf32>
    %127 = tpu.matmul %125, %126, %cst_43 {dimension_numbers = #tpu.dot_dimension_numbers<[1], [1], [0], [0], [0, 0, 1, 0], [], []>} : vector<8x8xbf16>, vector<8x8xbf16>, vector<8x8xf32> -> vector<8x8xf32>
    %cst_44 = arith.constant 0.353553385 : f32
    %128 = vector.broadcast %cst_44 : f32 to vector<8x8xf32>
    %129 = arith.mulf %127, %128 : vector<8x8xf32>
    %cst_45 = arith.constant -1.000000e+30 : f32
    %130 = vector.broadcast %cst_45 : f32 to vector<8x8xf32>
    %131 = arith.select %37, %129, %130 : vector<8x8xi1>, vector<8x8xf32>
    %cst_46 = arith.constant dense<0xFF800000> : vector<8xf32>
    %132 = vector.multi_reduction <maximumf>, %131, %cst_46 [1] : vector<8x8xf32> to vector<8xf32>
    %133 = vector.shape_cast %132 : vector<8xf32> to vector<8x1xf32>
    %134 = vector.broadcast %133 : vector<8x1xf32> to vector<8x8xf32>
    %135 = arith.subf %131, %134 : vector<8x8xf32>
    %136 = math.exp %135 : vector<8x8xf32>
    %cst_47 = arith.constant dense<0.000000e+00> : vector<8xf32>
    %137 = vector.multi_reduction <add>, %136, %cst_47 [1] : vector<8x8xf32> to vector<8xf32>
    %138 = vector.shape_cast %137 : vector<8xf32> to vector<8x1xf32>
    %139 = arith.truncf %136 : vector<8x8xf32> to vector<8x8xbf16>
    %140 = arith.truncf %57 : vector<8x8xf32> to vector<8x8xbf16>
    %cst_48 = arith.constant dense<0.000000e+00> : vector<8x8xf32>
    %141 = tpu.matmul %139, %140, %cst_48 {dimension_numbers = #tpu.dot_dimension_numbers<[1], [0], [0], [1], [0, 0, 1, 1], [], []>} : vector<8x8xbf16>, vector<8x8xbf16>, vector<8x8xf32> -> vector<8x8xf32>
    %142 = tpu.reciprocal %138 {approx = true} : vector<8x1xf32> -> vector<8x1xf32>
    %143 = vector.broadcast %142 : vector<8x1xf32> to vector<8x8xf32>
    %144 = arith.mulf %141, %143 : vector<8x8xf32>
    %145 = vector.extract_strided_slice %32 {offsets = [0, 24], sizes = [8, 8], strides = [1, 1]} : vector<8x32xf32> to vector<8x8xf32>
    %146 = vector.extract_strided_slice %145 {offsets = [0, 0], sizes = [8, 4], strides = [1, 1]} : vector<8x8xf32> to vector<8x4xf32>
    %147 = vector.extract_strided_slice %145 {offsets = [0, 4], sizes = [8, 4], strides = [1, 1]} : vector<8x8xf32> to vector<8x4xf32>
    %cst_49 = arith.constant 0.000000e+00 : f32
    %148 = vector.broadcast %cst_49 : f32 to vector<8x4xf32>
    %149 = arith.subf %148, %147 : vector<8x4xf32>
    %150 = tpu.concatenate %149, %146 in 1 : vector<8x4xf32>, vector<8x4xf32> -> vector<8x8xf32>
    %151 = arith.mulf %145, %5 : vector<8x8xf32>
    %152 = arith.mulf %150, %7 : vector<8x8xf32>
    %153 = arith.addf %151, %152 : vector<8x8xf32>
    %154 = arith.truncf %153 : vector<8x8xf32> to vector<8x8xbf16>
    %155 = arith.truncf %55 : vector<8x8xf32> to vector<8x8xbf16>
    %cst_50 = arith.constant dense<0.000000e+00> : vector<8x8xf32>
    %156 = tpu.matmul %154, %155, %cst_50 {dimension_numbers = #tpu.dot_dimension_numbers<[1], [1], [0], [0], [0, 0, 1, 0], [], []>} : vector<8x8xbf16>, vector<8x8xbf16>, vector<8x8xf32> -> vector<8x8xf32>
    %cst_51 = arith.constant 0.353553385 : f32
    %157 = vector.broadcast %cst_51 : f32 to vector<8x8xf32>
    %158 = arith.mulf %156, %157 : vector<8x8xf32>
    %cst_52 = arith.constant -1.000000e+30 : f32
    %159 = vector.broadcast %cst_52 : f32 to vector<8x8xf32>
    %160 = arith.select %37, %158, %159 : vector<8x8xi1>, vector<8x8xf32>
    %cst_53 = arith.constant dense<0xFF800000> : vector<8xf32>
    %161 = vector.multi_reduction <maximumf>, %160, %cst_53 [1] : vector<8x8xf32> to vector<8xf32>
    %162 = vector.shape_cast %161 : vector<8xf32> to vector<8x1xf32>
    %163 = vector.broadcast %162 : vector<8x1xf32> to vector<8x8xf32>
    %164 = arith.subf %160, %163 : vector<8x8xf32>
    %165 = math.exp %164 : vector<8x8xf32>
    %cst_54 = arith.constant dense<0.000000e+00> : vector<8xf32>
    %166 = vector.multi_reduction <add>, %165, %cst_54 [1] : vector<8x8xf32> to vector<8xf32>
    %167 = vector.shape_cast %166 : vector<8xf32> to vector<8x1xf32>
    %168 = arith.truncf %165 : vector<8x8xf32> to vector<8x8xbf16>
    %169 = arith.truncf %57 : vector<8x8xf32> to vector<8x8xbf16>
    %cst_55 = arith.constant dense<0.000000e+00> : vector<8x8xf32>
    %170 = tpu.matmul %168, %169, %cst_55 {dimension_numbers = #tpu.dot_dimension_numbers<[1], [0], [0], [1], [0, 0, 1, 1], [], []>} : vector<8x8xbf16>, vector<8x8xbf16>, vector<8x8xf32> -> vector<8x8xf32>
    %171 = tpu.reciprocal %167 {approx = true} : vector<8x1xf32> -> vector<8x1xf32>
    %172 = vector.broadcast %171 : vector<8x1xf32> to vector<8x8xf32>
    %173 = arith.mulf %170, %172 : vector<8x8xf32>
    %174 = tpu.concatenate %86, %115, %144, %173 in 1 : vector<8x8xf32>, vector<8x8xf32>, vector<8x8xf32>, vector<8x8xf32> -> vector<8x32xf32>
    %175 = arith.truncf %174 : vector<8x32xf32> to vector<8x32xbf16>
    %c0_56 = arith.constant 0 : index
    %c0_57 = arith.constant 0 : index
    %c0_58 = arith.constant 0 : index
    %176 = vector.load %arg10[%c0_56, %c0_57, %c0_58] : memref<1x32x32xbf16, #tpu.memory_space<vmem>>, vector<1x32x32xbf16>
    %177 = vector.shape_cast %176 : vector<1x32x32xbf16> to vector<32x32xbf16>
    %cst_59 = arith.constant dense<0.000000e+00> : vector<8x32xf32>
    %178 = tpu.matmul %175, %177, %cst_59 {dimension_numbers = #tpu.dot_dimension_numbers<[1], [0], [0], [1], [0, 0, 1, 1], [], []>} : vector<8x32xbf16>, vector<32x32xbf16>, vector<8x32xf32> -> vector<8x32xf32>
    %179 = arith.addf %3, %178 : vector<8x32xf32>
    %c0_60 = arith.constant 0 : index
    %c0_61 = arith.constant 0 : index
    %c0_62 = arith.constant 0 : index
    %180 = vector.load %arg11[%c0_60, %c0_61, %c0_62] : memref<1x1x32xf32, #tpu.memory_space<vmem>>, vector<1x1x32xf32>
    %181 = vector.shape_cast %180 : vector<1x1x32xf32> to vector<1x32xf32>
    %182 = arith.mulf %179, %179 : vector<8x32xf32>
    %cst_63 = arith.constant dense<0.000000e+00> : vector<8xf32>
    %183 = vector.multi_reduction <add>, %182, %cst_63 [1] : vector<8x32xf32> to vector<8xf32>
    %184 = vector.shape_cast %183 : vector<8xf32> to vector<8x1xf32>
    %cst_64 = arith.constant 3.200000e+01 : f32
    %185 = vector.broadcast %cst_64 : f32 to vector<8x1xf32>
    %186 = arith.divf %184, %185 : vector<8x1xf32>
    %cst_65 = arith.constant 9.99999974E-6 : f32
    %187 = vector.broadcast %cst_65 : f32 to vector<8x1xf32>
    %188 = arith.addf %186, %187 : vector<8x1xf32>
    %189 = math.rsqrt %188 : vector<8x1xf32>
    %190 = vector.broadcast %189 : vector<8x1xf32> to vector<8x32xf32>
    %191 = arith.mulf %179, %190 : vector<8x32xf32>
    %192 = vector.broadcast %181 : vector<1x32xf32> to vector<8x32xf32>
    %193 = arith.mulf %191, %192 : vector<8x32xf32>
    %194 = arith.truncf %193 : vector<8x32xf32> to vector<8x32xbf16>
    %c0_66 = arith.constant 0 : index
    %c0_67 = arith.constant 0 : index
    %c0_68 = arith.constant 0 : index
    %195 = vector.load %arg12[%c0_66, %c0_67, %c0_68] : memref<1x32x32xbf16, #tpu.memory_space<vmem>>, vector<1x32x32xbf16>
    %196 = vector.shape_cast %195 : vector<1x32x32xbf16> to vector<32x32xbf16>
    %cst_69 = arith.constant dense<0.000000e+00> : vector<8x32xf32>
    %197 = tpu.matmul %194, %196, %cst_69 {dimension_numbers = #tpu.dot_dimension_numbers<[1], [0], [0], [1], [0, 0, 1, 1], [], []>} : vector<8x32xbf16>, vector<32x32xbf16>, vector<8x32xf32> -> vector<8x32xf32>
    %c0_70 = arith.constant 0 : index
    %c0_71 = arith.constant 0 : index
    %c0_72 = arith.constant 0 : index
    %198 = vector.load %arg13[%c0_70, %c0_71, %c0_72] : memref<1x32x64xbf16, #tpu.memory_space<vmem>>, vector<1x32x64xbf16>
    %199 = vector.shape_cast %198 : vector<1x32x64xbf16> to vector<32x64xbf16>
    %cst_73 = arith.constant dense<0.000000e+00> : vector<16x64xf32>
    %200 = tpu.matmul %13, %199, %cst_73 {dimension_numbers = #tpu.dot_dimension_numbers<[1], [0], [0], [1], [0, 0, 1, 1], [], []>} : vector<16x32xbf16>, vector<32x64xbf16>, vector<16x64xf32> -> vector<16x64xf32>
    %201 = vector.extract_strided_slice %200 {offsets = [0, 0], sizes = [16, 32], strides = [1, 1]} : vector<16x64xf32> to vector<16x32xf32>
    %202 = vector.extract_strided_slice %200 {offsets = [0, 32], sizes = [16, 32], strides = [1, 1]} : vector<16x64xf32> to vector<16x32xf32>
    %203 = vector.extract_strided_slice %201 {offsets = [0, 0], sizes = [16, 8], strides = [1, 1]} : vector<16x32xf32> to vector<16x8xf32>
    %204 = vector.extract_strided_slice %203 {offsets = [0, 0], sizes = [16, 4], strides = [1, 1]} : vector<16x8xf32> to vector<16x4xf32>
    %205 = vector.extract_strided_slice %203 {offsets = [0, 4], sizes = [16, 4], strides = [1, 1]} : vector<16x8xf32> to vector<16x4xf32>
    %cst_74 = arith.constant 0.000000e+00 : f32
    %206 = vector.broadcast %cst_74 : f32 to vector<16x4xf32>
    %207 = arith.subf %206, %205 : vector<16x4xf32>
    %208 = tpu.concatenate %207, %204 in 1 : vector<16x4xf32>, vector<16x4xf32> -> vector<16x8xf32>
    %209 = arith.mulf %203, %9 : vector<16x8xf32>
    %210 = arith.mulf %208, %11 : vector<16x8xf32>
    %211 = arith.addf %209, %210 : vector<16x8xf32>
    %212 = vector.extract_strided_slice %201 {offsets = [0, 8], sizes = [16, 8], strides = [1, 1]} : vector<16x32xf32> to vector<16x8xf32>
    %213 = vector.extract_strided_slice %212 {offsets = [0, 0], sizes = [16, 4], strides = [1, 1]} : vector<16x8xf32> to vector<16x4xf32>
    %214 = vector.extract_strided_slice %212 {offsets = [0, 4], sizes = [16, 4], strides = [1, 1]} : vector<16x8xf32> to vector<16x4xf32>
    %cst_75 = arith.constant 0.000000e+00 : f32
    %215 = vector.broadcast %cst_75 : f32 to vector<16x4xf32>
    %216 = arith.subf %215, %214 : vector<16x4xf32>
    %217 = tpu.concatenate %216, %213 in 1 : vector<16x4xf32>, vector<16x4xf32> -> vector<16x8xf32>
    %218 = arith.mulf %212, %9 : vector<16x8xf32>
    %219 = arith.mulf %217, %11 : vector<16x8xf32>
    %220 = arith.addf %218, %219 : vector<16x8xf32>
    %221 = vector.extract_strided_slice %201 {offsets = [0, 16], sizes = [16, 8], strides = [1, 1]} : vector<16x32xf32> to vector<16x8xf32>
    %222 = vector.extract_strided_slice %221 {offsets = [0, 0], sizes = [16, 4], strides = [1, 1]} : vector<16x8xf32> to vector<16x4xf32>
    %223 = vector.extract_strided_slice %221 {offsets = [0, 4], sizes = [16, 4], strides = [1, 1]} : vector<16x8xf32> to vector<16x4xf32>
    %cst_76 = arith.constant 0.000000e+00 : f32
    %224 = vector.broadcast %cst_76 : f32 to vector<16x4xf32>
    %225 = arith.subf %224, %223 : vector<16x4xf32>
    %226 = tpu.concatenate %225, %222 in 1 : vector<16x4xf32>, vector<16x4xf32> -> vector<16x8xf32>
    %227 = arith.mulf %221, %9 : vector<16x8xf32>
    %228 = arith.mulf %226, %11 : vector<16x8xf32>
    %229 = arith.addf %227, %228 : vector<16x8xf32>
    %230 = vector.extract_strided_slice %201 {offsets = [0, 24], sizes = [16, 8], strides = [1, 1]} : vector<16x32xf32> to vector<16x8xf32>
    %231 = vector.extract_strided_slice %230 {offsets = [0, 0], sizes = [16, 4], strides = [1, 1]} : vector<16x8xf32> to vector<16x4xf32>
    %232 = vector.extract_strided_slice %230 {offsets = [0, 4], sizes = [16, 4], strides = [1, 1]} : vector<16x8xf32> to vector<16x4xf32>
    %cst_77 = arith.constant 0.000000e+00 : f32
    %233 = vector.broadcast %cst_77 : f32 to vector<16x4xf32>
    %234 = arith.subf %233, %232 : vector<16x4xf32>
    %235 = tpu.concatenate %234, %231 in 1 : vector<16x4xf32>, vector<16x4xf32> -> vector<16x8xf32>
    %236 = arith.mulf %230, %9 : vector<16x8xf32>
    %237 = arith.mulf %235, %11 : vector<16x8xf32>
    %238 = arith.addf %236, %237 : vector<16x8xf32>
    %239 = vector.extract_strided_slice %202 {offsets = [0, 0], sizes = [16, 8], strides = [1, 1]} : vector<16x32xf32> to vector<16x8xf32>
    %240 = vector.extract_strided_slice %202 {offsets = [0, 8], sizes = [16, 8], strides = [1, 1]} : vector<16x32xf32> to vector<16x8xf32>
    %241 = vector.extract_strided_slice %202 {offsets = [0, 16], sizes = [16, 8], strides = [1, 1]} : vector<16x32xf32> to vector<16x8xf32>
    %242 = vector.extract_strided_slice %202 {offsets = [0, 24], sizes = [16, 8], strides = [1, 1]} : vector<16x32xf32> to vector<16x8xf32>
    %243 = vector.extract_strided_slice %197 {offsets = [0, 0], sizes = [8, 8], strides = [1, 1]} : vector<8x32xf32> to vector<8x8xf32>
    %244 = vector.extract_strided_slice %243 {offsets = [0, 0], sizes = [8, 4], strides = [1, 1]} : vector<8x8xf32> to vector<8x4xf32>
    %245 = vector.extract_strided_slice %243 {offsets = [0, 4], sizes = [8, 4], strides = [1, 1]} : vector<8x8xf32> to vector<8x4xf32>
    %cst_78 = arith.constant 0.000000e+00 : f32
    %246 = vector.broadcast %cst_78 : f32 to vector<8x4xf32>
    %247 = arith.subf %246, %245 : vector<8x4xf32>
    %248 = tpu.concatenate %247, %244 in 1 : vector<8x4xf32>, vector<8x4xf32> -> vector<8x8xf32>
    %249 = arith.mulf %243, %5 : vector<8x8xf32>
    %250 = arith.mulf %248, %7 : vector<8x8xf32>
    %251 = arith.addf %249, %250 : vector<8x8xf32>
    %252 = arith.truncf %251 : vector<8x8xf32> to vector<8x8xbf16>
    %253 = arith.truncf %211 : vector<16x8xf32> to vector<16x8xbf16>
    %cst_79 = arith.constant dense<0.000000e+00> : vector<8x16xf32>
    %254 = tpu.matmul %252, %253, %cst_79 {dimension_numbers = #tpu.dot_dimension_numbers<[1], [1], [0], [0], [0, 0, 1, 0], [], []>} : vector<8x8xbf16>, vector<16x8xbf16>, vector<8x16xf32> -> vector<8x16xf32>
    %cst_80 = arith.constant 0.353553385 : f32
    %255 = vector.broadcast %cst_80 : f32 to vector<8x16xf32>
    %256 = arith.mulf %254, %255 : vector<8x16xf32>
    %cst_81 = arith.constant dense<0xFF800000> : vector<8xf32>
    %257 = vector.multi_reduction <maximumf>, %256, %cst_81 [1] : vector<8x16xf32> to vector<8xf32>
    %258 = vector.shape_cast %257 : vector<8xf32> to vector<8x1xf32>
    %259 = vector.broadcast %258 : vector<8x1xf32> to vector<8x16xf32>
    %260 = arith.subf %256, %259 : vector<8x16xf32>
    %261 = math.exp %260 : vector<8x16xf32>
    %cst_82 = arith.constant dense<0.000000e+00> : vector<8xf32>
    %262 = vector.multi_reduction <add>, %261, %cst_82 [1] : vector<8x16xf32> to vector<8xf32>
    %263 = vector.shape_cast %262 : vector<8xf32> to vector<8x1xf32>
    %264 = arith.truncf %261 : vector<8x16xf32> to vector<8x16xbf16>
    %265 = arith.truncf %239 : vector<16x8xf32> to vector<16x8xbf16>
    %cst_83 = arith.constant dense<0.000000e+00> : vector<8x8xf32>
    %266 = tpu.matmul %264, %265, %cst_83 {dimension_numbers = #tpu.dot_dimension_numbers<[1], [0], [0], [1], [0, 0, 1, 1], [], []>} : vector<8x16xbf16>, vector<16x8xbf16>, vector<8x8xf32> -> vector<8x8xf32>
    %267 = tpu.reciprocal %263 {approx = true} : vector<8x1xf32> -> vector<8x1xf32>
    %268 = vector.broadcast %267 : vector<8x1xf32> to vector<8x8xf32>
    %269 = arith.mulf %266, %268 : vector<8x8xf32>
    %270 = vector.extract_strided_slice %197 {offsets = [0, 8], sizes = [8, 8], strides = [1, 1]} : vector<8x32xf32> to vector<8x8xf32>
    %271 = vector.extract_strided_slice %270 {offsets = [0, 0], sizes = [8, 4], strides = [1, 1]} : vector<8x8xf32> to vector<8x4xf32>
    %272 = vector.extract_strided_slice %270 {offsets = [0, 4], sizes = [8, 4], strides = [1, 1]} : vector<8x8xf32> to vector<8x4xf32>
    %cst_84 = arith.constant 0.000000e+00 : f32
    %273 = vector.broadcast %cst_84 : f32 to vector<8x4xf32>
    %274 = arith.subf %273, %272 : vector<8x4xf32>
    %275 = tpu.concatenate %274, %271 in 1 : vector<8x4xf32>, vector<8x4xf32> -> vector<8x8xf32>
    %276 = arith.mulf %270, %5 : vector<8x8xf32>
    %277 = arith.mulf %275, %7 : vector<8x8xf32>
    %278 = arith.addf %276, %277 : vector<8x8xf32>
    %279 = arith.truncf %278 : vector<8x8xf32> to vector<8x8xbf16>
    %280 = arith.truncf %220 : vector<16x8xf32> to vector<16x8xbf16>
    %cst_85 = arith.constant dense<0.000000e+00> : vector<8x16xf32>
    %281 = tpu.matmul %279, %280, %cst_85 {dimension_numbers = #tpu.dot_dimension_numbers<[1], [1], [0], [0], [0, 0, 1, 0], [], []>} : vector<8x8xbf16>, vector<16x8xbf16>, vector<8x16xf32> -> vector<8x16xf32>
    %cst_86 = arith.constant 0.353553385 : f32
    %282 = vector.broadcast %cst_86 : f32 to vector<8x16xf32>
    %283 = arith.mulf %281, %282 : vector<8x16xf32>
    %cst_87 = arith.constant dense<0xFF800000> : vector<8xf32>
    %284 = vector.multi_reduction <maximumf>, %283, %cst_87 [1] : vector<8x16xf32> to vector<8xf32>
    %285 = vector.shape_cast %284 : vector<8xf32> to vector<8x1xf32>
    %286 = vector.broadcast %285 : vector<8x1xf32> to vector<8x16xf32>
    %287 = arith.subf %283, %286 : vector<8x16xf32>
    %288 = math.exp %287 : vector<8x16xf32>
    %cst_88 = arith.constant dense<0.000000e+00> : vector<8xf32>
    %289 = vector.multi_reduction <add>, %288, %cst_88 [1] : vector<8x16xf32> to vector<8xf32>
    %290 = vector.shape_cast %289 : vector<8xf32> to vector<8x1xf32>
    %291 = arith.truncf %288 : vector<8x16xf32> to vector<8x16xbf16>
    %292 = arith.truncf %240 : vector<16x8xf32> to vector<16x8xbf16>
    %cst_89 = arith.constant dense<0.000000e+00> : vector<8x8xf32>
    %293 = tpu.matmul %291, %292, %cst_89 {dimension_numbers = #tpu.dot_dimension_numbers<[1], [0], [0], [1], [0, 0, 1, 1], [], []>} : vector<8x16xbf16>, vector<16x8xbf16>, vector<8x8xf32> -> vector<8x8xf32>
    %294 = tpu.reciprocal %290 {approx = true} : vector<8x1xf32> -> vector<8x1xf32>
    %295 = vector.broadcast %294 : vector<8x1xf32> to vector<8x8xf32>
    %296 = arith.mulf %293, %295 : vector<8x8xf32>
    %297 = vector.extract_strided_slice %197 {offsets = [0, 16], sizes = [8, 8], strides = [1, 1]} : vector<8x32xf32> to vector<8x8xf32>
    %298 = vector.extract_strided_slice %297 {offsets = [0, 0], sizes = [8, 4], strides = [1, 1]} : vector<8x8xf32> to vector<8x4xf32>
    %299 = vector.extract_strided_slice %297 {offsets = [0, 4], sizes = [8, 4], strides = [1, 1]} : vector<8x8xf32> to vector<8x4xf32>
    %cst_90 = arith.constant 0.000000e+00 : f32
    %300 = vector.broadcast %cst_90 : f32 to vector<8x4xf32>
    %301 = arith.subf %300, %299 : vector<8x4xf32>
    %302 = tpu.concatenate %301, %298 in 1 : vector<8x4xf32>, vector<8x4xf32> -> vector<8x8xf32>
    %303 = arith.mulf %297, %5 : vector<8x8xf32>
    %304 = arith.mulf %302, %7 : vector<8x8xf32>
    %305 = arith.addf %303, %304 : vector<8x8xf32>
    %306 = arith.truncf %305 : vector<8x8xf32> to vector<8x8xbf16>
    %307 = arith.truncf %229 : vector<16x8xf32> to vector<16x8xbf16>
    %cst_91 = arith.constant dense<0.000000e+00> : vector<8x16xf32>
    %308 = tpu.matmul %306, %307, %cst_91 {dimension_numbers = #tpu.dot_dimension_numbers<[1], [1], [0], [0], [0, 0, 1, 0], [], []>} : vector<8x8xbf16>, vector<16x8xbf16>, vector<8x16xf32> -> vector<8x16xf32>
    %cst_92 = arith.constant 0.353553385 : f32
    %309 = vector.broadcast %cst_92 : f32 to vector<8x16xf32>
    %310 = arith.mulf %308, %309 : vector<8x16xf32>
    %cst_93 = arith.constant dense<0xFF800000> : vector<8xf32>
    %311 = vector.multi_reduction <maximumf>, %310, %cst_93 [1] : vector<8x16xf32> to vector<8xf32>
    %312 = vector.shape_cast %311 : vector<8xf32> to vector<8x1xf32>
    %313 = vector.broadcast %312 : vector<8x1xf32> to vector<8x16xf32>
    %314 = arith.subf %310, %313 : vector<8x16xf32>
    %315 = math.exp %314 : vector<8x16xf32>
    %cst_94 = arith.constant dense<0.000000e+00> : vector<8xf32>
    %316 = vector.multi_reduction <add>, %315, %cst_94 [1] : vector<8x16xf32> to vector<8xf32>
    %317 = vector.shape_cast %316 : vector<8xf32> to vector<8x1xf32>
    %318 = arith.truncf %315 : vector<8x16xf32> to vector<8x16xbf16>
    %319 = arith.truncf %241 : vector<16x8xf32> to vector<16x8xbf16>
    %cst_95 = arith.constant dense<0.000000e+00> : vector<8x8xf32>
    %320 = tpu.matmul %318, %319, %cst_95 {dimension_numbers = #tpu.dot_dimension_numbers<[1], [0], [0], [1], [0, 0, 1, 1], [], []>} : vector<8x16xbf16>, vector<16x8xbf16>, vector<8x8xf32> -> vector<8x8xf32>
    %321 = tpu.reciprocal %317 {approx = true} : vector<8x1xf32> -> vector<8x1xf32>
    %322 = vector.broadcast %321 : vector<8x1xf32> to vector<8x8xf32>
    %323 = arith.mulf %320, %322 : vector<8x8xf32>
    %324 = vector.extract_strided_slice %197 {offsets = [0, 24], sizes = [8, 8], strides = [1, 1]} : vector<8x32xf32> to vector<8x8xf32>
    %325 = vector.extract_strided_slice %324 {offsets = [0, 0], sizes = [8, 4], strides = [1, 1]} : vector<8x8xf32> to vector<8x4xf32>
    %326 = vector.extract_strided_slice %324 {offsets = [0, 4], sizes = [8, 4], strides = [1, 1]} : vector<8x8xf32> to vector<8x4xf32>
    %cst_96 = arith.constant 0.000000e+00 : f32
    %327 = vector.broadcast %cst_96 : f32 to vector<8x4xf32>
    %328 = arith.subf %327, %326 : vector<8x4xf32>
    %329 = tpu.concatenate %328, %325 in 1 : vector<8x4xf32>, vector<8x4xf32> -> vector<8x8xf32>
    %330 = arith.mulf %324, %5 : vector<8x8xf32>
    %331 = arith.mulf %329, %7 : vector<8x8xf32>
    %332 = arith.addf %330, %331 : vector<8x8xf32>
    %333 = arith.truncf %332 : vector<8x8xf32> to vector<8x8xbf16>
    %334 = arith.truncf %238 : vector<16x8xf32> to vector<16x8xbf16>
    %cst_97 = arith.constant dense<0.000000e+00> : vector<8x16xf32>
    %335 = tpu.matmul %333, %334, %cst_97 {dimension_numbers = #tpu.dot_dimension_numbers<[1], [1], [0], [0], [0, 0, 1, 0], [], []>} : vector<8x8xbf16>, vector<16x8xbf16>, vector<8x16xf32> -> vector<8x16xf32>
    %cst_98 = arith.constant 0.353553385 : f32
    %336 = vector.broadcast %cst_98 : f32 to vector<8x16xf32>
    %337 = arith.mulf %335, %336 : vector<8x16xf32>
    %cst_99 = arith.constant dense<0xFF800000> : vector<8xf32>
    %338 = vector.multi_reduction <maximumf>, %337, %cst_99 [1] : vector<8x16xf32> to vector<8xf32>
    %339 = vector.shape_cast %338 : vector<8xf32> to vector<8x1xf32>
    %340 = vector.broadcast %339 : vector<8x1xf32> to vector<8x16xf32>
    %341 = arith.subf %337, %340 : vector<8x16xf32>
    %342 = math.exp %341 : vector<8x16xf32>
    %cst_100 = arith.constant dense<0.000000e+00> : vector<8xf32>
    %343 = vector.multi_reduction <add>, %342, %cst_100 [1] : vector<8x16xf32> to vector<8xf32>
    %344 = vector.shape_cast %343 : vector<8xf32> to vector<8x1xf32>
    %345 = arith.truncf %342 : vector<8x16xf32> to vector<8x16xbf16>
    %346 = arith.truncf %242 : vector<16x8xf32> to vector<16x8xbf16>
    %cst_101 = arith.constant dense<0.000000e+00> : vector<8x8xf32>
    %347 = tpu.matmul %345, %346, %cst_101 {dimension_numbers = #tpu.dot_dimension_numbers<[1], [0], [0], [1], [0, 0, 1, 1], [], []>} : vector<8x16xbf16>, vector<16x8xbf16>, vector<8x8xf32> -> vector<8x8xf32>
    %348 = tpu.reciprocal %344 {approx = true} : vector<8x1xf32> -> vector<8x1xf32>
    %349 = vector.broadcast %348 : vector<8x1xf32> to vector<8x8xf32>
    %350 = arith.mulf %347, %349 : vector<8x8xf32>
    %351 = tpu.concatenate %269, %296, %323, %350 in 1 : vector<8x8xf32>, vector<8x8xf32>, vector<8x8xf32>, vector<8x8xf32> -> vector<8x32xf32>
    %352 = arith.truncf %351 : vector<8x32xf32> to vector<8x32xbf16>
    %c0_102 = arith.constant 0 : index
    %c0_103 = arith.constant 0 : index
    %c0_104 = arith.constant 0 : index
    %353 = vector.load %arg14[%c0_102, %c0_103, %c0_104] : memref<1x32x32xbf16, #tpu.memory_space<vmem>>, vector<1x32x32xbf16>
    %354 = vector.shape_cast %353 : vector<1x32x32xbf16> to vector<32x32xbf16>
    %cst_105 = arith.constant dense<0.000000e+00> : vector<8x32xf32>
    %355 = tpu.matmul %352, %354, %cst_105 {dimension_numbers = #tpu.dot_dimension_numbers<[1], [0], [0], [1], [0, 0, 1, 1], [], []>} : vector<8x32xbf16>, vector<32x32xbf16>, vector<8x32xf32> -> vector<8x32xf32>
    %356 = arith.addf %179, %355 : vector<8x32xf32>
    %c0_106 = arith.constant 0 : index
    %c0_107 = arith.constant 0 : index
    %c0_108 = arith.constant 0 : index
    %357 = vector.load %arg15[%c0_106, %c0_107, %c0_108] : memref<1x1x32xf32, #tpu.memory_space<vmem>>, vector<1x1x32xf32>
    %358 = vector.shape_cast %357 : vector<1x1x32xf32> to vector<1x32xf32>
    %359 = arith.mulf %356, %356 : vector<8x32xf32>
    %cst_109 = arith.constant dense<0.000000e+00> : vector<8xf32>
    %360 = vector.multi_reduction <add>, %359, %cst_109 [1] : vector<8x32xf32> to vector<8xf32>
    %361 = vector.shape_cast %360 : vector<8xf32> to vector<8x1xf32>
    %cst_110 = arith.constant 3.200000e+01 : f32
    %362 = vector.broadcast %cst_110 : f32 to vector<8x1xf32>
    %363 = arith.divf %361, %362 : vector<8x1xf32>
    %cst_111 = arith.constant 9.99999974E-6 : f32
    %364 = vector.broadcast %cst_111 : f32 to vector<8x1xf32>
    %365 = arith.addf %363, %364 : vector<8x1xf32>
    %366 = math.rsqrt %365 : vector<8x1xf32>
    %367 = vector.broadcast %366 : vector<8x1xf32> to vector<8x32xf32>
    %368 = arith.mulf %356, %367 : vector<8x32xf32>
    %369 = vector.broadcast %358 : vector<1x32xf32> to vector<8x32xf32>
    %370 = arith.mulf %368, %369 : vector<8x32xf32>
    %c0_112 = arith.constant 0 : index
    %c0_113 = arith.constant 0 : index
    %c0_114 = arith.constant 0 : index
    %371 = vector.load %arg16[%c0_112, %c0_113, %c0_114] : memref<1x32x128xbf16, #tpu.memory_space<vmem>>, vector<1x32x128xbf16>
    %372 = vector.shape_cast %371 : vector<1x32x128xbf16> to vector<32x128xbf16>
    %c0_115 = arith.constant 0 : index
    %c0_116 = arith.constant 0 : index
    %c0_117 = arith.constant 0 : index
    %373 = vector.load %arg17[%c0_115, %c0_116, %c0_117] : memref<1x64x32xbf16, #tpu.memory_space<vmem>>, vector<1x64x32xbf16>
    %374 = vector.shape_cast %373 : vector<1x64x32xbf16> to vector<64x32xbf16>
    %375 = arith.truncf %370 : vector<8x32xf32> to vector<8x32xbf16>
    %cst_118 = arith.constant dense<0.000000e+00> : vector<8x128xf32>
    %376 = tpu.matmul %375, %372, %cst_118 {dimension_numbers = #tpu.dot_dimension_numbers<[1], [0], [0], [1], [0, 0, 1, 1], [], []>} : vector<8x32xbf16>, vector<32x128xbf16>, vector<8x128xf32> -> vector<8x128xf32>
    %377 = vector.extract_strided_slice %376 {offsets = [0, 0], sizes = [8, 64], strides = [1, 1]} : vector<8x128xf32> to vector<8x64xf32>
    %378 = arith.negf %377 : vector<8x64xf32>
    %379 = math.exp %378 : vector<8x64xf32>
    %cst_119 = arith.constant 1.000000e+00 : f32
    %380 = vector.broadcast %cst_119 : f32 to vector<8x64xf32>
    %381 = arith.addf %380, %379 : vector<8x64xf32>
    %382 = arith.divf %380, %381 : vector<8x64xf32>
    %383 = arith.mulf %377, %382 : vector<8x64xf32>
    %384 = vector.extract_strided_slice %376 {offsets = [0, 64], sizes = [8, 64], strides = [1, 1]} : vector<8x128xf32> to vector<8x64xf32>
    %385 = arith.mulf %383, %384 : vector<8x64xf32>
    %386 = arith.truncf %385 : vector<8x64xf32> to vector<8x64xbf16>
    %cst_120 = arith.constant dense<0.000000e+00> : vector<8x32xf32>
    %387 = tpu.matmul %386, %374, %cst_120 {dimension_numbers = #tpu.dot_dimension_numbers<[1], [0], [0], [1], [0, 0, 1, 1], [], []>} : vector<8x64xbf16>, vector<64x32xbf16>, vector<8x32xf32> -> vector<8x32xf32>
    %388 = arith.addf %356, %387 : vector<8x32xf32>
    %c0_121 = arith.constant 0 : index
    %c0_122 = arith.constant 0 : index
    %389 = vector.load %arg20[%c0_121, %c0_122] : memref<8x32xf32, #tpu.memory_space<vmem>>, vector<8x32xf32>
    tpu.vector_store %arg20[%c0_121, %c0_122], %388 {strides = array<i32>} : memref<8x32xf32, #tpu.memory_space<vmem>>, vector<8x32xf32>,
    %c1_i32 = arith.constant 1 : i32
    %390 = arith.cmpi eq, %arg1, %c1_i32 : i32
    %391 = arith.extui %390 : i1 to i32
    %c0_i32_123 = arith.constant 0 : i32
    %392 = arith.cmpi ne, %391, %c0_i32_123 : i32
    scf.if %392 {
      %c0_124 = arith.constant 0 : index
      %c0_125 = arith.constant 0 : index
      %393 = vector.load %arg18[%c0_124, %c0_125] : memref<1x32xf32, #tpu.memory_space<vmem>>, vector<1x32xf32>
      %394 = arith.mulf %388, %388 : vector<8x32xf32>
      %cst_126 = arith.constant dense<0.000000e+00> : vector<8xf32>
      %395 = vector.multi_reduction <add>, %394, %cst_126 [1] : vector<8x32xf32> to vector<8xf32>
      %396 = vector.shape_cast %395 : vector<8xf32> to vector<8x1xf32>
      %cst_127 = arith.constant 3.200000e+01 : f32
      %397 = vector.broadcast %cst_127 : f32 to vector<8x1xf32>
      %398 = arith.divf %396, %397 : vector<8x1xf32>
      %cst_128 = arith.constant 9.99999974E-6 : f32
      %399 = vector.broadcast %cst_128 : f32 to vector<8x1xf32>
      %400 = arith.addf %398, %399 : vector<8x1xf32>
      %401 = math.rsqrt %400 : vector<8x1xf32>
      %402 = vector.broadcast %401 : vector<8x1xf32> to vector<8x32xf32>
      %403 = arith.mulf %388, %402 : vector<8x32xf32>
      %404 = vector.broadcast %393 : vector<1x32xf32> to vector<8x32xf32>
      %405 = arith.mulf %403, %404 : vector<8x32xf32>
      %406 = arith.truncf %405 : vector<8x32xf32> to vector<8x32xbf16>
      %c0_129 = arith.constant 0 : index
      %c0_130 = arith.constant 0 : index
      %c0_131 = arith.constant 0 : index
      %407 = vector.load %arg19[%c0_129, %c0_130, %c0_131] : memref<1x8x32xbf16, #tpu.memory_space<vmem>>, vector<1x8x32xbf16>
      %408 = vector.shape_cast %407 : vector<1x8x32xbf16> to vector<8x32xbf16>
      %409 = vector.shape_cast %406 : vector<8x32xbf16> to vector<1x8x32xbf16>
      tpu.vector_store %arg19[%c0_129, %c0_130, %c0_131], %409 {strides = array<i32>} : memref<1x8x32xbf16, #tpu.memory_space<vmem>>, vector<1x8x32xbf16>,
    } else {
    }
    return
  }
  func.func @transform_0(%arg0: i32, %arg1: i32) -> (i32, i32, i32) {
    %c0_i32 = arith.constant 0 : i32
    %c0_i32_0 = arith.constant 0 : i32
    %c0_i32_1 = arith.constant 0 : i32
    return %arg0, %c0_i32, %c0_i32_0 : i32, i32, i32
  }
  func.func @transform_1(%arg0: i32, %arg1: i32) -> (i32, i32, i32) {
    %c0_i32 = arith.constant 0 : i32
    %c0_i32_0 = arith.constant 0 : i32
    %c0_i32_1 = arith.constant 0 : i32
    return %arg0, %c0_i32, %c0_i32_0 : i32, i32, i32
  }
  func.func @transform_2(%arg0: i32, %arg1: i32) -> (i32, i32, i32) {
    %c0_i32 = arith.constant 0 : i32
    %c0_i32_0 = arith.constant 0 : i32
    %c0_i32_1 = arith.constant 0 : i32
    return %arg0, %c0_i32, %c0_i32_0 : i32, i32, i32
  }
  func.func @transform_3(%arg0: i32, %arg1: i32) -> (i32, i32, i32) {
    %c0_i32 = arith.constant 0 : i32
    %c0_i32_0 = arith.constant 0 : i32
    %c0_i32_1 = arith.constant 0 : i32
    return %arg0, %c0_i32, %c0_i32_0 : i32, i32, i32
  }
  func.func @transform_4(%arg0: i32, %arg1: i32) -> (i32, i32, i32) {
    %c0_i32 = arith.constant 0 : i32
    %c0_i32_0 = arith.constant 0 : i32
    %c0_i32_1 = arith.constant 0 : i32
    return %arg0, %c0_i32, %c0_i32_0 : i32, i32, i32
  }
  func.func @transform_5(%arg0: i32, %arg1: i32) -> (i32, i32, i32) {
    %c0_i32 = arith.constant 0 : i32
    %c0_i32_0 = arith.constant 0 : i32
    %c0_i32_1 = arith.constant 0 : i32
    return %arg0, %c0_i32, %c0_i32_0 : i32, i32, i32
  }
  func.func @transform_6(%arg0: i32, %arg1: i32) -> (i32, i32, i32) {
    %c0_i32 = arith.constant 0 : i32
    %c0_i32_0 = arith.constant 0 : i32
    %c0_i32_1 = arith.constant 0 : i32
    return %arg1, %c0_i32, %c0_i32_0 : i32, i32, i32
  }
  func.func @transform_7(%arg0: i32, %arg1: i32) -> (i32, i32, i32) {
    %c0_i32 = arith.constant 0 : i32
    %c0_i32_0 = arith.constant 0 : i32
    %c0_i32_1 = arith.constant 0 : i32
    return %arg1, %c0_i32, %c0_i32_0 : i32, i32, i32
  }
  func.func @transform_8(%arg0: i32, %arg1: i32) -> (i32, i32, i32) {
    %c0_i32 = arith.constant 0 : i32
    %c0_i32_0 = arith.constant 0 : i32
    %c0_i32_1 = arith.constant 0 : i32
    return %arg1, %c0_i32, %c0_i32_0 : i32, i32, i32
  }
  func.func @transform_9(%arg0: i32, %arg1: i32) -> (i32, i32, i32) {
    %c0_i32 = arith.constant 0 : i32
    %c0_i32_0 = arith.constant 0 : i32
    %c0_i32_1 = arith.constant 0 : i32
    return %arg1, %c0_i32, %c0_i32_0 : i32, i32, i32
  }
  func.func @transform_10(%arg0: i32, %arg1: i32) -> (i32, i32, i32) {
    %c0_i32 = arith.constant 0 : i32
    %c0_i32_0 = arith.constant 0 : i32
    %c0_i32_1 = arith.constant 0 : i32
    return %arg1, %c0_i32, %c0_i32_0 : i32, i32, i32
  }
  func.func @transform_11(%arg0: i32, %arg1: i32) -> (i32, i32, i32) {
    %c0_i32 = arith.constant 0 : i32
    %c0_i32_0 = arith.constant 0 : i32
    %c0_i32_1 = arith.constant 0 : i32
    return %arg1, %c0_i32, %c0_i32_0 : i32, i32, i32
  }
  func.func @transform_12(%arg0: i32, %arg1: i32) -> (i32, i32, i32) {
    %c0_i32 = arith.constant 0 : i32
    %c0_i32_0 = arith.constant 0 : i32
    %c0_i32_1 = arith.constant 0 : i32
    return %arg1, %c0_i32, %c0_i32_0 : i32, i32, i32
  }
  func.func @transform_13(%arg0: i32, %arg1: i32) -> (i32, i32, i32) {
    %c0_i32 = arith.constant 0 : i32
    %c0_i32_0 = arith.constant 0 : i32
    %c0_i32_1 = arith.constant 0 : i32
    return %arg1, %c0_i32, %c0_i32_0 : i32, i32, i32
  }
  func.func @transform_14(%arg0: i32, %arg1: i32) -> (i32, i32, i32) {
    %c0_i32 = arith.constant 0 : i32
    %c0_i32_0 = arith.constant 0 : i32
    %c0_i32_1 = arith.constant 0 : i32
    return %arg1, %c0_i32, %c0_i32_0 : i32, i32, i32
  }
  func.func @transform_15(%arg0: i32, %arg1: i32) -> (i32, i32, i32) {
    %c0_i32 = arith.constant 0 : i32
    %c0_i32_0 = arith.constant 0 : i32
    %c0_i32_1 = arith.constant 0 : i32
    return %arg1, %c0_i32, %c0_i32_0 : i32, i32, i32
  }
  func.func @transform_16(%arg0: i32, %arg1: i32) -> (i32, i32) {
    %c0_i32 = arith.constant 0 : i32
    %c0_i32_0 = arith.constant 0 : i32
    %c0_i32_1 = arith.constant 0 : i32
    return %c0_i32, %c0_i32_0 : i32, i32
  }
  func.func @transform_17(%arg0: i32, %arg1: i32) -> (i32, i32, i32) {
    %c0_i32 = arith.constant 0 : i32
    %c0_i32_0 = arith.constant 0 : i32
    %c0_i32_1 = arith.constant 0 : i32
    return %arg0, %c0_i32, %c0_i32_0 : i32, i32, i32
  }
}

module attributes {stable_mosaic.version = 11 : i64} {
  func.func @_ce_stack_kernel(%arg0: i32, %arg1: memref<16x32xbf16, #tpu.memory_space<vmem>>, %arg2: memref<1x40x32xbf16, #tpu.memory_space<vmem>>, %arg3: memref<1x1x16xi32, #tpu.memory_space<vmem>>, %arg4: memref<1x1xf32, #tpu.memory_space<vmem>>) attributes {dimension_semantics = [#tpu.dimension_semantics<arbitrary>], iteration_bounds = array<i64: 4>, scalar_prefetch = 0 : i64, scratch_operands = 0 : i64, tpu.core_type = #tpu.core_type<tc>, window_params = [{pipeline_mode = #tpu.pipeline_mode<synchronous>, transform_indices = @transform_0, window_bounds = array<i64: 16, 32>}, {transform_indices = @transform_1, window_bounds = array<i64: 1, 40, 32>}, {transform_indices = @transform_2, window_bounds = array<i64: 1, 1, 16>}, {pipeline_mode = #tpu.pipeline_mode<synchronous>, transform_indices = @transform_3, window_bounds = array<i64: 1, 1>}]} {
    %c0 = arith.constant 0 : index
    %c0_0 = arith.constant 0 : index
    %c0_1 = arith.constant 0 : index
    %0 = vector.load %arg2[%c0, %c0_0, %c0_1] : memref<1x40x32xbf16, #tpu.memory_space<vmem>>, vector<1x40x32xbf16>
    %1 = vector.shape_cast %0 : vector<1x40x32xbf16> to vector<40x32xbf16>
    %c0_2 = arith.constant 0 : index
    %c0_3 = arith.constant 0 : index
    %2 = vector.load %arg1[%c0_2, %c0_3] : memref<16x32xbf16, #tpu.memory_space<vmem>>, vector<16x32xbf16>
    %cst = arith.constant dense<0.000000e+00> : vector<40x16xf32>
    %3 = tpu.matmul %1, %2, %cst {dimension_numbers = #tpu.dot_dimension_numbers<[1], [1], [0], [0], [0, 0, 1, 0], [], []>} : vector<40x32xbf16>, vector<16x32xbf16>, vector<40x16xf32> -> vector<40x16xf32>
    %c0_4 = arith.constant 0 : index
    %c0_5 = arith.constant 0 : index
    %c0_6 = arith.constant 0 : index
    %4 = vector.load %arg3[%c0_4, %c0_5, %c0_6] : memref<1x1x16xi32, #tpu.memory_space<vmem>>, vector<1x1x16xi32>
    %5 = vector.shape_cast %4 : vector<1x1x16xi32> to vector<1x16xi32>
    %cst_7 = arith.constant dense<0xFF800000> : vector<16xf32>
    %6 = vector.multi_reduction <maximumf>, %3, %cst_7 [0] : vector<40x16xf32> to vector<16xf32>
    %7 = vector.shape_cast %6 : vector<16xf32> to vector<1x16xf32>
    %8 = vector.broadcast %7 : vector<1x16xf32> to vector<40x16xf32>
    %9 = arith.subf %3, %8 : vector<40x16xf32>
    %10 = math.exp %9 : vector<40x16xf32>
    %cst_8 = arith.constant dense<0.000000e+00> : vector<16xf32>
    %11 = vector.multi_reduction <add>, %10, %cst_8 [0] : vector<40x16xf32> to vector<16xf32>
    %12 = vector.shape_cast %11 : vector<16xf32> to vector<1x16xf32>
    %13 = math.log %12 : vector<1x16xf32>
    %14 = arith.addf %7, %13 : vector<1x16xf32>
    %15 = tpu.iota {dimensions = array<i32: 0>} : vector<40x16xi32>
    %16 = vector.broadcast %5 : vector<1x16xi32> to vector<40x16xi32>
    %17 = arith.cmpi eq, %15, %16 : vector<40x16xi32>
    %cst_9 = arith.constant 0.000000e+00 : f32
    %18 = vector.broadcast %cst_9 : f32 to vector<40x16xf32>
    %19 = arith.select %17, %3, %18 : vector<40x16xi1>, vector<40x16xf32>
    %cst_10 = arith.constant dense<0.000000e+00> : vector<16xf32>
    %20 = vector.multi_reduction <add>, %19, %cst_10 [0] : vector<40x16xf32> to vector<16xf32>
    %21 = vector.shape_cast %20 : vector<16xf32> to vector<1x16xf32>
    %c-100_i32 = arith.constant -100 : i32
    %22 = vector.broadcast %c-100_i32 : i32 to vector<1x16xi32>
    %23 = arith.cmpi ne, %5, %22 : vector<1x16xi32>
    %24 = arith.extui %23 : vector<1x16xi1> to vector<1x16xi32>
    %25 = arith.sitofp %24 : vector<1x16xi32> to vector<1x16xf32>
    %26 = arith.subf %14, %21 : vector<1x16xf32>
    %27 = arith.mulf %26, %25 : vector<1x16xf32>
    %cst_11 = arith.constant dense<0.000000e+00> : vector<1xf32>
    %28 = vector.multi_reduction <add>, %27, %cst_11 [1] : vector<1x16xf32> to vector<1xf32>
    %29 = vector.shape_cast %28 : vector<1xf32> to vector<1x1xf32>
    %cst_12 = arith.constant dense<0.000000e+00> : vector<1xf32>
    %30 = vector.multi_reduction <add>, %25, %cst_12 [1] : vector<1x16xf32> to vector<1xf32>
    %31 = vector.shape_cast %30 : vector<1xf32> to vector<1x1xf32>
    %cst_13 = arith.constant 1.000000e+00 : f32
    %32 = vector.broadcast %cst_13 : f32 to vector<1x1xf32>
    %33 = arith.maximumf %31, %32 : vector<1x1xf32>
    %34 = arith.divf %29, %33 : vector<1x1xf32>
    %c0_i32 = arith.constant 0 : i32
    %35 = arith.cmpi eq, %arg0, %c0_i32 : i32
    %36 = arith.extui %35 : i1 to i32
    %c0_i32_14 = arith.constant 0 : i32
    %37 = arith.cmpi ne, %36, %c0_i32_14 : i32
    scf.if %37 {
      %cst_20 = arith.constant 0.000000e+00 : f32
      %43 = vector.broadcast %cst_20 : f32 to vector<1x1xf32>
      %c0_21 = arith.constant 0 : index
      %c0_22 = arith.constant 0 : index
      %44 = vector.load %arg4[%c0_21, %c0_22] : memref<1x1xf32, #tpu.memory_space<vmem>>, vector<1x1xf32>
      tpu.vector_store %arg4[%c0_21, %c0_22], %43 {strides = array<i32>} : memref<1x1xf32, #tpu.memory_space<vmem>>, vector<1x1xf32>,
    } else {
    }
    %c0_15 = arith.constant 0 : index
    %c0_16 = arith.constant 0 : index
    %38 = vector.load %arg4[%c0_15, %c0_16] : memref<1x1xf32, #tpu.memory_space<vmem>>, vector<1x1xf32>
    %cst_17 = arith.constant 2.500000e-01 : f32
    %39 = vector.broadcast %cst_17 : f32 to vector<1x1xf32>
    %40 = arith.mulf %34, %39 : vector<1x1xf32>
    %41 = arith.addf %38, %40 : vector<1x1xf32>
    %c0_18 = arith.constant 0 : index
    %c0_19 = arith.constant 0 : index
    %42 = vector.load %arg4[%c0_18, %c0_19] : memref<1x1xf32, #tpu.memory_space<vmem>>, vector<1x1xf32>
    tpu.vector_store %arg4[%c0_18, %c0_19], %41 {strides = array<i32>} : memref<1x1xf32, #tpu.memory_space<vmem>>, vector<1x1xf32>,
    return
  }
  func.func @transform_0(%arg0: i32) -> (i32, i32) {
    %c0_i32 = arith.constant 0 : i32
    %c0_i32_0 = arith.constant 0 : i32
    %c0_i32_1 = arith.constant 0 : i32
    return %c0_i32, %c0_i32_0 : i32, i32
  }
  func.func @transform_1(%arg0: i32) -> (i32, i32, i32) {
    %c0_i32 = arith.constant 0 : i32
    %c0_i32_0 = arith.constant 0 : i32
    %c0_i32_1 = arith.constant 0 : i32
    return %arg0, %c0_i32, %c0_i32_0 : i32, i32, i32
  }
  func.func @transform_2(%arg0: i32) -> (i32, i32, i32) {
    %c0_i32 = arith.constant 0 : i32
    %c0_i32_0 = arith.constant 0 : i32
    %c0_i32_1 = arith.constant 0 : i32
    return %arg0, %c0_i32, %c0_i32_0 : i32, i32, i32
  }
  func.func @transform_3(%arg0: i32) -> (i32, i32) {
    %c0_i32 = arith.constant 0 : i32
    %c0_i32_0 = arith.constant 0 : i32
    %c0_i32_1 = arith.constant 0 : i32
    return %c0_i32, %c0_i32_0 : i32, i32
  }
}

</mosaic_0001>

<llo_original>
// kernel: tts_forward.5
$region0: #{tts_forward.5}
  #allocation0 [shape = 'u32[]', space=smem, size = 0x4, offset = 0x4, fixed_abs, tag = 'smem constant byte address 0x4 - core index']
  #allocation1 [shape = 'u32[144,128]{1,0:T(1,128)}', space=vmem, size = 0x12000, scoped, tag = 'internal scratch']
  %s0 = inlined_call_operand.vmem [shape: bf16[16,32], index: 0, kind: input, shape index: {}]
  %s1 = inlined_call_operand.vmem [shape: bf16[4,40,32], index: 1, kind: input, shape index: {}]
  %s2 = inlined_call_operand.vmem [shape: s32[4,1,16], index: 2, kind: input, shape index: {}]
  %s3 = inlined_call_operand.hbm [shape: f32[1,1], index: 3, kind: output, shape index: {}]
  %s4 = sld [smem:[#allocation0]]
  $region49: #{tts_forward.5} parent=0
    _
  %s6 = ssub.s32 1, %s4
  %s7 = scalar_select 0, %s6, %s4
  $region1: #{tts_forward.5} parent=0
    #allocation2 [shape = 'u8[512]{0}', space=vmem, size = 0x400, scoped, tag = 'output window, operand 0, single buffered']
    #allocation3 [shape = 's32[2]{0}', space=sflag, size = 0x8, scoped, tag = 'scoped memory for tts_forward.5']
    %8 = vsyncpa [#allocation3], 0
    loop: start=0, step=1, limit=6
    $region2: #{tts_forward.5} parent=1 // loop_pre_header
      _
    $region3: #{tts_forward.5} parent=1 // loop_header
      %s10 = sphi 0, %s14
      %p11 = scmp.ge.s32.totalorder %s10, 6
      %s18 = sphi 0, %s18
      %s20 = sphi 0, %s18
      %s21 = sphi 0, %s20
      %s35 = sphi 0, %s21
      %s41 = sphi 0, %s43
      %s44 = sphi 0, %s41
      %s45 = sphi 0, %s44
      %s61 = sphi 0, %s45
      %s67 = sphi 0, %s69
      %s70 = sphi 0, %s67
      %s71 = sphi 0, %s70
      %s87 = sphi 0, %s71
      %s91 = sphi 0, %s91
      %s93 = sphi 0, %s91
      %s94 = sphi 0, %s93
      %s108 = sphi 0, %s94
    $region4: #{tts_forward.5} parent=1 // loop_header_branch
      %13 = sbr.rel (%p11) target = $region8
    $region5: #{tts_forward.5} parent=1 // loop_body
      %s15 = ssub.s32 %s10, 1
      %s16 = ssub.s32 %s10, 2
      %s17 = sadd.s32 %s10, 1
      %s19 = sadd.s32 %s18, 1
      %p22 = scmp.eq.s32.totalorder %s10, 3
      %p23 = scmp.ne.s32.totalorder %s18, %s20
      %p24 = scmp.eq.s32.totalorder %s10, 0
      %p25 = por %p23, %p24
      %p26 = scmp.ne.s32.totalorder %s18, %s20
      %p27 = scmp.eq.s32.totalorder %s15, 3
      %p28 = por %p26, %p27
      %p29 = scmp.ne.s32.totalorder %s20, %s21
      %p30 = scmp.eq.s32.totalorder %s15, 0
      %p31 = por %p29, %p30
      %p32 = scmp.ne.s32.totalorder %s20, %s21
      %p33 = scmp.eq.s32.totalorder %s16, 3
      %p34 = por %p32, %p33
      %p36 = scmp.ne.s32.totalorder %s21, %s35
      %p37 = scmp.eq.s32.totalorder %s16, 0
      %p38 = por %p36, %p37
      %s39 = ssub.s32 %s10, %s17
      %p40 = scmp.eq.s32.totalorder %s39, 0
      %s42 = sadd.s32 %s41, 1
      %s43 = scalar_select %p40, %s41, %s42
      %p46 = pneg %p40
      %p47 = scmp.eq.s32.totalorder %s10, 3
      %p48 = por %p46, %p47
      %p49 = scmp.ne.s32.totalorder %s41, %s44
      %p50 = scmp.eq.s32.totalorder %s10, 0
      %p51 = por %p49, %p50
      %p52 = scmp.ne.s32.totalorder %s41, %s44
      %p53 = scmp.eq.s32.totalorder %s15, 3
      %p54 = por %p52, %p53
      %p55 = scmp.ne.s32.totalorder %s44, %s45
      %p56 = scmp.eq.s32.totalorder %s15, 0
      %p57 = por %p55, %p56
      %p58 = scmp.ne.s32.totalorder %s44, %s45
      %p59 = scmp.eq.s32.totalorder %s16, 3
      %p60 = por %p58, %p59
      %p62 = scmp.ne.s32.totalorder %s45, %s61
      %p63 = scmp.eq.s32.totalorder %s16, 0
      %p64 = por %p62, %p63
      %s65 = ssub.s32 %s10, %s17
      %p66 = scmp.eq.s32.totalorder %s65, 0
      %s68 = sadd.s32 %s67, 1
      %s69 = scalar_select %p66, %s67, %s68
      %p72 = pneg %p66
      %p73 = scmp.eq.s32.totalorder %s10, 3
      %p74 = por %p72, %p73
      %p75 = scmp.ne.s32.totalorder %s67, %s70
      %p76 = scmp.eq.s32.totalorder %s10, 0
      %p77 = por %p75, %p76
      %p78 = scmp.ne.s32.totalorder %s67, %s70
      %p79 = scmp.eq.s32.totalorder %s15, 3
      %p80 = por %p78, %p79
      %p81 = scmp.ne.s32.totalorder %s70, %s71
      %p82 = scmp.eq.s32.totalorder %s15, 0
      %p83 = por %p81, %p82
      %p84 = scmp.ne.s32.totalorder %s70, %s71
      %p85 = scmp.eq.s32.totalorder %s16, 3
      %p86 = por %p84, %p85
      %p88 = scmp.ne.s32.totalorder %s71, %s87
      %p89 = scmp.eq.s32.totalorder %s16, 0
      %p90 = por %p88, %p89
      %s92 = sadd.s32 %s91, 1
      %p95 = scmp.eq.s32.totalorder %s10, 3
      %p96 = scmp.ne.s32.totalorder %s91, %s93
      %p97 = scmp.eq.s32.totalorder %s10, 0
      %p98 = por %p96, %p97
      %p99 = scmp.ne.s32.totalorder %s91, %s93
      %p100 = scmp.eq.s32.totalorder %s15, 3
      %p101 = por %p99, %p100
      %p102 = scmp.ne.s32.totalorder %s93, %s94
      %p103 = scmp.eq.s32.totalorder %s15, 0
      %p104 = por %p102, %p103
      %p105 = scmp.ne.s32.totalorder %s93, %s94
      %p106 = scmp.eq.s32.totalorder %s16, 3
      %p107 = por %p105, %p106
      %p109 = scmp.ne.s32.totalorder %s94, %s108
      %p110 = scmp.eq.s32.totalorder %s16, 0
      %p111 = por %p109, %p110
      %p112 = scmp.le.s32.totalorder 1, %s10
      %p113 = scmp.lt.s32.totalorder %s10, 5
      %p114 = pnand %p112, %p113
      %p115 = pneg %p114
      // Predicated region
      $region9: #{tts_forward.5} parent=5 // pred_check
        _
      $region10: #{tts_forward.5} parent=5 // pred_check_branch
        %117 = sbr.rel (%p114) target = $region12
      $region11: #{tts_forward.5} parent=5 // pred_region
        %s118 = ssub.s32 %s10, 1
        // Predicated region
        $region13: #{tts_forward.5} parent=11 // pred_check
          %p119 = pneg %p31
        $region14: #{tts_forward.5} parent=11 // pred_check_branch
          %121 = sbr.rel (%p119) target = $region16
        $region15: #{tts_forward.5} parent=11 // pred_region
          _
        $region16: #{tts_forward.5} parent=11 // pred_fallthru
          _
      $region12: #{tts_forward.5} parent=5 // pred_fallthru
        _
      %p122 = scmp.lt.s32.totalorder %s10, 4
      // Predicated region
      $region17: #{tts_forward.5} parent=5 // pred_check
        %p123 = pneg %p122
      $region18: #{tts_forward.5} parent=5 // pred_check_branch
        %125 = sbr.rel (%p123) target = $region20
      $region19: #{tts_forward.5} parent=5 // pred_region
        // Predicated region
        $region21: #{tts_forward.5} parent=19 // pred_check
          %p126 = pneg %p51
        $region22: #{tts_forward.5} parent=19 // pred_check_branch
          %128 = sbr.rel (%p126) target = $region24
        $region23: #{tts_forward.5} parent=19 // pred_region
          %p129 = scmp.lt.s32.totalorder %s10, 3
          %s130 = scalar_select %p129, %s10, 3
          %s131 = smul.addr %s130, 5
          %s132 = smul.addr %s131, 4
          %s133 = scalar_lea.vmem %s1, %s132
        $region24: #{tts_forward.5} parent=19 // pred_fallthru
          _
        // Predicated region
        $region25: #{tts_forward.5} parent=19 // pred_check
          %p134 = pneg %p77
        $region26: #{tts_forward.5} parent=19 // pred_check_branch
          %136 = sbr.rel (%p134) target = $region28
        $region27: #{tts_forward.5} parent=19 // pred_region
          %p137 = scmp.lt.s32.totalorder %s10, 3
          %s138 = scalar_select %p137, %s10, 3
          %s139 = scalar_lea.vmem %s2, %s138
        $region28: #{tts_forward.5} parent=19 // pred_fallthru
          _
      $region20: #{tts_forward.5} parent=5 // pred_fallthru
        _
      %p140 = scmp.le.s32.totalorder 1, %s10
      %p141 = scmp.lt.s32.totalorder %s10, 5
      %p142 = pnand %p140, %p141
      %p143 = pneg %p142
      // Predicated region
      $region29: #{tts_forward.5} parent=5 // pred_check
        _
      $region30: #{tts_forward.5} parent=5 // pred_check_branch
        %145 = sbr.rel (%p142) target = $region32
      $region31: #{tts_forward.5} parent=5 // pred_region
        %s146 = ssub.s32 %s10, 1
        %p147 = pneg %p31
        %p148 = pneg %p28
        %p149 = scmp.lt.s32.totalorder %s15, 3
        %s150 = scalar_select %p149, %s15, 3
        %s151 = smul.addr %s150, 5
        %s152 = smul.addr %s151, 4
        %s153 = scalar_lea.vmem %s1, %s152
        %p154 = pneg %p57
        %p155 = pneg %p54
        %p156 = scmp.lt.s32.totalorder %s15, 3
        %s157 = scalar_select %p156, %s15, 3
        %s158 = scalar_lea.vmem %s2, %s157
        %p159 = pneg %p83
        %p160 = pneg %p80
        %p161 = pneg %p104
        %p162 = pneg %p101
        %p163 = scmp.lt.s32.totalorder %s15, 3
        %s164 = scalar_select %p163, %s15, 3
        %s165 = smul.addr %s164, 5
        %s166 = smul.addr %s165, 4
        %s167 = scalar_lea.vmem %s1, %s166
        %p168 = scmp.lt.s32.totalorder %s15, 3
        %s169 = scalar_select %p168, %s15, 3
        %s170 = scalar_lea.vmem %s2, %s169
        %v172 = vld [vmem:[%s167] sm:$0xf]
        %v173 = vld [vmem:[%s167 + $0x4] sm:$0xf]
        %v174 = vld [vmem:[%s167 + $0x8] sm:$0xf]
        %v175 = vld [vmem:[%s167 + $0xc] sm:$0xf]
        %v176 = vld [vmem:[%s167 + $0x10] sm:$0xf]
        %v177 = vld [vmem:[%s0] sm:$0xf]
        %v178 = vld [vmem:[%s0 + $0x4] sm:$0xf]
        %v184 = vunpack.c.l.b16 %v172
        %v185 = vunpack.c.l.b16 %v173
        %v186 = vunpack.c.l.b16 %v174
        %v187 = vunpack.c.l.b16 %v175
        %v188 = vunpack.c.l.b16 %v176
        %v189 = vpack.c.b16 %v185, %v184
        %v190 = vpack.c.b16 %v187, %v186
        %v191 = vpack.c.b16 %v188, %v188
        %v194 = vunpack.c.l.b16 %v177
        %v195 = vunpack.c.l.b16 %v178
        %v196 = vpack.c.b16 %v195, %v194
        %vm197 = vcmask 261120
        %v199 = vsel %vm197, %v189, 0
        %v202 = vsel %vm197, %v190, 0
        %v205 = vsel %vm197, %v191, 0
        %v208 = vsel %vm197, %v196, 0
        %210 = vmatprep.subr.bf16.mxu0 0
        %211 = vmatpush1.bf16.xpose.msra.mxu0 %v208
        %212 = vmatprep.subr.bf16.mxu0 0
        %213 = vmatpush1.bf16.xpose.msra.mxu0 0
        %214 = vmatprep.subr.bf16.mxu0 0
        %215 = vmatpush1.bf16.xpose.msra.mxu0 0
        %216 = vmatprep.subr.bf16.mxu0 0
        %217 = vmatpush1.bf16.xpose.msra.mxu0 0
        %218 = vmatprep.subr.bf16.mxu0 0
        %219 = vmatpush1.bf16.xpose.msra.mxu0 0
        %220 = vmatprep.subr.bf16.mxu0 0
        %221 = vmatpush1.bf16.xpose.msra.mxu0 0
        %222 = vmatprep.subr.bf16.mxu0 0
        %223 = vmatpush1.bf16.xpose.msra.mxu0 0
        %224 = vmatprep.subr.bf16.mxu0 0
        %225 = vmatpush1.bf16.xpose.msra.mxu0 0
        %226 = vmatprep.subr.bf16.mxu0 0
        %227 = vmatpush1.bf16.xpose.msra.mxu0 0
        %228 = vmatprep.subr.bf16.mxu0 0
        %229 = vmatpush1.bf16.xpose.msra.mxu0 0
        %230 = vmatprep.subr.bf16.mxu0 0
        %231 = vmatpush1.bf16.xpose.msra.mxu0 0
        %232 = vmatprep.subr.bf16.mxu0 0
        %233 = vmatpush1.bf16.xpose.msra.mxu0 0
        %234 = vmatprep.subr.bf16.mxu0 0
        %235 = vmatpush1.bf16.xpose.msra.mxu0 0
        %236 = vmatprep.subr.bf16.mxu0 0
        %237 = vmatpush1.bf16.xpose.msra.mxu0 0
        %238 = vmatprep.subr.bf16.mxu0 0
        %239 = vmatpush1.bf16.xpose.msra.mxu0 0
        %240 = vmatprep.subr.bf16.mxu0 0
        %241 = vmatpush1.bf16.xpose.msra.mxu0 0
        %242 = vmatprep.mubr.bf16.mxu0 0
        %243 = vmatmul.mubr.bf16.gmra.mrb[0].mxu0 %v199
        %v244 = vpop.f32.mrb[0].mxu0
        %v245 = vadd.f32 0.0, %v244
        %v246 = vpop.f32.mrb[0].mxu0
        %v247 = vpop.f32.mrb[0].mxu0
        %v248 = vadd.f32 0.0, %v247
        %v249 = vpop.f32.mrb[0].mxu0
        %250 = vmatprep.mubr.bf16.mxu0 0
        %251 = vmatmul.mubr.bf16.gmra.mrb[0].mxu0 %v202
        %v252 = vpop.f32.mrb[0].mxu0
        %v253 = vadd.f32 0.0, %v252
        %v254 = vpop.f32.mrb[0].mxu0
        %v255 = vpop.f32.mrb[0].mxu0
        %v256 = vadd.f32 0.0, %v255
        %v257 = vpop.f32.mrb[0].mxu0
        %258 = vmatprep.mubr.bf16.mxu0 0
        %259 = vmatmul.mubr.bf16.gmra.mrb[0].mxu0 %v205
        %v260 = vpop.f32.mrb[0].mxu0
        %v261 = vadd.f32 0.0, %v260
        %v262 = vpop.f32.mrb[0].mxu0
        %v263 = vpop.f32.mrb[0].mxu0
        %v264 = vpop.f32.mrb[0].mxu0
        %265 = vdwg.mxu0
        %v266 = vld [vmem:[%s170] sm:$0x1]
        %vm267 = vcmask 130048
        %v268 = vsel %vm267, %v245, -inf
        %v269 = vsel %vm267, %v248, -inf
        %v270 = vsel %vm267, %v253, -inf
        %v271 = vsel %vm267, %v256, -inf
        %v272 = vsel %vm267, %v261, -inf
        %v273 = vmax.f32 %v268, %v272
        %v274 = vmax.f32 %v273, %v269
        %v275 = vmax.f32 %v270, %v271
        %v276 = vmax.f32 %v274, %v275
        %v277 = vrot.slane %v276, 4
        %v278 = vmax.f32 %v276, %v277
        %v279 = vrot.slane %v278, 2
        %v280 = vmax.f32 %v278, %v279
        %v281 = vrot.slane %v280, 1
        %v282 = vmax.f32 %v280, %v281
        %v283 = vsub.f32 %v245, %v282
        %v284 = vsub.f32 %v248, %v282
        %v285 = vsub.f32 %v253, %v282
        %v286 = vsub.f32 %v256, %v282
        %v287 = vsub.f32 %v261, %v282
        %v288 = vmul.f32 %v283, 1.442695
        %v289 = vpow.pop %v288
        %v290 = vmul.f32 %v284, 1.442695
        %v291 = vpow.pop %v290
        %v292 = vmul.f32 %v285, 1.442695
        %v293 = vpow.pop %v292
        %v294 = vmul.f32 %v286, 1.442695
        %v295 = vpow.pop %v294
        %v296 = vmul.f32 %v287, 1.442695
        %v297 = vpow.pop %v296
        %v298 = vsel %vm267, %v289, 0.0
        %v299 = vsel %vm267, %v291, 0.0
        %v300 = vadd.f32 %v298, %v299
        %v301 = vsel %vm267, %v293, 0.0
        %v302 = vadd.f32 %v300, %v301
        %v303 = vsel %vm267, %v295, 0.0
        %v304 = vadd.f32 %v302, %v303
        %v305 = vsel %vm267, %v297, 0.0
        %v306 = vadd.f32 %v304, %v305
        %v307 = vrot.slane %v306, 4
        %v308 = vadd.f32 %v306, %v307
        %v309 = vrot.slane %v308, 2
        %v310 = vadd.f32 %v308, %v309
        %v311 = vrot.slane %v310, 1
        %v312 = vadd.f32 %v310, %v311
        %v313 = vlog2.pop %v312
        %v314 = vmul.f32 %v313, 0.6931472
        %v315 = vadd.f32 %v282, %v314
        %v316 = vlaneseq
        %v317 = vshrl.u32 %v316, 7
        %v318 = vadd.s32 %v317, 8
        %v319 = vadd.s32 %v317, 16
        %v320 = vadd.s32 %v317, 24
        %v321 = vadd.s32 %v317, 32
        %v322 = vlaneseq
        %v323 = vshrl.u32 %v322, 7
        %v324 = vsub.s32 0, %v323
        %v325 = vrot.slane %v266, %v324
        %vm326 = vcmp.eq.s32.totalorder %v317, %v325
        %vm327 = vcmp.eq.s32.totalorder %v318, %v325
        %vm328 = vcmp.eq.s32.totalorder %v319, %v325
        %vm329 = vcmp.eq.s32.totalorder %v320, %v325
        %vm330 = vcmp.eq.s32.totalorder %v321, %v325
        %v331 = vsel %vm326, %v245, 0.0
        %v332 = vsel %vm327, %v248, 0.0
        %v333 = vsel %vm328, %v253, 0.0
        %v334 = vsel %vm329, %v256, 0.0
        %v335 = vsel %vm330, %v261, 0.0
        %v336 = vsel %vm267, %v331, 0.0
        %v337 = vsel %vm267, %v332, 0.0
        %v338 = vadd.f32 %v336, %v337
        %v339 = vsel %vm267, %v333, 0.0
        %v340 = vadd.f32 %v338, %v339
        %v341 = vsel %vm267, %v334, 0.0
        %v342 = vadd.f32 %v340, %v341
        %v343 = vsel %vm267, %v335, 0.0
        %v344 = vadd.f32 %v342, %v343
        %v345 = vrot.slane %v344, 4
        %v346 = vadd.f32 %v344, %v345
        %v347 = vrot.slane %v346, 2
        %v348 = vadd.f32 %v346, %v347
        %v349 = vrot.slane %v348, 1
        %v350 = vadd.f32 %v348, %v349
        %vm351 = vcmp.ne.s32.totalorder %v266, 4294967196
        %v352 = vsel %vm351, 1, 0
        %v353 = vcvt.s32.f32 %v352
        %v354 = vsub.f32 %v315, %v350
        %v355 = vmul.f32 %v354, %v353
        %vm356 = vcmask 122880
        %v357 = vsel %vm356, %v355, 0.0
        %358 = vadd.xlane.f32.xlu0 %v357
        %v359 = vpop.xlane.xlu0 %358
        %v360 = vsel %vm356, %v353, 0.0
        %361 = vadd.xlane.f32.xlu0 %v360
        %v362 = vpop.xlane.xlu0 %361
        %v363 = vmax.f32 %v362, 1.0
        %v364 = vrcp.pop %v363
        %v365 = vmul.f32 %v359, %v364
        %p366 = scmp.eq.s32.totalorder %s15, 0
        // Predicated region
        $region33: #{tts_forward.5} parent=31 // pred_check
          %p367 = pneg %p366
        $region34: #{tts_forward.5} parent=31 // pred_check_branch
          %369 = sbr.rel (%p367) target = $region36
        $region35: #{tts_forward.5} parent=31 // pred_region
          %vm370 = vcmask 0
          %371 = vst.msk [vmem:[#allocation2] sm:$0x1] %vm370, 0.0
        $region36: #{tts_forward.5} parent=31 // pred_fallthru
          _
        %v372 = vld [vmem:[#allocation2] sm:$0x1]
        %v373 = vmul.f32 %v365, 0.25
        %v374 = vadd.f32 %v372, %v373
        %vm375 = vcmask 0
        %376 = vst.msk [vmem:[#allocation2] sm:$0x1] %vm375, %v374
        // Predicated region
        $region37: #{tts_forward.5} parent=31 // pred_check
          %p377 = pneg %p101
        $region38: #{tts_forward.5} parent=31 // pred_check_branch
          %379 = sbr.rel (%p377) target = $region40
        $region39: #{tts_forward.5} parent=31 // pred_region
          %s381 = ssub.s32 16, 16
          %382 = vsyncadd [#allocation3], %s381
          %s384 = sshll.u32 [#allocation2], 4
          %s385 = int_to_ptr.vmem [resolvable:$true] %s384
          %387 = dma.vmem_to_hbm [thread:$0]  %s385, 16, %s3, [#allocation3]
        $region40: #{tts_forward.5} parent=31 // pred_fallthru
          _
        // Predicated region
        $region41: #{tts_forward.5} parent=31 // pred_check
          %p388 = pneg %p101
        $region42: #{tts_forward.5} parent=31 // pred_check_branch
          %390 = sbr.rel (%p388) target = $region44
        $region43: #{tts_forward.5} parent=31 // pred_region
          %391 = dma.done [#allocation3], 16
        $region44: #{tts_forward.5} parent=31 // pred_fallthru
          _
      $region32: #{tts_forward.5} parent=5 // pred_fallthru
        _
      %p392 = scmp.le.s32.totalorder 2, %s10
      // Predicated region
      $region45: #{tts_forward.5} parent=5 // pred_check
        %p393 = pneg %p392
      $region46: #{tts_forward.5} parent=5 // pred_check_branch
        %395 = sbr.rel (%p393) target = $region48
      $region47: #{tts_forward.5} parent=5 // pred_region
        %s396 = ssub.s32 %s10, 2
      $region48: #{tts_forward.5} parent=5 // pred_fallthru
        _
    $region6: #{tts_forward.5} parent=1 // loop_footer
      %s14 = sadd.s32 1, %s10
    $region7: #{tts_forward.5} parent=1 // loop_footer_branch
      %9 = sbr.rel target = $region3
    $region8: #{tts_forward.5} parent=1 // loop_exit
      _
    %397 = vsyncpa [#allocation3], 1
    %s398 = scalar_lea.sflag [#allocation3], 1
    %399 = vsyncpa %s398, 1

// kernel: tts_forward.3
$region0: #{tts_forward.3}
  #allocation0 [shape = 'u32[]', space=smem, size = 0x4, offset = 0x4, fixed_abs, tag = 'smem constant byte address 0x4 - core index']
  #allocation1 [shape = 'u32[144,128]{1,0:T(1,128)}', space=vmem, size = 0x12000, scoped, tag = 'internal scratch']
  #allocation2 [shape = 'f32[16,32]{1,0:T(8,128)}', space=vmem, size = 0x2000, scoped, tag = 'scratch operand']
  %s0 = inlined_call_operand.vmem [shape: f32[2,16,32], index: 0, kind: input, shape index: {}]
  %s1 = inlined_call_operand.vmem [shape: f32[2,16,8], index: 1, kind: input, shape index: {}]
  %s2 = inlined_call_operand.vmem [shape: f32[2,16,8], index: 2, kind: input, shape index: {}]
  %s3 = inlined_call_operand.vmem [shape: f32[2,1,32], index: 3, kind: input, shape index: {}]
  %s4 = inlined_call_operand.vmem [shape: bf16[2,32,96], index: 4, kind: input, shape index: {}]
  %s5 = inlined_call_operand.vmem [shape: bf16[2,32,32], index: 5, kind: input, shape index: {}]
  %s6 = inlined_call_operand.vmem [shape: f32[2,1,32], index: 6, kind: input, shape index: {}]
  %s7 = inlined_call_operand.vmem [shape: bf16[2,32,128], index: 7, kind: input, shape index: {}]
  %s8 = inlined_call_operand.vmem [shape: bf16[2,64,32], index: 8, kind: input, shape index: {}]
  %s9 = inlined_call_operand.vmem [shape: f32[1,32], index: 9, kind: input, shape index: {}]
  %s10 = inlined_call_operand.vmem [shape: bf16[2,16,32], index: 10, kind: output, shape index: {}]
  %s11 = sld [smem:[#allocation0]]
  $region81: #{tts_forward.3} parent=0
    _
  %s13 = ssub.s32 1, %s11
  %s14 = scalar_select 0, %s13, %s11
  loop: start=0, step=1, limit=6
  $region2: #{tts_forward.3} parent=0 // loop_pre_header
    _
  $region3: #{tts_forward.3} parent=0 // loop_header
    %s16 = sphi 0, %s20
    %p17 = scmp.ge.s32.totalorder %s16, 6
    %s23 = sphi 0, %s35
    %s24 = sphi 0, %s31
    %s25 = sphi 0, %s23
    %s26 = sphi 0, %s24
    %s27 = sphi 0, %s25
    %s28 = sphi 0, %s26
    %s38 = sphi 0, %s40
    %s41 = sphi 0, %s38
    %s42 = sphi 0, %s41
    %s58 = sphi 0, %s42
    %s64 = sphi 0, %s66
    %s67 = sphi 0, %s64
    %s68 = sphi 0, %s67
    %s84 = sphi 0, %s68
    %s90 = sphi 0, %s92
    %s93 = sphi 0, %s90
    %s94 = sphi 0, %s93
    %s110 = sphi 0, %s94
    %s116 = sphi 0, %s118
    %s119 = sphi 0, %s116
    %s120 = sphi 0, %s119
    %s136 = sphi 0, %s120
    %s142 = sphi 0, %s144
    %s145 = sphi 0, %s142
    %s146 = sphi 0, %s145
    %s162 = sphi 0, %s146
    %s168 = sphi 0, %s170
    %s171 = sphi 0, %s168
    %s172 = sphi 0, %s171
    %s188 = sphi 0, %s172
    %s194 = sphi 0, %s196
    %s197 = sphi 0, %s194
    %s198 = sphi 0, %s197
    %s214 = sphi 0, %s198
    %s220 = sphi 0, %s222
    %s223 = sphi 0, %s220
    %s224 = sphi 0, %s223
    %s240 = sphi 0, %s224
    %s246 = sphi 0, %s248
    %s249 = sphi 0, %s246
    %s250 = sphi 0, %s249
    %s266 = sphi 0, %s250
    %s270 = sphi 0, %s270
    %s272 = sphi 0, %s270
    %s273 = sphi 0, %s272
    %s287 = sphi 0, %s273
    %s293 = sphi 0, %s295
    %s296 = sphi 0, %s293
    %s297 = sphi 0, %s296
    %s313 = sphi 0, %s297
  $region4: #{tts_forward.3} parent=0 // loop_header_branch
    %19 = sbr.rel (%p17) target = $region8
  $region5: #{tts_forward.3} parent=0 // loop_body
    %s21 = ssub.s32 %s16, 1
    %s22 = ssub.s32 %s16, 2
    %s29 = sadd.s32 1, %s24
    %p30 = scmp.ge.s32.totalorder %s29, 2
    %s31 = scalar_select %p30, 0, %s29
    %s32 = sadd.s32 1, %s23
    %s33 = scalar_select %p30, %s32, %s23
    %p34 = scmp.ge.s32.totalorder %s33, 2
    %s35 = scalar_select %p34, 0, %s33
    %s36 = ssub.s32 %s23, %s35
    %p37 = scmp.eq.s32.totalorder %s36, 0
    %s39 = sadd.s32 %s38, 1
    %s40 = scalar_select %p37, %s38, %s39
    %p43 = pneg %p37
    %p44 = scmp.eq.s32.totalorder %s16, 3
    %p45 = por %p43, %p44
    %p46 = scmp.ne.s32.totalorder %s38, %s41
    %p47 = scmp.eq.s32.totalorder %s16, 0
    %p48 = por %p46, %p47
    %p49 = scmp.ne.s32.totalorder %s38, %s41
    %p50 = scmp.eq.s32.totalorder %s21, 3
    %p51 = por %p49, %p50
    %p52 = scmp.ne.s32.totalorder %s41, %s42
    %p53 = scmp.eq.s32.totalorder %s21, 0
    %p54 = por %p52, %p53
    %p55 = scmp.ne.s32.totalorder %s41, %s42
    %p56 = scmp.eq.s32.totalorder %s22, 3
    %p57 = por %p55, %p56
    %p59 = scmp.ne.s32.totalorder %s42, %s58
    %p60 = scmp.eq.s32.totalorder %s22, 0
    %p61 = por %p59, %p60
    %s62 = ssub.s32 %s23, %s35
    %p63 = scmp.eq.s32.totalorder %s62, 0
    %s65 = sadd.s32 %s64, 1
    %s66 = scalar_select %p63, %s64, %s65
    %p69 = pneg %p63
    %p70 = scmp.eq.s32.totalorder %s16, 3
    %p71 = por %p69, %p70
    %p72 = scmp.ne.s32.totalorder %s64, %s67
    %p73 = scmp.eq.s32.totalorder %s16, 0
    %p74 = por %p72, %p73
    %p75 = scmp.ne.s32.totalorder %s64, %s67
    %p76 = scmp.eq.s32.totalorder %s21, 3
    %p77 = por %p75, %p76
    %p78 = scmp.ne.s32.totalorder %s67, %s68
    %p79 = scmp.eq.s32.totalorder %s21, 0
    %p80 = por %p78, %p79
    %p81 = scmp.ne.s32.totalorder %s67, %s68
    %p82 = scmp.eq.s32.totalorder %s22, 3
    %p83 = por %p81, %p82
    %p85 = scmp.ne.s32.totalorder %s68, %s84
    %p86 = scmp.eq.s32.totalorder %s22, 0
    %p87 = por %p85, %p86
    %s88 = ssub.s32 %s23, %s35
    %p89 = scmp.eq.s32.totalorder %s88, 0
    %s91 = sadd.s32 %s90, 1
    %s92 = scalar_select %p89, %s90, %s91
    %p95 = pneg %p89
    %p96 = scmp.eq.s32.totalorder %s16, 3
    %p97 = por %p95, %p96
    %p98 = scmp.ne.s32.totalorder %s90, %s93
    %p99 = scmp.eq.s32.totalorder %s16, 0
    %p100 = por %p98, %p99
    %p101 = scmp.ne.s32.totalorder %s90, %s93
    %p102 = scmp.eq.s32.totalorder %s21, 3
    %p103 = por %p101, %p102
    %p104 = scmp.ne.s32.totalorder %s93, %s94
    %p105 = scmp.eq.s32.totalorder %s21, 0
    %p106 = por %p104, %p105
    %p107 = scmp.ne.s32.totalorder %s93, %s94
    %p108 = scmp.eq.s32.totalorder %s22, 3
    %p109 = por %p107, %p108
    %p111 = scmp.ne.s32.totalorder %s94, %s110
    %p112 = scmp.eq.s32.totalorder %s22, 0
    %p113 = por %p111, %p112
    %s114 = ssub.s32 %s24, %s31
    %p115 = scmp.eq.s32.totalorder %s114, 0
    %s117 = sadd.s32 %s116, 1
    %s118 = scalar_select %p115, %s116, %s117
    %p121 = pneg %p115
    %p122 = scmp.eq.s32.totalorder %s16, 3
    %p123 = por %p121, %p122
    %p124 = scmp.ne.s32.totalorder %s116, %s119
    %p125 = scmp.eq.s32.totalorder %s16, 0
    %p126 = por %p124, %p125
    %p127 = scmp.ne.s32.totalorder %s116, %s119
    %p128 = scmp.eq.s32.totalorder %s21, 3
    %p129 = por %p127, %p128
    %p130 = scmp.ne.s32.totalorder %s119, %s120
    %p131 = scmp.eq.s32.totalorder %s21, 0
    %p132 = por %p130, %p131
    %p133 = scmp.ne.s32.totalorder %s119, %s120
    %p134 = scmp.eq.s32.totalorder %s22, 3
    %p135 = por %p133, %p134
    %p137 = scmp.ne.s32.totalorder %s120, %s136
    %p138 = scmp.eq.s32.totalorder %s22, 0
    %p139 = por %p137, %p138
    %s140 = ssub.s32 %s24, %s31
    %p141 = scmp.eq.s32.totalorder %s140, 0
    %s143 = sadd.s32 %s142, 1
    %s144 = scalar_select %p141, %s142, %s143
    %p147 = pneg %p141
    %p148 = scmp.eq.s32.totalorder %s16, 3
    %p149 = por %p147, %p148
    %p150 = scmp.ne.s32.totalorder %s142, %s145
    %p151 = scmp.eq.s32.totalorder %s16, 0
    %p152 = por %p150, %p151
    %p153 = scmp.ne.s32.totalorder %s142, %s145
    %p154 = scmp.eq.s32.totalorder %s21, 3
    %p155 = por %p153, %p154
    %p156 = scmp.ne.s32.totalorder %s145, %s146
    %p157 = scmp.eq.s32.totalorder %s21, 0
    %p158 = por %p156, %p157
    %p159 = scmp.ne.s32.totalorder %s145, %s146
    %p160 = scmp.eq.s32.totalorder %s22, 3
    %p161 = por %p159, %p160
    %p163 = scmp.ne.s32.totalorder %s146, %s162
    %p164 = scmp.eq.s32.totalorder %s22, 0
    %p165 = por %p163, %p164
    %s166 = ssub.s32 %s24, %s31
    %p167 = scmp.eq.s32.totalorder %s166, 0
    %s169 = sadd.s32 %s168, 1
    %s170 = scalar_select %p167, %s168, %s169
    %p173 = pneg %p167
    %p174 = scmp.eq.s32.totalorder %s16, 3
    %p175 = por %p173, %p174
    %p176 = scmp.ne.s32.totalorder %s168, %s171
    %p177 = scmp.eq.s32.totalorder %s16, 0
    %p178 = por %p176, %p177
    %p179 = scmp.ne.s32.totalorder %s168, %s171
    %p180 = scmp.eq.s32.totalorder %s21, 3
    %p181 = por %p179, %p180
    %p182 = scmp.ne.s32.totalorder %s171, %s172
    %p183 = scmp.eq.s32.totalorder %s21, 0
    %p184 = por %p182, %p183
    %p185 = scmp.ne.s32.totalorder %s171, %s172
    %p186 = scmp.eq.s32.totalorder %s22, 3
    %p187 = por %p185, %p186
    %p189 = scmp.ne.s32.totalorder %s172, %s188
    %p190 = scmp.eq.s32.totalorder %s22, 0
    %p191 = por %p189, %p190
    %s192 = ssub.s32 %s24, %s31
    %p193 = scmp.eq.s32.totalorder %s192, 0
    %s195 = sadd.s32 %s194, 1
    %s196 = scalar_select %p193, %s194, %s195
    %p199 = pneg %p193
    %p200 = scmp.eq.s32.totalorder %s16, 3
    %p201 = por %p199, %p200
    %p202 = scmp.ne.s32.totalorder %s194, %s197
    %p203 = scmp.eq.s32.totalorder %s16, 0
    %p204 = por %p202, %p203
    %p205 = scmp.ne.s32.totalorder %s194, %s197
    %p206 = scmp.eq.s32.totalorder %s21, 3
    %p207 = por %p205, %p206
    %p208 = scmp.ne.s32.totalorder %s197, %s198
    %p209 = scmp.eq.s32.totalorder %s21, 0
    %p210 = por %p208, %p209
    %p211 = scmp.ne.s32.totalorder %s197, %s198
    %p212 = scmp.eq.s32.totalorder %s22, 3
    %p213 = por %p211, %p212
    %p215 = scmp.ne.s32.totalorder %s198, %s214
    %p216 = scmp.eq.s32.totalorder %s22, 0
    %p217 = por %p215, %p216
    %s218 = ssub.s32 %s24, %s31
    %p219 = scmp.eq.s32.totalorder %s218, 0
    %s221 = sadd.s32 %s220, 1
    %s222 = scalar_select %p219, %s220, %s221
    %p225 = pneg %p219
    %p226 = scmp.eq.s32.totalorder %s16, 3
    %p227 = por %p225, %p226
    %p228 = scmp.ne.s32.totalorder %s220, %s223
    %p229 = scmp.eq.s32.totalorder %s16, 0
    %p230 = por %p228, %p229
    %p231 = scmp.ne.s32.totalorder %s220, %s223
    %p232 = scmp.eq.s32.totalorder %s21, 3
    %p233 = por %p231, %p232
    %p234 = scmp.ne.s32.totalorder %s223, %s224
    %p235 = scmp.eq.s32.totalorder %s21, 0
    %p236 = por %p234, %p235
    %p237 = scmp.ne.s32.totalorder %s223, %s224
    %p238 = scmp.eq.s32.totalorder %s22, 3
    %p239 = por %p237, %p238
    %p241 = scmp.ne.s32.totalorder %s224, %s240
    %p242 = scmp.eq.s32.totalorder %s22, 0
    %p243 = por %p241, %p242
    %s244 = ssub.s32 %s24, %s31
    %p245 = scmp.eq.s32.totalorder %s244, 0
    %s247 = sadd.s32 %s246, 1
    %s248 = scalar_select %p245, %s246, %s247
    %p251 = pneg %p245
    %p252 = scmp.eq.s32.totalorder %s16, 3
    %p253 = por %p251, %p252
    %p254 = scmp.ne.s32.totalorder %s246, %s249
    %p255 = scmp.eq.s32.totalorder %s16, 0
    %p256 = por %p254, %p255
    %p257 = scmp.ne.s32.totalorder %s246, %s249
    %p258 = scmp.eq.s32.totalorder %s21, 3
    %p259 = por %p257, %p258
    %p260 = scmp.ne.s32.totalorder %s249, %s250
    %p261 = scmp.eq.s32.totalorder %s21, 0
    %p262 = por %p260, %p261
    %p263 = scmp.ne.s32.totalorder %s249, %s250
    %p264 = scmp.eq.s32.totalorder %s22, 3
    %p265 = por %p263, %p264
    %p267 = scmp.ne.s32.totalorder %s250, %s266
    %p268 = scmp.eq.s32.totalorder %s22, 0
    %p269 = por %p267, %p268
    %s271 = sadd.s32 %s270, 1
    %p274 = scmp.eq.s32.totalorder %s16, 3
    %p275 = scmp.ne.s32.totalorder %s270, %s272
    %p276 = scmp.eq.s32.totalorder %s16, 0
    %p277 = por %p275, %p276
    %p278 = scmp.ne.s32.totalorder %s270, %s272
    %p279 = scmp.eq.s32.totalorder %s21, 3
    %p280 = por %p278, %p279
    %p281 = scmp.ne.s32.totalorder %s272, %s273
    %p282 = scmp.eq.s32.totalorder %s21, 0
    %p283 = por %p281, %p282
    %p284 = scmp.ne.s32.totalorder %s272, %s273
    %p285 = scmp.eq.s32.totalorder %s22, 3
    %p286 = por %p284, %p285
    %p288 = scmp.ne.s32.totalorder %s273, %s287
    %p289 = scmp.eq.s32.totalorder %s22, 0
    %p290 = por %p288, %p289
    %s291 = ssub.s32 %s23, %s35
    %p292 = scmp.eq.s32.totalorder %s291, 0
    %s294 = sadd.s32 %s293, 1
    %s295 = scalar_select %p292, %s293, %s294
    %p298 = pneg %p292
    %p299 = scmp.eq.s32.totalorder %s16, 3
    %p300 = por %p298, %p299
    %p301 = scmp.ne.s32.totalorder %s293, %s296
    %p302 = scmp.eq.s32.totalorder %s16, 0
    %p303 = por %p301, %p302
    %p304 = scmp.ne.s32.totalorder %s293, %s296
    %p305 = scmp.eq.s32.totalorder %s21, 3
    %p306 = por %p304, %p305
    %p307 = scmp.ne.s32.totalorder %s296, %s297
    %p308 = scmp.eq.s32.totalorder %s21, 0
    %p309 = por %p307, %p308
    %p310 = scmp.ne.s32.totalorder %s296, %s297
    %p311 = scmp.eq.s32.totalorder %s22, 3
    %p312 = por %p310, %p311
    %p314 = scmp.ne.s32.totalorder %s297, %s313
    %p315 = scmp.eq.s32.totalorder %s22, 0
    %p316 = por %p314, %p315
    %p317 = scmp.le.s32.totalorder 1, %s16
    %p318 = scmp.lt.s32.totalorder %s16, 5
    %p319 = pnand %p317, %p318
    %p320 = pneg %p319
    // Predicated region
    $region9: #{tts_forward.3} parent=5 // pred_check
      _
    $region10: #{tts_forward.3} parent=5 // pred_check_branch
      %322 = sbr.rel (%p319) target = $region12
    $region11: #{tts_forward.3} parent=5 // pred_region
      %s323 = ssub.s32 %s16, 1
      // Predicated region
      $region13: #{tts_forward.3} parent=11 // pred_check
        %p324 = pneg %p283
      $region14: #{tts_forward.3} parent=11 // pred_check_branch
        %326 = sbr.rel (%p324) target = $region16
      $region15: #{tts_forward.3} parent=11 // pred_region
        _
      $region16: #{tts_forward.3} parent=11 // pred_fallthru
        _
    $region12: #{tts_forward.3} parent=5 // pred_fallthru
      _
    %p327 = scmp.lt.s32.totalorder %s16, 4
    // Predicated region
    $region17: #{tts_forward.3} parent=5 // pred_check
      %p328 = pneg %p327
    $region18: #{tts_forward.3} parent=5 // pred_check_branch
      %330 = sbr.rel (%p328) target = $region20
    $region19: #{tts_forward.3} parent=5 // pred_region
      // Predicated region
      $region21: #{tts_forward.3} parent=19 // pred_check
        %p331 = pneg %p48
      $region22: #{tts_forward.3} parent=19 // pred_check_branch
        %333 = sbr.rel (%p331) target = $region24
      $region23: #{tts_forward.3} parent=19 // pred_region
        %p334 = scmp.lt.s32.totalorder %s23, 1
        %s335 = scalar_select %p334, %s23, 1
        %s336 = smul.addr %s335, 2
        %s337 = smul.addr %s336, 8
        %s338 = scalar_lea.vmem %s0, %s337
      $region24: #{tts_forward.3} parent=19 // pred_fallthru
        _
      // Predicated region
      $region25: #{tts_forward.3} parent=19 // pred_check
        %p339 = pneg %p74
      $region26: #{tts_forward.3} parent=19 // pred_check_branch
        %341 = sbr.rel (%p339) target = $region28
      $region27: #{tts_forward.3} parent=19 // pred_region
        %p342 = scmp.lt.s32.totalorder %s23, 1
        %s343 = scalar_select %p342, %s23, 1
        %s344 = smul.addr %s343, 2
        %s345 = smul.addr %s344, 8
        %s346 = scalar_lea.vmem %s1, %s345
      $region28: #{tts_forward.3} parent=19 // pred_fallthru
        _
      // Predicated region
      $region29: #{tts_forward.3} parent=19 // pred_check
        %p347 = pneg %p100
      $region30: #{tts_forward.3} parent=19 // pred_check_branch
        %349 = sbr.rel (%p347) target = $region32
      $region31: #{tts_forward.3} parent=19 // pred_region
        %p350 = scmp.lt.s32.totalorder %s23, 1
        %s351 = scalar_select %p350, %s23, 1
        %s352 = smul.addr %s351, 2
        %s353 = smul.addr %s352, 8
        %s354 = scalar_lea.vmem %s2, %s353
      $region32: #{tts_forward.3} parent=19 // pred_fallthru
        _
      // Predicated region
      $region33: #{tts_forward.3} parent=19 // pred_check
        %p355 = pneg %p126
      $region34: #{tts_forward.3} parent=19 // pred_check_branch
        %357 = sbr.rel (%p355) target = $region36
      $region35: #{tts_forward.3} parent=19 // pred_region
        %p358 = scmp.lt.s32.totalorder %s24, 1
        %s359 = scalar_select %p358, %s24, 1
        %s360 = scalar_lea.vmem %s3, %s359
      $region36: #{tts_forward.3} parent=19 // pred_fallthru
        _
      // Predicated region
      $region37: #{tts_forward.3} parent=19 // pred_check
        %p361 = pneg %p152
      $region38: #{tts_forward.3} parent=19 // pred_check_branch
        %363 = sbr.rel (%p361) target = $region40
      $region39: #{tts_forward.3} parent=19 // pred_region
        %p364 = scmp.lt.s32.totalorder %s24, 1
        %s365 = scalar_select %p364, %s24, 1
        %s366 = smul.addr %s365, 4
        %s367 = smul.addr %s366, 4
        %s368 = scalar_lea.vmem %s4, %s367
      $region40: #{tts_forward.3} parent=19 // pred_fallthru
        _
      // Predicated region
      $region41: #{tts_forward.3} parent=19 // pred_check
        %p369 = pneg %p178
      $region42: #{tts_forward.3} parent=19 // pred_check_branch
        %371 = sbr.rel (%p369) target = $region44
      $region43: #{tts_forward.3} parent=19 // pred_region
        %p372 = scmp.lt.s32.totalorder %s24, 1
        %s373 = scalar_select %p372, %s24, 1
        %s374 = smul.addr %s373, 4
        %s375 = smul.addr %s374, 4
        %s376 = scalar_lea.vmem %s5, %s375
      $region44: #{tts_forward.3} parent=19 // pred_fallthru
        _
      // Predicated region
      $region45: #{tts_forward.3} parent=19 // pred_check
        %p377 = pneg %p204
      $region46: #{tts_forward.3} parent=19 // pred_check_branch
        %379 = sbr.rel (%p377) target = $region48
      $region47: #{tts_forward.3} parent=19 // pred_region
        %p380 = scmp.lt.s32.totalorder %s24, 1
        %s381 = scalar_select %p380, %s24, 1
        %s382 = scalar_lea.vmem %s6, %s381
      $region48: #{tts_forward.3} parent=19 // pred_fallthru
        _
      // Predicated region
      $region49: #{tts_forward.3} parent=19 // pred_check
        %p383 = pneg %p230
      $region50: #{tts_forward.3} parent=19 // pred_check_branch
        %385 = sbr.rel (%p383) target = $region52
      $region51: #{tts_forward.3} parent=19 // pred_region
        %p386 = scmp.lt.s32.totalorder %s24, 1
        %s387 = scalar_select %p386, %s24, 1
        %s388 = smul.addr %s387, 4
        %s389 = smul.addr %s388, 4
        %s390 = scalar_lea.vmem %s7, %s389
      $region52: #{tts_forward.3} parent=19 // pred_fallthru
        _
      // Predicated region
      $region53: #{tts_forward.3} parent=19 // pred_check
        %p391 = pneg %p256
      $region54: #{tts_forward.3} parent=19 // pred_check_branch
        %393 = sbr.rel (%p391) target = $region56
      $region55: #{tts_forward.3} parent=19 // pred_region
        %p394 = scmp.lt.s32.totalorder %s24, 1
        %s395 = scalar_select %p394, %s24, 1
        %s396 = smul.addr %s395, 8
        %s397 = smul.addr %s396, 4
        %s398 = scalar_lea.vmem %s8, %s397
      $region56: #{tts_forward.3} parent=19 // pred_fallthru
        _
    $region20: #{tts_forward.3} parent=5 // pred_fallthru
      _
    %p399 = scmp.le.s32.totalorder 1, %s16
    %p400 = scmp.lt.s32.totalorder %s16, 5
    %p401 = pnand %p399, %p400
    %p402 = pneg %p401
    // Predicated region
    $region57: #{tts_forward.3} parent=5 // pred_check
      _
    $region58: #{tts_forward.3} parent=5 // pred_check_branch
      %404 = sbr.rel (%p401) target = $region60
    $region59: #{tts_forward.3} parent=5 // pred_region
      %s405 = ssub.s32 %s16, 1
      %p406 = scmp.lt.s32.totalorder %s25, 1
      %s407 = scalar_select %p406, %s25, 1
      %s408 = smul.addr %s407, 2
      %s409 = smul.addr %s408, 8
      %s410 = scalar_lea.vmem %s0, %s409
      %p411 = pneg %p54
      %p412 = pneg %p51
      %p413 = scmp.lt.s32.totalorder %s25, 1
      %s414 = scalar_select %p413, %s25, 1
      %s415 = smul.addr %s414, 2
      %s416 = smul.addr %s415, 8
      %s417 = scalar_lea.vmem %s1, %s416
      %p418 = pneg %p80
      %p419 = pneg %p77
      %p420 = scmp.lt.s32.totalorder %s25, 1
      %s421 = scalar_select %p420, %s25, 1
      %s422 = smul.addr %s421, 2
      %s423 = smul.addr %s422, 8
      %s424 = scalar_lea.vmem %s2, %s423
      %p425 = pneg %p106
      %p426 = pneg %p103
      %p427 = scmp.lt.s32.totalorder %s26, 1
      %s428 = scalar_select %p427, %s26, 1
      %s429 = scalar_lea.vmem %s3, %s428
      %p430 = pneg %p132
      %p431 = pneg %p129
      %p432 = scmp.lt.s32.totalorder %s26, 1
      %s433 = scalar_select %p432, %s26, 1
      %s434 = smul.addr %s433, 4
      %s435 = smul.addr %s434, 4
      %s436 = scalar_lea.vmem %s4, %s435
      %p437 = pneg %p158
      %p438 = pneg %p155
      %p439 = scmp.lt.s32.totalorder %s26, 1
      %s440 = scalar_select %p439, %s26, 1
      %s441 = smul.addr %s440, 4
      %s442 = smul.addr %s441, 4
      %s443 = scalar_lea.vmem %s5, %s442
      %p444 = pneg %p184
      %p445 = pneg %p181
      %p446 = scmp.lt.s32.totalorder %s26, 1
      %s447 = scalar_select %p446, %s26, 1
      %s448 = scalar_lea.vmem %s6, %s447
      %p449 = pneg %p210
      %p450 = pneg %p207
      %p451 = scmp.lt.s32.totalorder %s26, 1
      %s452 = scalar_select %p451, %s26, 1
      %s453 = smul.addr %s452, 4
      %s454 = smul.addr %s453, 4
      %s455 = scalar_lea.vmem %s7, %s454
      %p456 = pneg %p236
      %p457 = pneg %p233
      %p458 = scmp.lt.s32.totalorder %s26, 1
      %s459 = scalar_select %p458, %s26, 1
      %s460 = smul.addr %s459, 8
      %s461 = smul.addr %s460, 4
      %s462 = scalar_lea.vmem %s8, %s461
      %p463 = pneg %p262
      %p464 = pneg %p259
      %p465 = pneg %p283
      %p466 = pneg %p280
      %p467 = pneg %p309
      %p468 = pneg %p306
      %p469 = scmp.lt.s32.totalorder %s25, 1
      %s470 = scalar_select %p469, %s25, 1
      %s471 = smul.addr %s470, 2
      %s472 = smul.addr %s471, 4
      %s473 = scalar_lea.vmem %s10, %s472
      %p474 = scmp.lt.s32.totalorder %s25, 1
      %s475 = scalar_select %p474, %s25, 1
      %s476 = smul.addr %s475, 2
      %s477 = smul.addr %s476, 8
      %s478 = scalar_lea.vmem %s0, %s477
      %p479 = scmp.lt.s32.totalorder %s25, 1
      %s480 = scalar_select %p479, %s25, 1
      %s481 = smul.addr %s480, 2
      %s482 = smul.addr %s481, 8
      %s483 = scalar_lea.vmem %s1, %s482
      %p484 = scmp.lt.s32.totalorder %s25, 1
      %s485 = scalar_select %p484, %s25, 1
      %s486 = smul.addr %s485, 2
      %s487 = smul.addr %s486, 8
      %s488 = scalar_lea.vmem %s2, %s487
      %p489 = scmp.lt.s32.totalorder %s26, 1
      %s490 = scalar_select %p489, %s26, 1
      %s491 = scalar_lea.vmem %s3, %s490
      %p492 = scmp.lt.s32.totalorder %s26, 1
      %s493 = scalar_select %p492, %s26, 1
      %s494 = smul.addr %s493, 4
      %s495 = smul.addr %s494, 4
      %s496 = scalar_lea.vmem %s4, %s495
      %p497 = scmp.lt.s32.totalorder %s26, 1
      %s498 = scalar_select %p497, %s26, 1
      %s499 = smul.addr %s498, 4
      %s500 = smul.addr %s499, 4
      %s501 = scalar_lea.vmem %s5, %s500
      %p502 = scmp.lt.s32.totalorder %s26, 1
      %s503 = scalar_select %p502, %s26, 1
      %s504 = scalar_lea.vmem %s6, %s503
      %p505 = scmp.lt.s32.totalorder %s26, 1
      %s506 = scalar_select %p505, %s26, 1
      %s507 = smul.addr %s506, 4
      %s508 = smul.addr %s507, 4
      %s509 = scalar_lea.vmem %s7, %s508
      %p510 = scmp.lt.s32.totalorder %s26, 1
      %s511 = scalar_select %p510, %s26, 1
      %s512 = smul.addr %s511, 8
      %s513 = smul.addr %s512, 4
      %s514 = scalar_lea.vmem %s8, %s513
      %p515 = scmp.lt.s32.totalorder %s25, 1
      %s516 = scalar_select %p515, %s25, 1
      %s517 = smul.addr %s516, 2
      %s518 = smul.addr %s517, 4
      %s519 = scalar_lea.vmem %s10, %s518
      %p521 = scmp.eq.s32.totalorder %s26, 0
      // Predicated region
      $region61: #{tts_forward.3} parent=59 // pred_check
        %p522 = pneg %p521
      $region62: #{tts_forward.3} parent=59 // pred_check_branch
        %524 = sbr.rel (%p522) target = $region64
      $region63: #{tts_forward.3} parent=59 // pred_region
        %v525 = vld [vmem:[%s478] sm:$0xff]
        %v526 = vld [vmem:[%s478 + $0x8] sm:$0xff]
        %vm527 = vcmask 261120
        %528 = vst.msk [vmem:[#allocation2] sm:$0xff] %vm527, %v525
        %529 = vst.msk [vmem:[#allocation2 + $0x8] sm:$0xff] %vm527, %v526
      $region64: #{tts_forward.3} parent=59 // pred_fallthru
        _
      %v530 = vld [vmem:[#allocation2] sm:$0xff]
      %v531 = vld [vmem:[#allocation2 + $0x8] sm:$0xff]
      %v532 = vld [vmem:[%s483] sm:$0xff]
      %v533 = vld [vmem:[%s483 + $0x8] sm:$0xff]
      %v534 = vld [vmem:[%s488] sm:$0xff]
      %v535 = vld [vmem:[%s488 + $0x8] sm:$0xff]
      %v536 = vld [vmem:[%s491] sm:$0x1]
      %v537 = vmul.f32 %v530, %v530
      %v538 = vmul.f32 %v531, %v531
      %vm539 = vcmask 261120
      %v540 = vsel %vm539, %v537, 0.0
      %541 = vadd.xlane.f32.xlu0 %v540
      %v542 = vpop.xlane.xlu0 %541
      %v543 = vsel %vm539, %v538, 0.0
      %544 = vadd.xlane.f32.xlu0 %v543
      %v545 = vpop.xlane.xlu0 %544
      %v546 = vrcp.pop 32.0
      %v547 = vmul.f32 %v542, %v546
      %v548 = vmul.f32 %v545, %v546
      %v549 = vadd.f32 %v547, 1e-05
      %v550 = vadd.f32 %v548, 1e-05
      %v551 = vrsqrt.pop %v549
      %v552 = vrsqrt.pop %v550
      %v553 = vmul.f32 %v530, %v551
      %v554 = vmul.f32 %v531, %v552
      %v556 = vlaneseq
      %v557 = vshrl.u32 %v556, 7
      %v558 = vsub.s32 0, %v557
      %v559 = vrot.slane %v536, %v558
      %v561 = vmul.f32 %v553, %v559
      %v562 = vmul.f32 %v554, %v559
      %v563 = vpack.c.bf16 %v562, %v561
      %v564 = vld [vmem:[%s496] sm:$0xf]
      %v565 = vld [vmem:[%s496 + $0x4] sm:$0xf]
      %v566 = vld [vmem:[%s496 + $0x8] sm:$0xf]
      %v567 = vld [vmem:[%s496 + $0xc] sm:$0xf]
      %v572 = vunpack.c.l.b16 %v564
      %v573 = vunpack.c.l.b16 %v565
      %v574 = vunpack.c.l.b16 %v566
      %v575 = vunpack.c.l.b16 %v567
      %v576 = vpack.c.b16 %v573, %v572
      %v577 = vpack.c.b16 %v575, %v574
      %v581 = vsel %vm539, %v563, 0
      %583 = vmatprep.subr.bf16.mxu0 0
      %584 = vmatpush1.bf16.msra.mxu0 %v576
      %585 = vmatprep.subr.bf16.mxu0 0
      %586 = vmatpush1.bf16.msra.mxu0 %v577
      %587 = vmatprep.subr.bf16.mxu0 0
      %588 = vmatpush1.bf16.msra.mxu0 0
      %589 = vmatprep.subr.bf16.mxu0 0
      %590 = vmatpush1.bf16.msra.mxu0 0
      %591 = vmatprep.subr.bf16.mxu0 0
      %592 = vmatpush1.bf16.msra.mxu0 0
      %593 = vmatprep.subr.bf16.mxu0 0
      %594 = vmatpush1.bf16.msra.mxu0 0
      %595 = vmatprep.subr.bf16.mxu0 0
      %596 = vmatpush1.bf16.msra.mxu0 0
      %597 = vmatprep.subr.bf16.mxu0 0
      %598 = vmatpush1.bf16.msra.mxu0 0
      %599 = vmatprep.subr.bf16.mxu0 0
      %600 = vmatpush1.bf16.msra.mxu0 0
      %601 = vmatprep.subr.bf16.mxu0 0
      %602 = vmatpush1.bf16.msra.mxu0 0
      %603 = vmatprep.subr.bf16.mxu0 0
      %604 = vmatpush1.bf16.msra.mxu0 0
      %605 = vmatprep.subr.bf16.mxu0 0
      %606 = vmatpush1.bf16.msra.mxu0 0
      %607 = vmatprep.subr.bf16.mxu0 0
      %608 = vmatpush1.bf16.msra.mxu0 0
      %609 = vmatprep.subr.bf16.mxu0 0
      %610 = vmatpush1.bf16.msra.mxu0 0
      %611 = vmatprep.subr.bf16.mxu0 0
      %612 = vmatpush1.bf16.msra.mxu0 0
      %613 = vmatprep.subr.bf16.mxu0 0
      %614 = vmatpush1.bf16.msra.mxu0 0
      %615 = vmatprep.mubr.bf16.mxu0 0
      %616 = vmatmul.mubr.bf16.gmra.mrb[0].mxu0 %v581
      %v617 = vpop.f32.mrb[0].mxu0
      %v618 = vadd.f32 0.0, %v617
      %v619 = vpop.f32.mrb[0].mxu0
      %v620 = vpop.f32.mrb[0].mxu0
      %v621 = vadd.f32 0.0, %v620
      %v622 = vpop.f32.mrb[0].mxu0
      %623 = vdwg.mxu0
      %v624 = vsub.f32 0.0, %v618
      %v625 = vsub.f32 0.0, %v621
      %628 = vrot.lane.b32.xlu0 %v624, 92
      %v629 = vpop.permute.xlu0 %628
      %630 = vrot.lane.b32.xlu0 %v625, 92
      %v631 = vpop.permute.xlu0 %630
      %636 = vrot.lane.b32.xlu0 %v618, 100
      %v637 = vpop.permute.xlu0 %636
      %638 = vrot.lane.b32.xlu0 %v621, 100
      %v639 = vpop.permute.xlu0 %638
      %vm642 = vcmask 31744
      %v643 = vsel %vm642, %v629, %v637
      %v644 = vsel %vm642, %v631, %v639
      %647 = vrot.lane.b32.xlu0 %v532, 32
      %v648 = vpop.permute.xlu0 %647
      %649 = vrot.lane.b32.xlu0 %v533, 32
      %v650 = vpop.permute.xlu0 %649
      %v653 = vmul.f32 %v618, %v648
      %v654 = vmul.f32 %v621, %v650
      %v655 = vmul.f32 %v643, %v534
      %v656 = vmul.f32 %v644, %v535
      %659 = vrot.lane.b32.xlu0 %v655, 32
      %v660 = vpop.permute.xlu0 %659
      %661 = vrot.lane.b32.xlu0 %v656, 32
      %v662 = vpop.permute.xlu0 %661
      %v665 = vadd.f32 %v653, %v660
      %v666 = vadd.f32 %v654, %v662
      %667 = vrot.lane.b32.xlu0 %v624, 84
      %v668 = vpop.permute.xlu0 %667
      %669 = vrot.lane.b32.xlu0 %v625, 84
      %v670 = vpop.permute.xlu0 %669
      %673 = vrot.lane.b32.xlu0 %v618, 92
      %v674 = vpop.permute.xlu0 %673
      %675 = vrot.lane.b32.xlu0 %v621, 92
      %v676 = vpop.permute.xlu0 %675
      %v679 = vsel %vm642, %v668, %v674
      %v680 = vsel %vm642, %v670, %v676
      %681 = vrot.lane.b32.xlu0 %v532, 40
      %v682 = vpop.permute.xlu0 %681
      %683 = vrot.lane.b32.xlu0 %v533, 40
      %v684 = vpop.permute.xlu0 %683
      %v687 = vmul.f32 %v618, %v682
      %v688 = vmul.f32 %v621, %v684
      %v689 = vmul.f32 %v679, %v534
      %v690 = vmul.f32 %v680, %v535
      %693 = vrot.lane.b32.xlu0 %v689, 40
      %v694 = vpop.permute.xlu0 %693
      %695 = vrot.lane.b32.xlu0 %v690, 40
      %v696 = vpop.permute.xlu0 %695
      %v699 = vadd.f32 %v687, %v694
      %v700 = vadd.f32 %v688, %v696
      %701 = vrot.lane.b32.xlu0 %v624, 76
      %v702 = vpop.permute.xlu0 %701
      %703 = vrot.lane.b32.xlu0 %v625, 76
      %v704 = vpop.permute.xlu0 %703
      %707 = vrot.lane.b32.xlu0 %v618, 84
      %v708 = vpop.permute.xlu0 %707
      %709 = vrot.lane.b32.xlu0 %v621, 84
      %v710 = vpop.permute.xlu0 %709
      %v713 = vsel %vm642, %v702, %v708
      %v714 = vsel %vm642, %v704, %v710
      %715 = vrot.lane.b32.xlu0 %v532, 48
      %v716 = vpop.permute.xlu0 %715
      %717 = vrot.lane.b32.xlu0 %v533, 48
      %v718 = vpop.permute.xlu0 %717
      %v721 = vmul.f32 %v618, %v716
      %v722 = vmul.f32 %v621, %v718
      %v723 = vmul.f32 %v713, %v534
      %v724 = vmul.f32 %v714, %v535
      %727 = vrot.lane.b32.xlu0 %v723, 48
      %v728 = vpop.permute.xlu0 %727
      %729 = vrot.lane.b32.xlu0 %v724, 48
      %v730 = vpop.permute.xlu0 %729
      %v733 = vadd.f32 %v721, %v728
      %v734 = vadd.f32 %v722, %v730
      %735 = vrot.lane.b32.xlu0 %v624, 68
      %v736 = vpop.permute.xlu0 %735
      %737 = vrot.lane.b32.xlu0 %v625, 68
      %v738 = vpop.permute.xlu0 %737
      %741 = vrot.lane.b32.xlu0 %v618, 76
      %v742 = vpop.permute.xlu0 %741
      %743 = vrot.lane.b32.xlu0 %v621, 76
      %v744 = vpop.permute.xlu0 %743
      %v747 = vsel %vm642, %v736, %v742
      %v748 = vsel %vm642, %v738, %v744
      %749 = vrot.lane.b32.xlu0 %v532, 56
      %v750 = vpop.permute.xlu0 %749
      %751 = vrot.lane.b32.xlu0 %v533, 56
      %v752 = vpop.permute.xlu0 %751
      %v755 = vmul.f32 %v618, %v750
      %v756 = vmul.f32 %v621, %v752
      %v757 = vmul.f32 %v747, %v534
      %v758 = vmul.f32 %v748, %v535
      %761 = vrot.lane.b32.xlu0 %v757, 56
      %v762 = vpop.permute.xlu0 %761
      %763 = vrot.lane.b32.xlu0 %v758, 56
      %v764 = vpop.permute.xlu0 %763
      %v767 = vadd.f32 %v755, %v762
      %v768 = vadd.f32 %v756, %v764
      %769 = vrot.lane.b32.xlu0 %v624, 124
      %v770 = vpop.permute.xlu0 %769
      %771 = vrot.lane.b32.xlu0 %v625, 124
      %v772 = vpop.permute.xlu0 %771
      %775 = vrot.lane.b32.xlu0 %v618, 4
      %v776 = vpop.permute.xlu0 %775
      %777 = vrot.lane.b32.xlu0 %v621, 4
      %v778 = vpop.permute.xlu0 %777
      %v781 = vsel %vm642, %v770, %v776
      %v782 = vsel %vm642, %v772, %v778
      %v783 = vmul.f32 %v618, %v532
      %v784 = vmul.f32 %v621, %v533
      %v785 = vmul.f32 %v781, %v534
      %v786 = vmul.f32 %v782, %v535
      %v787 = vadd.f32 %v783, %v785
      %v788 = vadd.f32 %v784, %v786
      %v789 = vpack.c.bf16 %v788, %v787
      %v790 = vpack.c.bf16 %v666, %v665
      %792 = vrot.lane.b32.xlu0 %v790, 96
      %v793 = vpop.permute.xlu0 %792
      %vm794 = vcmask 64512
      %v796 = vsel %vm794, %v789, 0
      %v799 = vsel %vm794, %v793, 0
      %801 = vmatprep.subr.bf16.mxu0 0
      %802 = vmatpush1.bf16.xpose.msra.mxu0 %v799
      %803 = vmatprep.subr.bf16.mxu0 0
      %804 = vmatpush1.bf16.xpose.msra.mxu0 0
      %805 = vmatprep.subr.bf16.mxu0 0
      %806 = vmatpush1.bf16.xpose.msra.mxu0 0
      %807 = vmatprep.subr.bf16.mxu0 0
      %808 = vmatpush1.bf16.xpose.msra.mxu0 0
      %809 = vmatprep.subr.bf16.mxu0 0
      %810 = vmatpush1.bf16.xpose.msra.mxu0 0
      %811 = vmatprep.subr.bf16.mxu0 0
      %812 = vmatpush1.bf16.xpose.msra.mxu0 0
      %813 = vmatprep.subr.bf16.mxu0 0
      %814 = vmatpush1.bf16.xpose.msra.mxu0 0
      %815 = vmatprep.subr.bf16.mxu0 0
      %816 = vmatpush1.bf16.xpose.msra.mxu0 0
      %817 = vmatprep.subr.bf16.mxu0 0
      %818 = vmatpush1.bf16.xpose.msra.mxu0 0
      %819 = vmatprep.subr.bf16.mxu0 0
      %820 = vmatpush1.bf16.xpose.msra.mxu0 0
      %821 = vmatprep.subr.bf16.mxu0 0
      %822 = vmatpush1.bf16.xpose.msra.mxu0 0
      %823 = vmatprep.subr.bf16.mxu0 0
      %824 = vmatpush1.bf16.xpose.msra.mxu0 0
      %825 = vmatprep.subr.bf16.mxu0 0
      %826 = vmatpush1.bf16.xpose.msra.mxu0 0
      %827 = vmatprep.subr.bf16.mxu0 0
      %828 = vmatpush1.bf16.xpose.msra.mxu0 0
      %829 = vmatprep.subr.bf16.mxu0 0
      %830 = vmatpush1.bf16.xpose.msra.mxu0 0
      %831 = vmatprep.subr.bf16.mxu0 0
      %832 = vmatpush1.bf16.xpose.msra.mxu0 0
      %833 = vmatprep.mubr.bf16.mxu0 0
      %834 = vmatmul.mubr.bf16.gmra.mrb[0].mxu0 %v796
      %v835 = vpop.f32.mrb[0].mxu0
      %v836 = vadd.f32 0.0, %v835
      %v837 = vpop.f32.mrb[0].mxu0
      %v838 = vpop.f32.mrb[0].mxu0
      %v839 = vadd.f32 0.0, %v838
      %v840 = vpop.f32.mrb[0].mxu0
      %841 = vdwg.mxu0
      %v842 = vmul.f32 %v836, 0.35355338
      %v843 = vmul.f32 %v839, 0.35355338
      %vm844 = vcmask 130048
      %v845 = vsel %vm844, %v842, -inf
      %846 = vmax.xlane.f32.xlu0 %v845
      %v847 = vpop.xlane.xlu0 %846
      %v848 = vsel %vm844, %v843, -inf
      %849 = vmax.xlane.f32.xlu0 %v848
      %v850 = vpop.xlane.xlu0 %849
      %v851 = vsub.f32 %v842, %v847
      %v852 = vsub.f32 %v843, %v850
      %v853 = vmul.f32 %v851, 1.442695
      %v854 = vpow.pop %v853
      %v855 = vmul.f32 %v852, 1.442695
      %v856 = vpow.pop %v855
      %v857 = vsel %vm844, %v854, 0.0
      %858 = vadd.xlane.f32.xlu0 %v857
      %v859 = vpop.xlane.xlu0 %858
      %v860 = vsel %vm844, %v856, 0.0
      %861 = vadd.xlane.f32.xlu0 %v860
      %v862 = vpop.xlane.xlu0 %861
      %v863 = vpack.c.bf16 %v856, %v854
      %v864 = vpack.c.bf16 %v621, %v618
      %866 = vrot.lane.b32.xlu0 %v864, 64
      %v867 = vpop.permute.xlu0 %866
      %v870 = vsel %vm844, %v863, 0
      %872 = vmatprep.subr.bf16.mxu0 0
      %873 = vmatpush1.bf16.msra.mxu0 %v867
      %874 = vmatprep.subr.bf16.mxu0 0
      %875 = vmatpush1.bf16.msra.mxu0 0
      %876 = vmatprep.subr.bf16.mxu0 0
      %877 = vmatpush1.bf16.msra.mxu0 0
      %878 = vmatprep.subr.bf16.mxu0 0
      %879 = vmatpush1.bf16.msra.mxu0 0
      %880 = vmatprep.subr.bf16.mxu0 0
      %881 = vmatpush1.bf16.msra.mxu0 0
      %882 = vmatprep.subr.bf16.mxu0 0
      %883 = vmatpush1.bf16.msra.mxu0 0
      %884 = vmatprep.subr.bf16.mxu0 0
      %885 = vmatpush1.bf16.msra.mxu0 0
      %886 = vmatprep.subr.bf16.mxu0 0
      %887 = vmatpush1.bf16.msra.mxu0 0
      %888 = vmatprep.subr.bf16.mxu0 0
      %889 = vmatpush1.bf16.msra.mxu0 0
      %890 = vmatprep.subr.bf16.mxu0 0
      %891 = vmatpush1.bf16.msra.mxu0 0
      %892 = vmatprep.subr.bf16.mxu0 0
      %893 = vmatpush1.bf16.msra.mxu0 0
      %894 = vmatprep.subr.bf16.mxu0 0
      %895 = vmatpush1.bf16.msra.mxu0 0
      %896 = vmatprep.subr.bf16.mxu0 0
      %897 = vmatpush1.bf16.msra.mxu0 0
      %898 = vmatprep.subr.bf16.mxu0 0
      %899 = vmatpush1.bf16.msra.mxu0 0
      %900 = vmatprep.subr.bf16.mxu0 0
      %901 = vmatpush1.bf16.msra.mxu0 0
      %902 = vmatprep.subr.bf16.mxu0 0
      %903 = vmatpush1.bf16.msra.mxu0 0
      %904 = vmatprep.mubr.bf16.mxu0 0
      %905 = vmatmul.mubr.bf16.gmra.mrb[0].mxu0 %v870
      %v906 = vpop.f32.mrb[0].mxu0
      %v907 = vadd.f32 0.0, %v906
      %v908 = vpop.f32.mrb[0].mxu0
      %v909 = vpop.f32.mrb[0].mxu0
      %v910 = vadd.f32 0.0, %v909
      %v911 = vpop.f32.mrb[0].mxu0
      %912 = vdwg.mxu0
      %v913 = vrcp.pop %v859
      %v914 = vrcp.pop %v862
      %v915 = vmul.f32 %v907, %v913
      %v916 = vmul.f32 %v910, %v914
      %917 = vrot.lane.b32.xlu0 %v624, 116
      %v918 = vpop.permute.xlu0 %917
      %919 = vrot.lane.b32.xlu0 %v625, 116
      %v920 = vpop.permute.xlu0 %919
      %923 = vrot.lane.b32.xlu0 %v618, 124
      %v924 = vpop.permute.xlu0 %923
      %925 = vrot.lane.b32.xlu0 %v621, 124
      %v926 = vpop.permute.xlu0 %925
      %v929 = vsel %vm642, %v918, %v924
      %v930 = vsel %vm642, %v920, %v926
      %931 = vrot.lane.b32.xlu0 %v532, 8
      %v932 = vpop.permute.xlu0 %931
      %933 = vrot.lane.b32.xlu0 %v533, 8
      %v934 = vpop.permute.xlu0 %933
      %v937 = vmul.f32 %v618, %v932
      %v938 = vmul.f32 %v621, %v934
      %v939 = vmul.f32 %v929, %v534
      %v940 = vmul.f32 %v930, %v535
      %943 = vrot.lane.b32.xlu0 %v939, 8
      %v944 = vpop.permute.xlu0 %943
      %945 = vrot.lane.b32.xlu0 %v940, 8
      %v946 = vpop.permute.xlu0 %945
      %v949 = vadd.f32 %v937, %v944
      %v950 = vadd.f32 %v938, %v946
      %v951 = vpack.c.bf16 %v950, %v949
      %v952 = vpack.c.bf16 %v700, %v699
      %954 = vrot.lane.b32.xlu0 %v951, 120
      %v955 = vpop.permute.xlu0 %954
      %957 = vrot.lane.b32.xlu0 %v952, 88
      %v958 = vpop.permute.xlu0 %957
      %v960 = vsel %vm794, %v955, 0
      %v963 = vsel %vm794, %v958, 0
      %965 = vmatprep.subr.bf16.mxu0 0
      %966 = vmatpush1.bf16.xpose.msra.mxu0 %v963
      %967 = vmatprep.subr.bf16.mxu0 0
      %968 = vmatpush1.bf16.xpose.msra.mxu0 0
      %969 = vmatprep.subr.bf16.mxu0 0
      %970 = vmatpush1.bf16.xpose.msra.mxu0 0
      %971 = vmatprep.subr.bf16.mxu0 0
      %972 = vmatpush1.bf16.xpose.msra.mxu0 0
      %973 = vmatprep.subr.bf16.mxu0 0
      %974 = vmatpush1.bf16.xpose.msra.mxu0 0
      %975 = vmatprep.subr.bf16.mxu0 0
      %976 = vmatpush1.bf16.xpose.msra.mxu0 0
      %977 = vmatprep.subr.bf16.mxu0 0
      %978 = vmatpush1.bf16.xpose.msra.mxu0 0
      %979 = vmatprep.subr.bf16.mxu0 0
      %980 = vmatpush1.bf16.xpose.msra.mxu0 0
      %981 = vmatprep.subr.bf16.mxu0 0
      %982 = vmatpush1.bf16.xpose.msra.mxu0 0
      %983 = vmatprep.subr.bf16.mxu0 0
      %984 = vmatpush1.bf16.xpose.msra.mxu0 0
      %985 = vmatprep.subr.bf16.mxu0 0
      %986 = vmatpush1.bf16.xpose.msra.mxu0 0
      %987 = vmatprep.subr.bf16.mxu0 0
      %988 = vmatpush1.bf16.xpose.msra.mxu0 0
      %989 = vmatprep.subr.bf16.mxu0 0
      %990 = vmatpush1.bf16.xpose.msra.mxu0 0
      %991 = vmatprep.subr.bf16.mxu0 0
      %992 = vmatpush1.bf16.xpose.msra.mxu0 0
      %993 = vmatprep.subr.bf16.mxu0 0
      %994 = vmatpush1.bf16.xpose.msra.mxu0 0
      %995 = vmatprep.subr.bf16.mxu0 0
      %996 = vmatpush1.bf16.xpose.msra.mxu0 0
      %997 = vmatprep.mubr.bf16.mxu0 0
      %998 = vmatmul.mubr.bf16.gmra.mrb[0].mxu0 %v960
      %v999 = vpop.f32.mrb[0].mxu0
      %v1000 = vadd.f32 0.0, %v999
      %v1001 = vpop.f32.mrb[0].mxu0
      %v1002 = vpop.f32.mrb[0].mxu0
      %v1003 = vadd.f32 0.0, %v1002
      %v1004 = vpop.f32.mrb[0].mxu0
      %1005 = vdwg.mxu0
      %v1006 = vmul.f32 %v1000, 0.35355338
      %v1007 = vmul.f32 %v1003, 0.35355338
      %v1008 = vsel %vm844, %v1006, -inf
      %1009 = vmax.xlane.f32.xlu0 %v1008
      %v1010 = vpop.xlane.xlu0 %1009
      %v1011 = vsel %vm844, %v1007, -inf
      %1012 = vmax.xlane.f32.xlu0 %v1011
      %v1013 = vpop.xlane.xlu0 %1012
      %v1014 = vsub.f32 %v1006, %v1010
      %v1015 = vsub.f32 %v1007, %v1013
      %v1016 = vmul.f32 %v1014, 1.442695
      %v1017 = vpow.pop %v1016
      %v1018 = vmul.f32 %v1015, 1.442695
      %v1019 = vpow.pop %v1018
      %v1020 = vsel %vm844, %v1017, 0.0
      %1021 = vadd.xlane.f32.xlu0 %v1020
      %v1022 = vpop.xlane.xlu0 %1021
      %v1023 = vsel %vm844, %v1019, 0.0
      %1024 = vadd.xlane.f32.xlu0 %v1023
      %v1025 = vpop.xlane.xlu0 %1024
      %v1026 = vpack.c.bf16 %v1019, %v1017
      %1027 = vrot.lane.b32.xlu0 %v864, 56
      %v1028 = vpop.permute.xlu0 %1027
      %v1031 = vsel %vm844, %v1026, 0
      %1033 = vmatprep.subr.bf16.mxu0 0
      %1034 = vmatpush1.bf16.msra.mxu0 %v1028
      %1035 = vmatprep.subr.bf16.mxu0 0
      %1036 = vmatpush1.bf16.msra.mxu0 0
      %1037 = vmatprep.subr.bf16.mxu0 0
      %1038 = vmatpush1.bf16.msra.mxu0 0
      %1039 = vmatprep.subr.bf16.mxu0 0
      %1040 = vmatpush1.bf16.msra.mxu0 0
      %1041 = vmatprep.subr.bf16.mxu0 0
      %1042 = vmatpush1.bf16.msra.mxu0 0
      %1043 = vmatprep.subr.bf16.mxu0 0
      %1044 = vmatpush1.bf16.msra.mxu0 0
      %1045 = vmatprep.subr.bf16.mxu0 0
      %1046 = vmatpush1.bf16.msra.mxu0 0
      %1047 = vmatprep.subr.bf16.mxu0 0
      %1048 = vmatpush1.bf16.msra.mxu0 0
      %1049 = vmatprep.subr.bf16.mxu0 0
      %1050 = vmatpush1.bf16.msra.mxu0 0
      %1051 = vmatprep.subr.bf16.mxu0 0
      %1052 = vmatpush1.bf16.msra.mxu0 0
      %1053 = vmatprep.subr.bf16.mxu0 0
      %1054 = vmatpush1.bf16.msra.mxu0 0
      %1055 = vmatprep.subr.bf16.mxu0 0
      %1056 = vmatpush1.bf16.msra.mxu0 0
      %1057 = vmatprep.subr.bf16.mxu0 0
      %1058 = vmatpush1.bf16.msra.mxu0 0
      %1059 = vmatprep.subr.bf16.mxu0 0
      %1060 = vmatpush1.bf16.msra.mxu0 0
      %1061 = vmatprep.subr.bf16.mxu0 0
      %1062 = vmatpush1.bf16.msra.mxu0 0
      %1063 = vmatprep.subr.bf16.mxu0 0
      %1064 = vmatpush1.bf16.msra.mxu0 0
      %1065 = vmatprep.mubr.bf16.mxu0 0
      %1066 = vmatmul.mubr.bf16.gmra.mrb[0].mxu0 %v1031
      %v1067 = vpop.f32.mrb[0].mxu0
      %v1068 = vadd.f32 0.0, %v1067
      %v1069 = vpop.f32.mrb[0].mxu0
      %v1070 = vpop.f32.mrb[0].mxu0
      %v1071 = vadd.f32 0.0, %v1070
      %v1072 = vpop.f32.mrb[0].mxu0
      %1073 = vdwg.mxu0
      %v1074 = vrcp.pop %v1022
      %v1075 = vrcp.pop %v1025
      %v1076 = vmul.f32 %v1068, %v1074
      %v1077 = vmul.f32 %v1071, %v1075
      %1078 = vrot.lane.b32.xlu0 %v624, 108
      %v1079 = vpop.permute.xlu0 %1078
      %1080 = vrot.lane.b32.xlu0 %v625, 108
      %v1081 = vpop.permute.xlu0 %1080
      %1084 = vrot.lane.b32.xlu0 %v618, 116
      %v1085 = vpop.permute.xlu0 %1084
      %1086 = vrot.lane.b32.xlu0 %v621, 116
      %v1087 = vpop.permute.xlu0 %1086
      %v1090 = vsel %vm642, %v1079, %v1085
      %v1091 = vsel %vm642, %v1081, %v1087
      %1092 = vrot.lane.b32.xlu0 %v532, 16
      %v1093 = vpop.permute.xlu0 %1092
      %1094 = vrot.lane.b32.xlu0 %v533, 16
      %v1095 = vpop.permute.xlu0 %1094
      %v1098 = vmul.f32 %v618, %v1093
      %v1099 = vmul.f32 %v621, %v1095
      %v1100 = vmul.f32 %v1090, %v534
      %v1101 = vmul.f32 %v1091, %v535
      %1104 = vrot.lane.b32.xlu0 %v1100, 16
      %v1105 = vpop.permute.xlu0 %1104
      %1106 = vrot.lane.b32.xlu0 %v1101, 16
      %v1107 = vpop.permute.xlu0 %1106
      %v1110 = vadd.f32 %v1098, %v1105
      %v1111 = vadd.f32 %v1099, %v1107
      %v1112 = vpack.c.bf16 %v1111, %v1110
      %v1113 = vpack.c.bf16 %v734, %v733
      %1115 = vrot.lane.b32.xlu0 %v1112, 112
      %v1116 = vpop.permute.xlu0 %1115
      %1118 = vrot.lane.b32.xlu0 %v1113, 80
      %v1119 = vpop.permute.xlu0 %1118
      %v1121 = vsel %vm794, %v1116, 0
      %v1124 = vsel %vm794, %v1119, 0
      %1126 = vmatprep.subr.bf16.mxu0 0
      %1127 = vmatpush1.bf16.xpose.msra.mxu0 %v1124
      %1128 = vmatprep.subr.bf16.mxu0 0
      %1129 = vmatpush1.bf16.xpose.msra.mxu0 0
      %1130 = vmatprep.subr.bf16.mxu0 0
      %1131 = vmatpush1.bf16.xpose.msra.mxu0 0
      %1132 = vmatprep.subr.bf16.mxu0 0
      %1133 = vmatpush1.bf16.xpose.msra.mxu0 0
      %1134 = vmatprep.subr.bf16.mxu0 0
      %1135 = vmatpush1.bf16.xpose.msra.mxu0 0
      %1136 = vmatprep.subr.bf16.mxu0 0
      %1137 = vmatpush1.bf16.xpose.msra.mxu0 0
      %1138 = vmatprep.subr.bf16.mxu0 0
      %1139 = vmatpush1.bf16.xpose.msra.mxu0 0
      %1140 = vmatprep.subr.bf16.mxu0 0
      %1141 = vmatpush1.bf16.xpose.msra.mxu0 0
      %1142 = vmatprep.subr.bf16.mxu0 0
      %1143 = vmatpush1.bf16.xpose.msra.mxu0 0
      %1144 = vmatprep.subr.bf16.mxu0 0
      %1145 = vmatpush1.bf16.xpose.msra.mxu0 0
      %1146 = vmatprep.subr.bf16.mxu0 0
      %1147 = vmatpush1.bf16.xpose.msra.mxu0 0
      %1148 = vmatprep.subr.bf16.mxu0 0
      %1149 = vmatpush1.bf16.xpose.msra.mxu0 0
      %1150 = vmatprep.subr.bf16.mxu0 0
      %1151 = vmatpush1.bf16.xpose.msra.mxu0 0
      %1152 = vmatprep.subr.bf16.mxu0 0
      %1153 = vmatpush1.bf16.xpose.msra.mxu0 0
      %1154 = vmatprep.subr.bf16.mxu0 0
      %1155 = vmatpush1.bf16.xpose.msra.mxu0 0
      %1156 = vmatprep.subr.bf16.mxu0 0
      %1157 = vmatpush1.bf16.xpose.msra.mxu0 0
      %1158 = vmatprep.mubr.bf16.mxu0 0
      %1159 = vmatmul.mubr.bf16.gmra.mrb[0].mxu0 %v1121
      %v1160 = vpop.f32.mrb[0].mxu0
      %v1161 = vadd.f32 0.0, %v1160
      %v1162 = vpop.f32.mrb[0].mxu0
      %v1163 = vpop.f32.mrb[0].mxu0
      %v1164 = vadd.f32 0.0, %v1163
      %v1165 = vpop.f32.mrb[0].mxu0
      %1166 = vdwg.mxu0
      %v1167 = vmul.f32 %v1161, 0.35355338
      %v1168 = vmul.f32 %v1164, 0.35355338
      %v1169 = vsel %vm844, %v1167, -inf
      %1170 = vmax.xlane.f32.xlu0 %v1169
      %v1171 = vpop.xlane.xlu0 %1170
      %v1172 = vsel %vm844, %v1168, -inf
      %1173 = vmax.xlane.f32.xlu0 %v1172
      %v1174 = vpop.xlane.xlu0 %1173
      %v1175 = vsub.f32 %v1167, %v1171
      %v1176 = vsub.f32 %v1168, %v1174
      %v1177 = vmul.f32 %v1175, 1.442695
      %v1178 = vpow.pop %v1177
      %v1179 = vmul.f32 %v1176, 1.442695
      %v1180 = vpow.pop %v1179
      %v1181 = vsel %vm844, %v1178, 0.0
      %1182 = vadd.xlane.f32.xlu0 %v1181
      %v1183 = vpop.xlane.xlu0 %1182
      %v1184 = vsel %vm844, %v1180, 0.0
      %1185 = vadd.xlane.f32.xlu0 %v1184
      %v1186 = vpop.xlane.xlu0 %1185
      %v1187 = vpack.c.bf16 %v1180, %v1178
      %1188 = vrot.lane.b32.xlu0 %v864, 48
      %v1189 = vpop.permute.xlu0 %1188
      %v1192 = vsel %vm844, %v1187, 0
      %1194 = vmatprep.subr.bf16.mxu0 0
      %1195 = vmatpush1.bf16.msra.mxu0 %v1189
      %1196 = vmatprep.subr.bf16.mxu0 0
      %1197 = vmatpush1.bf16.msra.mxu0 0
      %1198 = vmatprep.subr.bf16.mxu0 0
      %1199 = vmatpush1.bf16.msra.mxu0 0
      %1200 = vmatprep.subr.bf16.mxu0 0
      %1201 = vmatpush1.bf16.msra.mxu0 0
      %1202 = vmatprep.subr.bf16.mxu0 0
      %1203 = vmatpush1.bf16.msra.mxu0 0
      %1204 = vmatprep.subr.bf16.mxu0 0
      %1205 = vmatpush1.bf16.msra.mxu0 0
      %1206 = vmatprep.subr.bf16.mxu0 0
      %1207 = vmatpush1.bf16.msra.mxu0 0
      %1208 = vmatprep.subr.bf16.mxu0 0
      %1209 = vmatpush1.bf16.msra.mxu0 0
      %1210 = vmatprep.subr.bf16.mxu0 0
      %1211 = vmatpush1.bf16.msra.mxu0 0
      %1212 = vmatprep.subr.bf16.mxu0 0
      %1213 = vmatpush1.bf16.msra.mxu0 0
      %1214 = vmatprep.subr.bf16.mxu0 0
      %1215 = vmatpush1.bf16.msra.mxu0 0
      %1216 = vmatprep.subr.bf16.mxu0 0
      %1217 = vmatpush1.bf16.msra.mxu0 0
      %1218 = vmatprep.subr.bf16.mxu0 0
      %1219 = vmatpush1.bf16.msra.mxu0 0
      %1220 = vmatprep.subr.bf16.mxu0 0
      %1221 = vmatpush1.bf16.msra.mxu0 0
      %1222 = vmatprep.subr.bf16.mxu0 0
      %1223 = vmatpush1.bf16.msra.mxu0 0
      %1224 = vmatprep.subr.bf16.mxu0 0
      %1225 = vmatpush1.bf16.msra.mxu0 0
      %1226 = vmatprep.mubr.bf16.mxu0 0
      %1227 = vmatmul.mubr.bf16.gmra.mrb[0].mxu0 %v1192
      %v1228 = vpop.f32.mrb[0].mxu0
      %v1229 = vadd.f32 0.0, %v1228
      %v1230 = vpop.f32.mrb[0].mxu0
      %v1231 = vpop.f32.mrb[0].mxu0
      %v1232 = vadd.f32 0.0, %v1231
      %v1233 = vpop.f32.mrb[0].mxu0
      %1234 = vdwg.mxu0
      %v1235 = vrcp.pop %v1183
      %v1236 = vrcp.pop %v1186
      %v1237 = vmul.f32 %v1229, %v1235
      %v1238 = vmul.f32 %v1232, %v1236
      %1239 = vrot.lane.b32.xlu0 %v624, 100
      %v1240 = vpop.permute.xlu0 %1239
      %1241 = vrot.lane.b32.xlu0 %v625, 100
      %v1242 = vpop.permute.xlu0 %1241
      %1245 = vrot.lane.b32.xlu0 %v618, 108
      %v1246 = vpop.permute.xlu0 %1245
      %1247 = vrot.lane.b32.xlu0 %v621, 108
      %v1248 = vpop.permute.xlu0 %1247
      %v1251 = vsel %vm642, %v1240, %v1246
      %v1252 = vsel %vm642, %v1242, %v1248
      %1253 = vrot.lane.b32.xlu0 %v532, 24
      %v1254 = vpop.permute.xlu0 %1253
      %1255 = vrot.lane.b32.xlu0 %v533, 24
      %v1256 = vpop.permute.xlu0 %1255
      %v1259 = vmul.f32 %v618, %v1254
      %v1260 = vmul.f32 %v621, %v1256
      %v1261 = vmul.f32 %v1251, %v534
      %v1262 = vmul.f32 %v1252, %v535
      %1265 = vrot.lane.b32.xlu0 %v1261, 24
      %v1266 = vpop.permute.xlu0 %1265
      %1267 = vrot.lane.b32.xlu0 %v1262, 24
      %v1268 = vpop.permute.xlu0 %1267
      %v1271 = vadd.f32 %v1259, %v1266
      %v1272 = vadd.f32 %v1260, %v1268
      %v1273 = vpack.c.bf16 %v1272, %v1271
      %v1274 = vpack.c.bf16 %v768, %v767
      %1276 = vrot.lane.b32.xlu0 %v1273, 104
      %v1277 = vpop.permute.xlu0 %1276
      %1279 = vrot.lane.b32.xlu0 %v1274, 72
      %v1280 = vpop.permute.xlu0 %1279
      %v1282 = vsel %vm794, %v1277, 0
      %v1285 = vsel %vm794, %v1280, 0
      %1287 = vmatprep.subr.bf16.mxu0 0
      %1288 = vmatpush1.bf16.xpose.msra.mxu0 %v1285
      %1289 = vmatprep.subr.bf16.mxu0 0
      %1290 = vmatpush1.bf16.xpose.msra.mxu0 0
      %1291 = vmatprep.subr.bf16.mxu0 0
      %1292 = vmatpush1.bf16.xpose.msra.mxu0 0
      %1293 = vmatprep.subr.bf16.mxu0 0
      %1294 = vmatpush1.bf16.xpose.msra.mxu0 0
      %1295 = vmatprep.subr.bf16.mxu0 0
      %1296 = vmatpush1.bf16.xpose.msra.mxu0 0
      %1297 = vmatprep.subr.bf16.mxu0 0
      %1298 = vmatpush1.bf16.xpose.msra.mxu0 0
      %1299 = vmatprep.subr.bf16.mxu0 0
      %1300 = vmatpush1.bf16.xpose.msra.mxu0 0
      %1301 = vmatprep.subr.bf16.mxu0 0
      %1302 = vmatpush1.bf16.xpose.msra.mxu0 0
      %1303 = vmatprep.subr.bf16.mxu0 0
      %1304 = vmatpush1.bf16.xpose.msra.mxu0 0
      %1305 = vmatprep.subr.bf16.mxu0 0
      %1306 = vmatpush1.bf16.xpose.msra.mxu0 0
      %1307 = vmatprep.subr.bf16.mxu0 0
      %1308 = vmatpush1.bf16.xpose.msra.mxu0 0
      %1309 = vmatprep.subr.bf16.mxu0 0
      %1310 = vmatpush1.bf16.xpose.msra.mxu0 0
      %1311 = vmatprep.subr.bf16.mxu0 0
      %1312 = vmatpush1.bf16.xpose.msra.mxu0 0
      %1313 = vmatprep.subr.bf16.mxu0 0
      %1314 = vmatpush1.bf16.xpose.msra.mxu0 0
      %1315 = vmatprep.subr.bf16.mxu0 0
      %1316 = vmatpush1.bf16.xpose.msra.mxu0 0
      %1317 = vmatprep.subr.bf16.mxu0 0
      %1318 = vmatpush1.bf16.xpose.msra.mxu0 0
      %1319 = vmatprep.mubr.bf16.mxu0 0
      %1320 = vmatmul.mubr.bf16.gmra.mrb[0].mxu0 %v1282
      %v1321 = vpop.f32.mrb[0].mxu0
      %v1322 = vadd.f32 0.0, %v1321
      %v1323 = vpop.f32.mrb[0].mxu0
      %v1324 = vpop.f32.mrb[0].mxu0
      %v1325 = vadd.f32 0.0, %v1324
      %v1326 = vpop.f32.mrb[0].mxu0
      %1327 = vdwg.mxu0
      %v1328 = vmul.f32 %v1322, 0.35355338
      %v1329 = vmul.f32 %v1325, 0.35355338
      %v1330 = vsel %vm844, %v1328, -inf
      %1331 = vmax.xlane.f32.xlu0 %v1330
      %v1332 = vpop.xlane.xlu0 %1331
      %v1333 = vsel %vm844, %v1329, -inf
      %1334 = vmax.xlane.f32.xlu0 %v1333
      %v1335 = vpop.xlane.xlu0 %1334
      %v1336 = vsub.f32 %v1328, %v1332
      %v1337 = vsub.f32 %v1329, %v1335
      %v1338 = vmul.f32 %v1336, 1.442695
      %v1339 = vpow.pop %v1338
      %v1340 = vmul.f32 %v1337, 1.442695
      %v1341 = vpow.pop %v1340
      %v1342 = vsel %vm844, %v1339, 0.0
      %1343 = vadd.xlane.f32.xlu0 %v1342
      %v1344 = vpop.xlane.xlu0 %1343
      %v1345 = vsel %vm844, %v1341, 0.0
      %1346 = vadd.xlane.f32.xlu0 %v1345
      %v1347 = vpop.xlane.xlu0 %1346
      %v1348 = vpack.c.bf16 %v1341, %v1339
      %1349 = vrot.lane.b32.xlu0 %v864, 40
      %v1350 = vpop.permute.xlu0 %1349
      %v1353 = vsel %vm844, %v1348, 0
      %1355 = vmatprep.subr.bf16.mxu0 0
      %1356 = vmatpush1.bf16.msra.mxu0 %v1350
      %1357 = vmatprep.subr.bf16.mxu0 0
      %1358 = vmatpush1.bf16.msra.mxu0 0
      %1359 = vmatprep.subr.bf16.mxu0 0
      %1360 = vmatpush1.bf16.msra.mxu0 0
      %1361 = vmatprep.subr.bf16.mxu0 0
      %1362 = vmatpush1.bf16.msra.mxu0 0
      %1363 = vmatprep.subr.bf16.mxu0 0
      %1364 = vmatpush1.bf16.msra.mxu0 0
      %1365 = vmatprep.subr.bf16.mxu0 0
      %1366 = vmatpush1.bf16.msra.mxu0 0
      %1367 = vmatprep.subr.bf16.mxu0 0
      %1368 = vmatpush1.bf16.msra.mxu0 0
      %1369 = vmatprep.subr.bf16.mxu0 0
      %1370 = vmatpush1.bf16.msra.mxu0 0
      %1371 = vmatprep.subr.bf16.mxu0 0
      %1372 = vmatpush1.bf16.msra.mxu0 0
      %1373 = vmatprep.subr.bf16.mxu0 0
      %1374 = vmatpush1.bf16.msra.mxu0 0
      %1375 = vmatprep.subr.bf16.mxu0 0
      %1376 = vmatpush1.bf16.msra.mxu0 0
      %1377 = vmatprep.subr.bf16.mxu0 0
      %1378 = vmatpush1.bf16.msra.mxu0 0
      %1379 = vmatprep.subr.bf16.mxu0 0
      %1380 = vmatpush1.bf16.msra.mxu0 0
      %1381 = vmatprep.subr.bf16.mxu0 0
      %1382 = vmatpush1.bf16.msra.mxu0 0
      %1383 = vmatprep.subr.bf16.mxu0 0
      %1384 = vmatpush1.bf16.msra.mxu0 0
      %1385 = vmatprep.subr.bf16.mxu0 0
      %1386 = vmatpush1.bf16.msra.mxu0 0
      %1387 = vmatprep.mubr.bf16.mxu0 0
      %1388 = vmatmul.mubr.bf16.gmra.mrb[0].mxu0 %v1353
      %v1389 = vpop.f32.mrb[0].mxu0
      %v1390 = vadd.f32 0.0, %v1389
      %v1391 = vpop.f32.mrb[0].mxu0
      %v1392 = vpop.f32.mrb[0].mxu0
      %v1393 = vadd.f32 0.0, %v1392
      %v1394 = vpop.f32.mrb[0].mxu0
      %1395 = vdwg.mxu0
      %v1396 = vrcp.pop %v1344
      %v1397 = vrcp.pop %v1347
      %v1398 = vmul.f32 %v1390, %v1396
      %v1399 = vmul.f32 %v1393, %v1397
      %1402 = vrot.lane.b32.xlu0 %v1076, 8
      %v1403 = vpop.permute.xlu0 %1402
      %1404 = vrot.lane.b32.xlu0 %v1077, 8
      %v1405 = vpop.permute.xlu0 %1404
      %1410 = vrot.lane.b32.xlu0 %v1237, 16
      %v1411 = vpop.permute.xlu0 %1410
      %1412 = vrot.lane.b32.xlu0 %v1238, 16
      %v1413 = vpop.permute.xlu0 %1412
      %1418 = vrot.lane.b32.xlu0 %v1398, 24
      %v1419 = vpop.permute.xlu0 %1418
      %1420 = vrot.lane.b32.xlu0 %v1399, 24
      %v1421 = vpop.permute.xlu0 %1420
      %v1424 = vsel %vm794, %v915, %v1403
      %v1425 = vsel %vm794, %v916, %v1405
      %v1426 = vsel %vm844, %v1424, %v1411
      %v1427 = vsel %vm844, %v1425, %v1413
      %vm1428 = vcmask 195584
      %v1429 = vsel %vm1428, %v1426, %v1419
      %v1430 = vsel %vm1428, %v1427, %v1421
      %v1431 = vpack.c.bf16 %v1430, %v1429
      %v1432 = vld [vmem:[%s501] sm:$0xf]
      %v1433 = vld [vmem:[%s501 + $0x4] sm:$0xf]
      %v1434 = vld [vmem:[%s501 + $0x8] sm:$0xf]
      %v1435 = vld [vmem:[%s501 + $0xc] sm:$0xf]
      %v1440 = vunpack.c.l.b16 %v1432
      %v1441 = vunpack.c.l.b16 %v1433
      %v1442 = vunpack.c.l.b16 %v1434
      %v1443 = vunpack.c.l.b16 %v1435
      %v1444 = vpack.c.b16 %v1441, %v1440
      %v1445 = vpack.c.b16 %v1443, %v1442
      %v1449 = vsel %vm539, %v1431, 0
      %1451 = vmatprep.subr.bf16.mxu0 0
      %1452 = vmatpush1.bf16.msra.mxu0 %v1444
      %1453 = vmatprep.subr.bf16.mxu0 0
      %1454 = vmatpush1.bf16.msra.mxu0 %v1445
      %1455 = vmatprep.subr.bf16.mxu0 0
      %1456 = vmatpush1.bf16.msra.mxu0 0
      %1457 = vmatprep.subr.bf16.mxu0 0
      %1458 = vmatpush1.bf16.msra.mxu0 0
      %1459 = vmatprep.subr.bf16.mxu0 0
      %1460 = vmatpush1.bf16.msra.mxu0 0
      %1461 = vmatprep.subr.bf16.mxu0 0
      %1462 = vmatpush1.bf16.msra.mxu0 0
      %1463 = vmatprep.subr.bf16.mxu0 0
      %1464 = vmatpush1.bf16.msra.mxu0 0
      %1465 = vmatprep.subr.bf16.mxu0 0
      %1466 = vmatpush1.bf16.msra.mxu0 0
      %1467 = vmatprep.subr.bf16.mxu0 0
      %1468 = vmatpush1.bf16.msra.mxu0 0
      %1469 = vmatprep.subr.bf16.mxu0 0
      %1470 = vmatpush1.bf16.msra.mxu0 0
      %1471 = vmatprep.subr.bf16.mxu0 0
      %1472 = vmatpush1.bf16.msra.mxu0 0
      %1473 = vmatprep.subr.bf16.mxu0 0
      %1474 = vmatpush1.bf16.msra.mxu0 0
      %1475 = vmatprep.subr.bf16.mxu0 0
      %1476 = vmatpush1.bf16.msra.mxu0 0
      %1477 = vmatprep.subr.bf16.mxu0 0
      %1478 = vmatpush1.bf16.msra.mxu0 0
      %1479 = vmatprep.subr.bf16.mxu0 0
      %1480 = vmatpush1.bf16.msra.mxu0 0
      %1481 = vmatprep.subr.bf16.mxu0 0
      %1482 = vmatpush1.bf16.msra.mxu0 0
      %1483 = vmatprep.mubr.bf16.mxu0 0
      %1484 = vmatmul.mubr.bf16.gmra.mrb[0].mxu0 %v1449
      %v1485 = vpop.f32.mrb[0].mxu0
      %v1486 = vadd.f32 0.0, %v1485
      %v1487 = vpop.f32.mrb[0].mxu0
      %v1488 = vpop.f32.mrb[0].mxu0
      %v1489 = vadd.f32 0.0, %v1488
      %v1490 = vpop.f32.mrb[0].mxu0
      %1491 = vdwg.mxu0
      %v1492 = vadd.f32 %v530, %v1486
      %v1493 = vadd.f32 %v531, %v1489
      %v1494 = vld [vmem:[%s504] sm:$0x1]
      %v1495 = vmul.f32 %v1492, %v1492
      %v1496 = vmul.f32 %v1493, %v1493
      %v1497 = vsel %vm539, %v1495, 0.0
      %1498 = vadd.xlane.f32.xlu0 %v1497
      %v1499 = vpop.xlane.xlu0 %1498
      %v1500 = vsel %vm539, %v1496, 0.0
      %1501 = vadd.xlane.f32.xlu0 %v1500
      %v1502 = vpop.xlane.xlu0 %1501
      %v1503 = vmul.f32 %v1499, %v546
      %v1504 = vmul.f32 %v1502, %v546
      %v1505 = vadd.f32 %v1503, 1e-05
      %v1506 = vadd.f32 %v1504, 1e-05
      %v1507 = vrsqrt.pop %v1505
      %v1508 = vrsqrt.pop %v1506
      %v1509 = vmul.f32 %v1492, %v1507
      %v1510 = vmul.f32 %v1493, %v1508
      %v1512 = vlaneseq
      %v1513 = vshrl.u32 %v1512, 7
      %v1514 = vsub.s32 0, %v1513
      %v1515 = vrot.slane %v1494, %v1514
      %v1517 = vmul.f32 %v1509, %v1515
      %v1518 = vmul.f32 %v1510, %v1515
      %v1519 = vld [vmem:[%s509] sm:$0xf]
      %v1520 = vld [vmem:[%s509 + $0x4] sm:$0xf]
      %v1521 = vld [vmem:[%s509 + $0x8] sm:$0xf]
      %v1522 = vld [vmem:[%s509 + $0xc] sm:$0xf]
      %v1523 = vld [vmem:[%s514] sm:$0xf]
      %v1524 = vld [vmem:[%s514 + $0x4] sm:$0xf]
      %v1525 = vld [vmem:[%s514 + $0x8] sm:$0xf]
      %v1526 = vld [vmem:[%s514 + $0xc] sm:$0xf]
      %v1527 = vld [vmem:[%s514 + $0x10] sm:$0xf]
      %v1528 = vld [vmem:[%s514 + $0x14] sm:$0xf]
      %v1529 = vld [vmem:[%s514 + $0x18] sm:$0xf]
      %v1530 = vld [vmem:[%s514 + $0x1c] sm:$0xf]
      %v1531 = vpack.c.bf16 %v1518, %v1517
      %v1536 = vunpack.c.l.b16 %v1519
      %v1537 = vunpack.c.l.b16 %v1520
      %v1538 = vunpack.c.l.b16 %v1521
      %v1539 = vunpack.c.l.b16 %v1522
      %v1540 = vpack.c.b16 %v1537, %v1536
      %v1541 = vpack.c.b16 %v1539, %v1538
      %v1545 = vsel %vm539, %v1531, 0
      %1547 = vmatprep.subr.bf16.mxu0 0
      %1548 = vmatpush1.bf16.msra.mxu0 %v1540
      %1549 = vmatprep.subr.bf16.mxu0 0
      %1550 = vmatpush1.bf16.msra.mxu0 %v1541
      %1551 = vmatprep.subr.bf16.mxu0 0
      %1552 = vmatpush1.bf16.msra.mxu0 0
      %1553 = vmatprep.subr.bf16.mxu0 0
      %1554 = vmatpush1.bf16.msra.mxu0 0
      %1555 = vmatprep.subr.bf16.mxu0 0
      %1556 = vmatpush1.bf16.msra.mxu0 0
      %1557 = vmatprep.subr.bf16.mxu0 0
      %1558 = vmatpush1.bf16.msra.mxu0 0
      %1559 = vmatprep.subr.bf16.mxu0 0
      %1560 = vmatpush1.bf16.msra.mxu0 0
      %1561 = vmatprep.subr.bf16.mxu0 0
      %1562 = vmatpush1.bf16.msra.mxu0 0
      %1563 = vmatprep.subr.bf16.mxu0 0
      %1564 = vmatpush1.bf16.msra.mxu0 0
      %1565 = vmatprep.subr.bf16.mxu0 0
      %1566 = vmatpush1.bf16.msra.mxu0 0
      %1567 = vmatprep.subr.bf16.mxu0 0
      %1568 = vmatpush1.bf16.msra.mxu0 0
      %1569 = vmatprep.subr.bf16.mxu0 0
      %1570 = vmatpush1.bf16.msra.mxu0 0
      %1571 = vmatprep.subr.bf16.mxu0 0
      %1572 = vmatpush1.bf16.msra.mxu0 0
      %1573 = vmatprep.subr.bf16.mxu0 0
      %1574 = vmatpush1.bf16.msra.mxu0 0
      %1575 = vmatprep.subr.bf16.mxu0 0
      %1576 = vmatpush1.bf16.msra.mxu0 0
      %1577 = vmatprep.subr.bf16.mxu0 0
      %1578 = vmatpush1.bf16.msra.mxu0 0
      %1579 = vmatprep.mubr.bf16.mxu0 0
      %1580 = vmatmul.mubr.bf16.gmra.mrb[0].mxu0 %v1545
      %v1581 = vpop.f32.mrb[0].mxu0
      %v1582 = vadd.f32 0.0, %v1581
      %v1583 = vpop.f32.mrb[0].mxu0
      %v1584 = vpop.f32.mrb[0].mxu0
      %v1585 = vadd.f32 0.0, %v1584
      %v1586 = vpop.f32.mrb[0].mxu0
      %1587 = vdwg.mxu0
      %v1588 = vxor.u32 %v1582, 2147483648
      %v1589 = vxor.u32 %v1585, 2147483648
      %v1590 = vmul.f32 %v1588, 1.442695
      %v1591 = vpow.pop %v1590
      %v1592 = vmul.f32 %v1589, 1.442695
      %v1593 = vpow.pop %v1592
      %v1594 = vadd.f32 %v1591, 1.0
      %v1595 = vadd.f32 %v1593, 1.0
      %v1596 = vrcp.pop %v1594
      %v1597 = vmul.f32 1.0, %v1596
      %v1598 = vrcp.pop %v1595
      %v1599 = vmul.f32 1.0, %v1598
      %v1600 = vmul.f32 %v1582, %v1597
      %v1601 = vmul.f32 %v1585, %v1599
      %1604 = vrot.lane.b32.xlu0 %v1582, 64
      %v1605 = vpop.permute.xlu0 %1604
      %1606 = vrot.lane.b32.xlu0 %v1585, 64
      %v1607 = vpop.permute.xlu0 %1606
      %v1610 = vmul.f32 %v1600, %v1605
      %v1611 = vmul.f32 %v1601, %v1607
      %v1612 = vpack.c.bf16 %v1611, %v1610
      %v1621 = vunpack.c.l.b16 %v1523
      %v1622 = vunpack.c.l.b16 %v1524
      %v1623 = vunpack.c.l.b16 %v1525
      %v1624 = vunpack.c.l.b16 %v1526
      %v1625 = vunpack.c.l.b16 %v1527
      %v1626 = vunpack.c.l.b16 %v1528
      %v1627 = vunpack.c.l.b16 %v1529
      %v1628 = vunpack.c.l.b16 %v1530
      %v1629 = vpack.c.b16 %v1622, %v1621
      %v1630 = vpack.c.b16 %v1624, %v1623
      %v1631 = vpack.c.b16 %v1626, %v1625
      %v1632 = vpack.c.b16 %v1628, %v1627
      %vm1637 = vcmask 523264
      %v1639 = vsel %vm1637, %v1612, 0
      %1641 = vmatprep.subr.bf16.mxu0 0
      %1642 = vmatpush1.bf16.msra.mxu0 %v1629
      %1643 = vmatprep.subr.bf16.mxu0 0
      %1644 = vmatpush1.bf16.msra.mxu0 %v1630
      %1645 = vmatprep.subr.bf16.mxu0 0
      %1646 = vmatpush1.bf16.msra.mxu0 %v1631
      %1647 = vmatprep.subr.bf16.mxu0 0
      %1648 = vmatpush1.bf16.msra.mxu0 %v1632
      %1649 = vmatprep.subr.bf16.mxu0 0
      %1650 = vmatpush1.bf16.msra.mxu0 0
      %1651 = vmatprep.subr.bf16.mxu0 0
      %1652 = vmatpush1.bf16.msra.mxu0 0
      %1653 = vmatprep.subr.bf16.mxu0 0
      %1654 = vmatpush1.bf16.msra.mxu0 0
      %1655 = vmatprep.subr.bf16.mxu0 0
      %1656 = vmatpush1.bf16.msra.mxu0 0
      %1657 = vmatprep.subr.bf16.mxu0 0
      %1658 = vmatpush1.bf16.msra.mxu0 0
      %1659 = vmatprep.subr.bf16.mxu0 0
      %1660 = vmatpush1.bf16.msra.mxu0 0
      %1661 = vmatprep.subr.bf16.mxu0 0
      %1662 = vmatpush1.bf16.msra.mxu0 0
      %1663 = vmatprep.subr.bf16.mxu0 0
      %1664 = vmatpush1.bf16.msra.mxu0 0
      %1665 = vmatprep.subr.bf16.mxu0 0
      %1666 = vmatpush1.bf16.msra.mxu0 0
      %1667 = vmatprep.subr.bf16.mxu0 0
      %1668 = vmatpush1.bf16.msra.mxu0 0
      %1669 = vmatprep.subr.bf16.mxu0 0
      %1670 = vmatpush1.bf16.msra.mxu0 0
      %1671 = vmatprep.subr.bf16.mxu0 0
      %1672 = vmatpush1.bf16.msra.mxu0 0
      %1673 = vmatprep.mubr.bf16.mxu0 0
      %1674 = vmatmul.mubr.bf16.gmra.mrb[0].mxu0 %v1639
      %v1675 = vpop.f32.mrb[0].mxu0
      %v1676 = vadd.f32 0.0, %v1675
      %v1677 = vpop.f32.mrb[0].mxu0
      %v1678 = vpop.f32.mrb[0].mxu0
      %v1679 = vadd.f32 0.0, %v1678
      %v1680 = vpop.f32.mrb[0].mxu0
      %1681 = vdwg.mxu0
      %v1682 = vadd.f32 %v1492, %v1676
      %v1683 = vadd.f32 %v1493, %v1679
      %1684 = vst.msk [vmem:[#allocation2] sm:$0xff] %vm539, %v1682
      %1685 = vst.msk [vmem:[#allocation2 + $0x8] sm:$0xff] %vm539, %v1683
      %p1686 = scmp.eq.s32.totalorder %s26, 1
      // Predicated region
      $region65: #{tts_forward.3} parent=59 // pred_check
        %p1687 = pneg %p1686
      $region66: #{tts_forward.3} parent=59 // pred_check_branch
        %1689 = sbr.rel (%p1687) target = $region68
      $region67: #{tts_forward.3} parent=59 // pred_region
        %v1690 = vld [vmem:[%s9] sm:$0x1]
        %v1691 = vmul.f32 %v1682, %v1682
        %v1692 = vmul.f32 %v1683, %v1683
        %v1693 = vsel %vm539, %v1691, 0.0
        %1694 = vadd.xlane.f32.xlu0 %v1693
        %v1695 = vpop.xlane.xlu0 %1694
        %v1696 = vsel %vm539, %v1692, 0.0
        %1697 = vadd.xlane.f32.xlu0 %v1696
        %v1698 = vpop.xlane.xlu0 %1697
        %v1699 = vmul.f32 %v1695, %v546
        %v1700 = vmul.f32 %v1698, %v546
        %v1701 = vadd.f32 %v1699, 1e-05
        %v1702 = vadd.f32 %v1700, 1e-05
        %v1703 = vrsqrt.pop %v1701
        %v1704 = vrsqrt.pop %v1702
        %v1705 = vmul.f32 %v1682, %v1703
        %v1706 = vmul.f32 %v1683, %v1704
        %v1708 = vlaneseq
        %v1709 = vshrl.u32 %v1708, 7
        %v1710 = vsub.s32 0, %v1709
        %v1711 = vrot.slane %v1690, %v1710
        %v1713 = vmul.f32 %v1705, %v1711
        %v1714 = vmul.f32 %v1706, %v1711
        %v1715 = vpack.c.bf16 %v1714, %v1713
        %v1717 = vunpack.c.l.b16 %v1715
        %v1718 = vunpack.c.h.b16 %v1715
        %v1719 = vpack.c.b16 %v1717, %v1717
        %v1720 = vpack.c.b16 %v1718, %v1718
        %vm1723 = vcmask 257024
        %1724 = vst.msk [vmem:[%s519] sm:$0xf] %vm1723, %v1719
        %1725 = vst.msk [vmem:[%s519 + $0x4] sm:$0xf] %vm1723, %v1720
      $region68: #{tts_forward.3} parent=59 // pred_fallthru
        _
      %p1726 = scmp.lt.s32.totalorder %s25, 1
      %s1727 = scalar_select %p1726, %s25, 1
      %s1728 = smul.addr %s1727, 2
      %s1729 = smul.addr %s1728, 4
      %s1730 = scalar_lea.vmem %s10, %s1729
      // Predicated region
      $region69: #{tts_forward.3} parent=59 // pred_check
        %p1731 = pneg %p306
      $region70: #{tts_forward.3} parent=59 // pred_check_branch
        %1733 = sbr.rel (%p1731) target = $region72
      $region71: #{tts_forward.3} parent=59 // pred_region
        _
      $region72: #{tts_forward.3} parent=59 // pred_fallthru
        _
    $region60: #{tts_forward.3} parent=5 // pred_fallthru
      _
    %p1734 = scmp.le.s32.totalorder 2, %s16
    // Predicated region
    $region73: #{tts_forward.3} parent=5 // pred_check
      %p1735 = pneg %p1734
    $region74: #{tts_forward.3} parent=5 // pred_check_branch
      %1737 = sbr.rel (%p1735) target = $region76
    $region75: #{tts_forward.3} parent=5 // pred_region
      %s1738 = ssub.s32 %s16, 2
      // Predicated region
      $region77: #{tts_forward.3} parent=75 // pred_check
        %p1739 = pneg %p312
      $region78: #{tts_forward.3} parent=75 // pred_check_branch
        %1741 = sbr.rel (%p1739) target = $region80
      $region79: #{tts_forward.3} parent=75 // pred_region
        %p1742 = scmp.lt.s32.totalorder %s27, 1
        %s1743 = scalar_select %p1742, %s27, 1
        %s1744 = smul.addr %s1743, 2
        %s1745 = smul.addr %s1744, 4
        %s1746 = scalar_lea.vmem %s10, %s1745
      $region80: #{tts_forward.3} parent=75 // pred_fallthru
        _
    $region76: #{tts_forward.3} parent=5 // pred_fallthru
      _
  $region6: #{tts_forward.3} parent=0 // loop_footer
    %s20 = sadd.s32 1, %s16
  $region7: #{tts_forward.3} parent=0 // loop_footer_branch
    %15 = sbr.rel target = $region3
  $region8: #{tts_forward.3} parent=0 // loop_exit
    _

// kernel: tts_forward.4
$region0: #{tts_forward.4}
  #allocation0 [shape = 'u32[]', space=smem, size = 0x4, offset = 0x4, fixed_abs, tag = 'smem constant byte address 0x4 - core index']
  #allocation1 [shape = 'u32[144,128]{1,0:T(1,128)}', space=vmem, size = 0x12000, scoped, tag = 'internal scratch']
  #allocation2 [shape = 'f32[8,32]{1,0:T(8,128)}', space=vmem, size = 0x1000, scoped, tag = 'scratch operand']
  %s0 = inlined_call_operand.vmem [shape: f32[2,8,32], index: 0, kind: input, shape index: {}]
  %s1 = inlined_call_operand.vmem [shape: bf16[2,16,32], index: 1, kind: input, shape index: {}]
  %s2 = inlined_call_operand.vmem [shape: f32[2,8,8], index: 2, kind: input, shape index: {}]
  %s3 = inlined_call_operand.vmem [shape: f32[2,8,8], index: 3, kind: input, shape index: {}]
  %s4 = inlined_call_operand.vmem [shape: f32[2,16,8], index: 4, kind: input, shape index: {}]
  %s5 = inlined_call_operand.vmem [shape: f32[2,16,8], index: 5, kind: input, shape index: {}]
  %s6 = inlined_call_operand.vmem [shape: f32[2,1,32], index: 6, kind: input, shape index: {}]
  %s7 = inlined_call_operand.vmem [shape: bf16[2,32,64], index: 7, kind: input, shape index: {}]
  %s8 = inlined_call_operand.vmem [shape: bf16[2,32,32], index: 8, kind: input, shape index: {}]
  %s9 = inlined_call_operand.vmem [shape: f32[2,1,32], index: 9, kind: input, shape index: {}]
  %s10 = inlined_call_operand.vmem [shape: bf16[2,32,32], index: 10, kind: input, shape index: {}]
  %s11 = inlined_call_operand.vmem [shape: bf16[2,32,64], index: 11, kind: input, shape index: {}]
  %s12 = inlined_call_operand.vmem [shape: bf16[2,32,32], index: 12, kind: input, shape index: {}]
  %s13 = inlined_call_operand.vmem [shape: f32[2,1,32], index: 13, kind: input, shape index: {}]
  %s14 = inlined_call_operand.vmem [shape: bf16[2,32,128], index: 14, kind: input, shape index: {}]
  %s15 = inlined_call_operand.vmem [shape: bf16[2,64,32], index: 15, kind: input, shape index: {}]
  %s16 = inlined_call_operand.vmem [shape: f32[1,32], index: 16, kind: input, shape index: {}]
  %s17 = inlined_call_operand.vmem [shape: bf16[2,8,32], index: 17, kind: output, shape index: {}]
  %s18 = sld [smem:[#allocation0]]
  $region109: #{tts_forward.4} parent=0
    _
  %s20 = ssub.s32 1, %s18
  %s21 = scalar_select 0, %s20, %s18
  loop: start=0, step=1, limit=6
  $region2: #{tts_forward.4} parent=0 // loop_pre_header
    _
  $region3: #{tts_forward.4} parent=0 // loop_header
    %s23 = sphi 0, %s27
    %p24 = scmp.ge.s32.totalorder %s23, 6
    %s30 = sphi 0, %s42
    %s31 = sphi 0, %s38
    %s32 = sphi 0, %s30
    %s33 = sphi 0, %s31
    %s34 = sphi 0, %s32
    %s35 = sphi 0, %s33
    %s45 = sphi 0, %s47
    %s48 = sphi 0, %s45
    %s49 = sphi 0, %s48
    %s65 = sphi 0, %s49
    %s71 = sphi 0, %s73
    %s74 = sphi 0, %s71
    %s75 = sphi 0, %s74
    %s91 = sphi 0, %s75
    %s97 = sphi 0, %s99
    %s100 = sphi 0, %s97
    %s101 = sphi 0, %s100
    %s117 = sphi 0, %s101
    %s123 = sphi 0, %s125
    %s126 = sphi 0, %s123
    %s127 = sphi 0, %s126
    %s143 = sphi 0, %s127
    %s149 = sphi 0, %s151
    %s152 = sphi 0, %s149
    %s153 = sphi 0, %s152
    %s169 = sphi 0, %s153
    %s175 = sphi 0, %s177
    %s178 = sphi 0, %s175
    %s179 = sphi 0, %s178
    %s195 = sphi 0, %s179
    %s201 = sphi 0, %s203
    %s204 = sphi 0, %s201
    %s205 = sphi 0, %s204
    %s221 = sphi 0, %s205
    %s227 = sphi 0, %s229
    %s230 = sphi 0, %s227
    %s231 = sphi 0, %s230
    %s247 = sphi 0, %s231
    %s253 = sphi 0, %s255
    %s256 = sphi 0, %s253
    %s257 = sphi 0, %s256
    %s273 = sphi 0, %s257
    %s279 = sphi 0, %s281
    %s282 = sphi 0, %s279
    %s283 = sphi 0, %s282
    %s299 = sphi 0, %s283
    %s305 = sphi 0, %s307
    %s308 = sphi 0, %s305
    %s309 = sphi 0, %s308
    %s325 = sphi 0, %s309
    %s331 = sphi 0, %s333
    %s334 = sphi 0, %s331
    %s335 = sphi 0, %s334
    %s351 = sphi 0, %s335
    %s357 = sphi 0, %s359
    %s360 = sphi 0, %s357
    %s361 = sphi 0, %s360
    %s377 = sphi 0, %s361
    %s383 = sphi 0, %s385
    %s386 = sphi 0, %s383
    %s387 = sphi 0, %s386
    %s403 = sphi 0, %s387
    %s409 = sphi 0, %s411
    %s412 = sphi 0, %s409
    %s413 = sphi 0, %s412
    %s429 = sphi 0, %s413
    %s435 = sphi 0, %s437
    %s438 = sphi 0, %s435
    %s439 = sphi 0, %s438
    %s455 = sphi 0, %s439
    %s459 = sphi 0, %s459
    %s461 = sphi 0, %s459
    %s462 = sphi 0, %s461
    %s476 = sphi 0, %s462
    %s482 = sphi 0, %s484
    %s485 = sphi 0, %s482
    %s486 = sphi 0, %s485
    %s502 = sphi 0, %s486
  $region4: #{tts_forward.4} parent=0 // loop_header_branch
    %26 = sbr.rel (%p24) target = $region8
  $region5: #{tts_forward.4} parent=0 // loop_body
    %s28 = ssub.s32 %s23, 1
    %s29 = ssub.s32 %s23, 2
    %s36 = sadd.s32 1, %s31
    %p37 = scmp.ge.s32.totalorder %s36, 2
    %s38 = scalar_select %p37, 0, %s36
    %s39 = sadd.s32 1, %s30
    %s40 = scalar_select %p37, %s39, %s30
    %p41 = scmp.ge.s32.totalorder %s40, 2
    %s42 = scalar_select %p41, 0, %s40
    %s43 = ssub.s32 %s30, %s42
    %p44 = scmp.eq.s32.totalorder %s43, 0
    %s46 = sadd.s32 %s45, 1
    %s47 = scalar_select %p44, %s45, %s46
    %p50 = pneg %p44
    %p51 = scmp.eq.s32.totalorder %s23, 3
    %p52 = por %p50, %p51
    %p53 = scmp.ne.s32.totalorder %s45, %s48
    %p54 = scmp.eq.s32.totalorder %s23, 0
    %p55 = por %p53, %p54
    %p56 = scmp.ne.s32.totalorder %s45, %s48
    %p57 = scmp.eq.s32.totalorder %s28, 3
    %p58 = por %p56, %p57
    %p59 = scmp.ne.s32.totalorder %s48, %s49
    %p60 = scmp.eq.s32.totalorder %s28, 0
    %p61 = por %p59, %p60
    %p62 = scmp.ne.s32.totalorder %s48, %s49
    %p63 = scmp.eq.s32.totalorder %s29, 3
    %p64 = por %p62, %p63
    %p66 = scmp.ne.s32.totalorder %s49, %s65
    %p67 = scmp.eq.s32.totalorder %s29, 0
    %p68 = por %p66, %p67
    %s69 = ssub.s32 %s30, %s42
    %p70 = scmp.eq.s32.totalorder %s69, 0
    %s72 = sadd.s32 %s71, 1
    %s73 = scalar_select %p70, %s71, %s72
    %p76 = pneg %p70
    %p77 = scmp.eq.s32.totalorder %s23, 3
    %p78 = por %p76, %p77
    %p79 = scmp.ne.s32.totalorder %s71, %s74
    %p80 = scmp.eq.s32.totalorder %s23, 0
    %p81 = por %p79, %p80
    %p82 = scmp.ne.s32.totalorder %s71, %s74
    %p83 = scmp.eq.s32.totalorder %s28, 3
    %p84 = por %p82, %p83
    %p85 = scmp.ne.s32.totalorder %s74, %s75
    %p86 = scmp.eq.s32.totalorder %s28, 0
    %p87 = por %p85, %p86
    %p88 = scmp.ne.s32.totalorder %s74, %s75
    %p89 = scmp.eq.s32.totalorder %s29, 3
    %p90 = por %p88, %p89
    %p92 = scmp.ne.s32.totalorder %s75, %s91
    %p93 = scmp.eq.s32.totalorder %s29, 0
    %p94 = por %p92, %p93
    %s95 = ssub.s32 %s30, %s42
    %p96 = scmp.eq.s32.totalorder %s95, 0
    %s98 = sadd.s32 %s97, 1
    %s99 = scalar_select %p96, %s97, %s98
    %p102 = pneg %p96
    %p103 = scmp.eq.s32.totalorder %s23, 3
    %p104 = por %p102, %p103
    %p105 = scmp.ne.s32.totalorder %s97, %s100
    %p106 = scmp.eq.s32.totalorder %s23, 0
    %p107 = por %p105, %p106
    %p108 = scmp.ne.s32.totalorder %s97, %s100
    %p109 = scmp.eq.s32.totalorder %s28, 3
    %p110 = por %p108, %p109
    %p111 = scmp.ne.s32.totalorder %s100, %s101
    %p112 = scmp.eq.s32.totalorder %s28, 0
    %p113 = por %p111, %p112
    %p114 = scmp.ne.s32.totalorder %s100, %s101
    %p115 = scmp.eq.s32.totalorder %s29, 3
    %p116 = por %p114, %p115
    %p118 = scmp.ne.s32.totalorder %s101, %s117
    %p119 = scmp.eq.s32.totalorder %s29, 0
    %p120 = por %p118, %p119
    %s121 = ssub.s32 %s30, %s42
    %p122 = scmp.eq.s32.totalorder %s121, 0
    %s124 = sadd.s32 %s123, 1
    %s125 = scalar_select %p122, %s123, %s124
    %p128 = pneg %p122
    %p129 = scmp.eq.s32.totalorder %s23, 3
    %p130 = por %p128, %p129
    %p131 = scmp.ne.s32.totalorder %s123, %s126
    %p132 = scmp.eq.s32.totalorder %s23, 0
    %p133 = por %p131, %p132
    %p134 = scmp.ne.s32.totalorder %s123, %s126
    %p135 = scmp.eq.s32.totalorder %s28, 3
    %p136 = por %p134, %p135
    %p137 = scmp.ne.s32.totalorder %s126, %s127
    %p138 = scmp.eq.s32.totalorder %s28, 0
    %p139 = por %p137, %p138
    %p140 = scmp.ne.s32.totalorder %s126, %s127
    %p141 = scmp.eq.s32.totalorder %s29, 3
    %p142 = por %p140, %p141
    %p144 = scmp.ne.s32.totalorder %s127, %s143
    %p145 = scmp.eq.s32.totalorder %s29, 0
    %p146 = por %p144, %p145
    %s147 = ssub.s32 %s30, %s42
    %p148 = scmp.eq.s32.totalorder %s147, 0
    %s150 = sadd.s32 %s149, 1
    %s151 = scalar_select %p148, %s149, %s150
    %p154 = pneg %p148
    %p155 = scmp.eq.s32.totalorder %s23, 3
    %p156 = por %p154, %p155
    %p157 = scmp.ne.s32.totalorder %s149, %s152
    %p158 = scmp.eq.s32.totalorder %s23, 0
    %p159 = por %p157, %p158
    %p160 = scmp.ne.s32.totalorder %s149, %s152
    %p161 = scmp.eq.s32.totalorder %s28, 3
    %p162 = por %p160, %p161
    %p163 = scmp.ne.s32.totalorder %s152, %s153
    %p164 = scmp.eq.s32.totalorder %s28, 0
    %p165 = por %p163, %p164
    %p166 = scmp.ne.s32.totalorder %s152, %s153
    %p167 = scmp.eq.s32.totalorder %s29, 3
    %p168 = por %p166, %p167
    %p170 = scmp.ne.s32.totalorder %s153, %s169
    %p171 = scmp.eq.s32.totalorder %s29, 0
    %p172 = por %p170, %p171
    %s173 = ssub.s32 %s30, %s42
    %p174 = scmp.eq.s32.totalorder %s173, 0
    %s176 = sadd.s32 %s175, 1
    %s177 = scalar_select %p174, %s175, %s176
    %p180 = pneg %p174
    %p181 = scmp.eq.s32.totalorder %s23, 3
    %p182 = por %p180, %p181
    %p183 = scmp.ne.s32.totalorder %s175, %s178
    %p184 = scmp.eq.s32.totalorder %s23, 0
    %p185 = por %p183, %p184
    %p186 = scmp.ne.s32.totalorder %s175, %s178
    %p187 = scmp.eq.s32.totalorder %s28, 3
    %p188 = por %p186, %p187
    %p189 = scmp.ne.s32.totalorder %s178, %s179
    %p190 = scmp.eq.s32.totalorder %s28, 0
    %p191 = por %p189, %p190
    %p192 = scmp.ne.s32.totalorder %s178, %s179
    %p193 = scmp.eq.s32.totalorder %s29, 3
    %p194 = por %p192, %p193
    %p196 = scmp.ne.s32.totalorder %s179, %s195
    %p197 = scmp.eq.s32.totalorder %s29, 0
    %p198 = por %p196, %p197
    %s199 = ssub.s32 %s31, %s38
    %p200 = scmp.eq.s32.totalorder %s199, 0
    %s202 = sadd.s32 %s201, 1
    %s203 = scalar_select %p200, %s201, %s202
    %p206 = pneg %p200
    %p207 = scmp.eq.s32.totalorder %s23, 3
    %p208 = por %p206, %p207
    %p209 = scmp.ne.s32.totalorder %s201, %s204
    %p210 = scmp.eq.s32.totalorder %s23, 0
    %p211 = por %p209, %p210
    %p212 = scmp.ne.s32.totalorder %s201, %s204
    %p213 = scmp.eq.s32.totalorder %s28, 3
    %p214 = por %p212, %p213
    %p215 = scmp.ne.s32.totalorder %s204, %s205
    %p216 = scmp.eq.s32.totalorder %s28, 0
    %p217 = por %p215, %p216
    %p218 = scmp.ne.s32.totalorder %s204, %s205
    %p219 = scmp.eq.s32.totalorder %s29, 3
    %p220 = por %p218, %p219
    %p222 = scmp.ne.s32.totalorder %s205, %s221
    %p223 = scmp.eq.s32.totalorder %s29, 0
    %p224 = por %p222, %p223
    %s225 = ssub.s32 %s31, %s38
    %p226 = scmp.eq.s32.totalorder %s225, 0
    %s228 = sadd.s32 %s227, 1
    %s229 = scalar_select %p226, %s227, %s228
    %p232 = pneg %p226
    %p233 = scmp.eq.s32.totalorder %s23, 3
    %p234 = por %p232, %p233
    %p235 = scmp.ne.s32.totalorder %s227, %s230
    %p236 = scmp.eq.s32.totalorder %s23, 0
    %p237 = por %p235, %p236
    %p238 = scmp.ne.s32.totalorder %s227, %s230
    %p239 = scmp.eq.s32.totalorder %s28, 3
    %p240 = por %p238, %p239
    %p241 = scmp.ne.s32.totalorder %s230, %s231
    %p242 = scmp.eq.s32.totalorder %s28, 0
    %p243 = por %p241, %p242
    %p244 = scmp.ne.s32.totalorder %s230, %s231
    %p245 = scmp.eq.s32.totalorder %s29, 3
    %p246 = por %p244, %p245
    %p248 = scmp.ne.s32.totalorder %s231, %s247
    %p249 = scmp.eq.s32.totalorder %s29, 0
    %p250 = por %p248, %p249
    %s251 = ssub.s32 %s31, %s38
    %p252 = scmp.eq.s32.totalorder %s251, 0
    %s254 = sadd.s32 %s253, 1
    %s255 = scalar_select %p252, %s253, %s254
    %p258 = pneg %p252
    %p259 = scmp.eq.s32.totalorder %s23, 3
    %p260 = por %p258, %p259
    %p261 = scmp.ne.s32.totalorder %s253, %s256
    %p262 = scmp.eq.s32.totalorder %s23, 0
    %p263 = por %p261, %p262
    %p264 = scmp.ne.s32.totalorder %s253, %s256
    %p265 = scmp.eq.s32.totalorder %s28, 3
    %p266 = por %p264, %p265
    %p267 = scmp.ne.s32.totalorder %s256, %s257
    %p268 = scmp.eq.s32.totalorder %s28, 0
    %p269 = por %p267, %p268
    %p270 = scmp.ne.s32.totalorder %s256, %s257
    %p271 = scmp.eq.s32.totalorder %s29, 3
    %p272 = por %p270, %p271
    %p274 = scmp.ne.s32.totalorder %s257, %s273
    %p275 = scmp.eq.s32.totalorder %s29, 0
    %p276 = por %p274, %p275
    %s277 = ssub.s32 %s31, %s38
    %p278 = scmp.eq.s32.totalorder %s277, 0
    %s280 = sadd.s32 %s279, 1
    %s281 = scalar_select %p278, %s279, %s280
    %p284 = pneg %p278
    %p285 = scmp.eq.s32.totalorder %s23, 3
    %p286 = por %p284, %p285
    %p287 = scmp.ne.s32.totalorder %s279, %s282
    %p288 = scmp.eq.s32.totalorder %s23, 0
    %p289 = por %p287, %p288
    %p290 = scmp.ne.s32.totalorder %s279, %s282
    %p291 = scmp.eq.s32.totalorder %s28, 3
    %p292 = por %p290, %p291
    %p293 = scmp.ne.s32.totalorder %s282, %s283
    %p294 = scmp.eq.s32.totalorder %s28, 0
    %p295 = por %p293, %p294
    %p296 = scmp.ne.s32.totalorder %s282, %s283
    %p297 = scmp.eq.s32.totalorder %s29, 3
    %p298 = por %p296, %p297
    %p300 = scmp.ne.s32.totalorder %s283, %s299
    %p301 = scmp.eq.s32.totalorder %s29, 0
    %p302 = por %p300, %p301
    %s303 = ssub.s32 %s31, %s38
    %p304 = scmp.eq.s32.totalorder %s303, 0
    %s306 = sadd.s32 %s305, 1
    %s307 = scalar_select %p304, %s305, %s306
    %p310 = pneg %p304
    %p311 = scmp.eq.s32.totalorder %s23, 3
    %p312 = por %p310, %p311
    %p313 = scmp.ne.s32.totalorder %s305, %s308
    %p314 = scmp.eq.s32.totalorder %s23, 0
    %p315 = por %p313, %p314
    %p316 = scmp.ne.s32.totalorder %s305, %s308
    %p317 = scmp.eq.s32.totalorder %s28, 3
    %p318 = por %p316, %p317
    %p319 = scmp.ne.s32.totalorder %s308, %s309
    %p320 = scmp.eq.s32.totalorder %s28, 0
    %p321 = por %p319, %p320
    %p322 = scmp.ne.s32.totalorder %s308, %s309
    %p323 = scmp.eq.s32.totalorder %s29, 3
    %p324 = por %p322, %p323
    %p326 = scmp.ne.s32.totalorder %s309, %s325
    %p327 = scmp.eq.s32.totalorder %s29, 0
    %p328 = por %p326, %p327
    %s329 = ssub.s32 %s31, %s38
    %p330 = scmp.eq.s32.totalorder %s329, 0
    %s332 = sadd.s32 %s331, 1
    %s333 = scalar_select %p330, %s331, %s332
    %p336 = pneg %p330
    %p337 = scmp.eq.s32.totalorder %s23, 3
    %p338 = por %p336, %p337
    %p339 = scmp.ne.s32.totalorder %s331, %s334
    %p340 = scmp.eq.s32.totalorder %s23, 0
    %p341 = por %p339, %p340
    %p342 = scmp.ne.s32.totalorder %s331, %s334
    %p343 = scmp.eq.s32.totalorder %s28, 3
    %p344 = por %p342, %p343
    %p345 = scmp.ne.s32.totalorder %s334, %s335
    %p346 = scmp.eq.s32.totalorder %s28, 0
    %p347 = por %p345, %p346
    %p348 = scmp.ne.s32.totalorder %s334, %s335
    %p349 = scmp.eq.s32.totalorder %s29, 3
    %p350 = por %p348, %p349
    %p352 = scmp.ne.s32.totalorder %s335, %s351
    %p353 = scmp.eq.s32.totalorder %s29, 0
    %p354 = por %p352, %p353
    %s355 = ssub.s32 %s31, %s38
    %p356 = scmp.eq.s32.totalorder %s355, 0
    %s358 = sadd.s32 %s357, 1
    %s359 = scalar_select %p356, %s357, %s358
    %p362 = pneg %p356
    %p363 = scmp.eq.s32.totalorder %s23, 3
    %p364 = por %p362, %p363
    %p365 = scmp.ne.s32.totalorder %s357, %s360
    %p366 = scmp.eq.s32.totalorder %s23, 0
    %p367 = por %p365, %p366
    %p368 = scmp.ne.s32.totalorder %s357, %s360
    %p369 = scmp.eq.s32.totalorder %s28, 3
    %p370 = por %p368, %p369
    %p371 = scmp.ne.s32.totalorder %s360, %s361
    %p372 = scmp.eq.s32.totalorder %s28, 0
    %p373 = por %p371, %p372
    %p374 = scmp.ne.s32.totalorder %s360, %s361
    %p375 = scmp.eq.s32.totalorder %s29, 3
    %p376 = por %p374, %p375
    %p378 = scmp.ne.s32.totalorder %s361, %s377
    %p379 = scmp.eq.s32.totalorder %s29, 0
    %p380 = por %p378, %p379
    %s381 = ssub.s32 %s31, %s38
    %p382 = scmp.eq.s32.totalorder %s381, 0
    %s384 = sadd.s32 %s383, 1
    %s385 = scalar_select %p382, %s383, %s384
    %p388 = pneg %p382
    %p389 = scmp.eq.s32.totalorder %s23, 3
    %p390 = por %p388, %p389
    %p391 = scmp.ne.s32.totalorder %s383, %s386
    %p392 = scmp.eq.s32.totalorder %s23, 0
    %p393 = por %p391, %p392
    %p394 = scmp.ne.s32.totalorder %s383, %s386
    %p395 = scmp.eq.s32.totalorder %s28, 3
    %p396 = por %p394, %p395
    %p397 = scmp.ne.s32.totalorder %s386, %s387
    %p398 = scmp.eq.s32.totalorder %s28, 0
    %p399 = por %p397, %p398
    %p400 = scmp.ne.s32.totalorder %s386, %s387
    %p401 = scmp.eq.s32.totalorder %s29, 3
    %p402 = por %p400, %p401
    %p404 = scmp.ne.s32.totalorder %s387, %s403
    %p405 = scmp.eq.s32.totalorder %s29, 0
    %p406 = por %p404, %p405
    %s407 = ssub.s32 %s31, %s38
    %p408 = scmp.eq.s32.totalorder %s407, 0
    %s410 = sadd.s32 %s409, 1
    %s411 = scalar_select %p408, %s409, %s410
    %p414 = pneg %p408
    %p415 = scmp.eq.s32.totalorder %s23, 3
    %p416 = por %p414, %p415
    %p417 = scmp.ne.s32.totalorder %s409, %s412
    %p418 = scmp.eq.s32.totalorder %s23, 0
    %p419 = por %p417, %p418
    %p420 = scmp.ne.s32.totalorder %s409, %s412
    %p421 = scmp.eq.s32.totalorder %s28, 3
    %p422 = por %p420, %p421
    %p423 = scmp.ne.s32.totalorder %s412, %s413
    %p424 = scmp.eq.s32.totalorder %s28, 0
    %p425 = por %p423, %p424
    %p426 = scmp.ne.s32.totalorder %s412, %s413
    %p427 = scmp.eq.s32.totalorder %s29, 3
    %p428 = por %p426, %p427
    %p430 = scmp.ne.s32.totalorder %s413, %s429
    %p431 = scmp.eq.s32.totalorder %s29, 0
    %p432 = por %p430, %p431
    %s433 = ssub.s32 %s31, %s38
    %p434 = scmp.eq.s32.totalorder %s433, 0
    %s436 = sadd.s32 %s435, 1
    %s437 = scalar_select %p434, %s435, %s436
    %p440 = pneg %p434
    %p441 = scmp.eq.s32.totalorder %s23, 3
    %p442 = por %p440, %p441
    %p443 = scmp.ne.s32.totalorder %s435, %s438
    %p444 = scmp.eq.s32.totalorder %s23, 0
    %p445 = por %p443, %p444
    %p446 = scmp.ne.s32.totalorder %s435, %s438
    %p447 = scmp.eq.s32.totalorder %s28, 3
    %p448 = por %p446, %p447
    %p449 = scmp.ne.s32.totalorder %s438, %s439
    %p450 = scmp.eq.s32.totalorder %s28, 0
    %p451 = por %p449, %p450
    %p452 = scmp.ne.s32.totalorder %s438, %s439
    %p453 = scmp.eq.s32.totalorder %s29, 3
    %p454 = por %p452, %p453
    %p456 = scmp.ne.s32.totalorder %s439, %s455
    %p457 = scmp.eq.s32.totalorder %s29, 0
    %p458 = por %p456, %p457
    %s460 = sadd.s32 %s459, 1
    %p463 = scmp.eq.s32.totalorder %s23, 3
    %p464 = scmp.ne.s32.totalorder %s459, %s461
    %p465 = scmp.eq.s32.totalorder %s23, 0
    %p466 = por %p464, %p465
    %p467 = scmp.ne.s32.totalorder %s459, %s461
    %p468 = scmp.eq.s32.totalorder %s28, 3
    %p469 = por %p467, %p468
    %p470 = scmp.ne.s32.totalorder %s461, %s462
    %p471 = scmp.eq.s32.totalorder %s28, 0
    %p472 = por %p470, %p471
    %p473 = scmp.ne.s32.totalorder %s461, %s462
    %p474 = scmp.eq.s32.totalorder %s29, 3
    %p475 = por %p473, %p474
    %p477 = scmp.ne.s32.totalorder %s462, %s476
    %p478 = scmp.eq.s32.totalorder %s29, 0
    %p479 = por %p477, %p478
    %s480 = ssub.s32 %s30, %s42
    %p481 = scmp.eq.s32.totalorder %s480, 0
    %s483 = sadd.s32 %s482, 1
    %s484 = scalar_select %p481, %s482, %s483
    %p487 = pneg %p481
    %p488 = scmp.eq.s32.totalorder %s23, 3
    %p489 = por %p487, %p488
    %p490 = scmp.ne.s32.totalorder %s482, %s485
    %p491 = scmp.eq.s32.totalorder %s23, 0
    %p492 = por %p490, %p491
    %p493 = scmp.ne.s32.totalorder %s482, %s485
    %p494 = scmp.eq.s32.totalorder %s28, 3
    %p495 = por %p493, %p494
    %p496 = scmp.ne.s32.totalorder %s485, %s486
    %p497 = scmp.eq.s32.totalorder %s28, 0
    %p498 = por %p496, %p497
    %p499 = scmp.ne.s32.totalorder %s485, %s486
    %p500 = scmp.eq.s32.totalorder %s29, 3
    %p501 = por %p499, %p500
    %p503 = scmp.ne.s32.totalorder %s486, %s502
    %p504 = scmp.eq.s32.totalorder %s29, 0
    %p505 = por %p503, %p504
    %p506 = scmp.le.s32.totalorder 1, %s23
    %p507 = scmp.lt.s32.totalorder %s23, 5
    %p508 = pnand %p506, %p507
    %p509 = pneg %p508
    // Predicated region
    $region9: #{tts_forward.4} parent=5 // pred_check
      _
    $region10: #{tts_forward.4} parent=5 // pred_check_branch
      %511 = sbr.rel (%p508) target = $region12
    $region11: #{tts_forward.4} parent=5 // pred_region
      %s512 = ssub.s32 %s23, 1
      // Predicated region
      $region13: #{tts_forward.4} parent=11 // pred_check
        %p513 = pneg %p472
      $region14: #{tts_forward.4} parent=11 // pred_check_branch
        %515 = sbr.rel (%p513) target = $region16
      $region15: #{tts_forward.4} parent=11 // pred_region
        _
      $region16: #{tts_forward.4} parent=11 // pred_fallthru
        _
    $region12: #{tts_forward.4} parent=5 // pred_fallthru
      _
    %p516 = scmp.lt.s32.totalorder %s23, 4
    // Predicated region
    $region17: #{tts_forward.4} parent=5 // pred_check
      %p517 = pneg %p516
    $region18: #{tts_forward.4} parent=5 // pred_check_branch
      %519 = sbr.rel (%p517) target = $region20
    $region19: #{tts_forward.4} parent=5 // pred_region
      // Predicated region
      $region21: #{tts_forward.4} parent=19 // pred_check
        %p520 = pneg %p55
      $region22: #{tts_forward.4} parent=19 // pred_check_branch
        %522 = sbr.rel (%p520) target = $region24
      $region23: #{tts_forward.4} parent=19 // pred_region
        %p523 = scmp.lt.s32.totalorder %s30, 1
        %s524 = scalar_select %p523, %s30, 1
        %s525 = smul.addr %s524, 8
        %s526 = scalar_lea.vmem %s0, %s525
      $region24: #{tts_forward.4} parent=19 // pred_fallthru
        _
      // Predicated region
      $region25: #{tts_forward.4} parent=19 // pred_check
        %p527 = pneg %p81
      $region26: #{tts_forward.4} parent=19 // pred_check_branch
        %529 = sbr.rel (%p527) target = $region28
      $region27: #{tts_forward.4} parent=19 // pred_region
        %p530 = scmp.lt.s32.totalorder %s30, 1
        %s531 = scalar_select %p530, %s30, 1
        %s532 = smul.addr %s531, 2
        %s533 = smul.addr %s532, 4
        %s534 = scalar_lea.vmem %s1, %s533
      $region28: #{tts_forward.4} parent=19 // pred_fallthru
        _
      // Predicated region
      $region29: #{tts_forward.4} parent=19 // pred_check
        %p535 = pneg %p107
      $region30: #{tts_forward.4} parent=19 // pred_check_branch
        %537 = sbr.rel (%p535) target = $region32
      $region31: #{tts_forward.4} parent=19 // pred_region
        %p538 = scmp.lt.s32.totalorder %s30, 1
        %s539 = scalar_select %p538, %s30, 1
        %s540 = smul.addr %s539, 8
        %s541 = scalar_lea.vmem %s2, %s540
      $region32: #{tts_forward.4} parent=19 // pred_fallthru
        _
      // Predicated region
      $region33: #{tts_forward.4} parent=19 // pred_check
        %p542 = pneg %p133
      $region34: #{tts_forward.4} parent=19 // pred_check_branch
        %544 = sbr.rel (%p542) target = $region36
      $region35: #{tts_forward.4} parent=19 // pred_region
        %p545 = scmp.lt.s32.totalorder %s30, 1
        %s546 = scalar_select %p545, %s30, 1
        %s547 = smul.addr %s546, 8
        %s548 = scalar_lea.vmem %s3, %s547
      $region36: #{tts_forward.4} parent=19 // pred_fallthru
        _
      // Predicated region
      $region37: #{tts_forward.4} parent=19 // pred_check
        %p549 = pneg %p159
      $region38: #{tts_forward.4} parent=19 // pred_check_branch
        %551 = sbr.rel (%p549) target = $region40
      $region39: #{tts_forward.4} parent=19 // pred_region
        %p552 = scmp.lt.s32.totalorder %s30, 1
        %s553 = scalar_select %p552, %s30, 1
        %s554 = smul.addr %s553, 2
        %s555 = smul.addr %s554, 8
        %s556 = scalar_lea.vmem %s4, %s555
      $region40: #{tts_forward.4} parent=19 // pred_fallthru
        _
      // Predicated region
      $region41: #{tts_forward.4} parent=19 // pred_check
        %p557 = pneg %p185
      $region42: #{tts_forward.4} parent=19 // pred_check_branch
        %559 = sbr.rel (%p557) target = $region44
      $region43: #{tts_forward.4} parent=19 // pred_region
        %p560 = scmp.lt.s32.totalorder %s30, 1
        %s561 = scalar_select %p560, %s30, 1
        %s562 = smul.addr %s561, 2
        %s563 = smul.addr %s562, 8
        %s564 = scalar_lea.vmem %s5, %s563
      $region44: #{tts_forward.4} parent=19 // pred_fallthru
        _
      // Predicated region
      $region45: #{tts_forward.4} parent=19 // pred_check
        %p565 = pneg %p211
      $region46: #{tts_forward.4} parent=19 // pred_check_branch
        %567 = sbr.rel (%p565) target = $region48
      $region47: #{tts_forward.4} parent=19 // pred_region
        %p568 = scmp.lt.s32.totalorder %s31, 1
        %s569 = scalar_select %p568, %s31, 1
        %s570 = scalar_lea.vmem %s6, %s569
      $region48: #{tts_forward.4} parent=19 // pred_fallthru
        _
      // Predicated region
      $region49: #{tts_forward.4} parent=19 // pred_check
        %p571 = pneg %p237
      $region50: #{tts_forward.4} parent=19 // pred_check_branch
        %573 = sbr.rel (%p571) target = $region52
      $region51: #{tts_forward.4} parent=19 // pred_region
        %p574 = scmp.lt.s32.totalorder %s31, 1
        %s575 = scalar_select %p574, %s31, 1
        %s576 = smul.addr %s575, 4
        %s577 = smul.addr %s576, 4
        %s578 = scalar_lea.vmem %s7, %s577
      $region52: #{tts_forward.4} parent=19 // pred_fallthru
        _
      // Predicated region
      $region53: #{tts_forward.4} parent=19 // pred_check
        %p579 = pneg %p263
      $region54: #{tts_forward.4} parent=19 // pred_check_branch
        %581 = sbr.rel (%p579) target = $region56
      $region55: #{tts_forward.4} parent=19 // pred_region
        %p582 = scmp.lt.s32.totalorder %s31, 1
        %s583 = scalar_select %p582, %s31, 1
        %s584 = smul.addr %s583, 4
        %s585 = smul.addr %s584, 4
        %s586 = scalar_lea.vmem %s8, %s585
      $region56: #{tts_forward.4} parent=19 // pred_fallthru
        _
      // Predicated region
      $region57: #{tts_forward.4} parent=19 // pred_check
        %p587 = pneg %p289
      $region58: #{tts_forward.4} parent=19 // pred_check_branch
        %589 = sbr.rel (%p587) target = $region60
      $region59: #{tts_forward.4} parent=19 // pred_region
        %p590 = scmp.lt.s32.totalorder %s31, 1
        %s591 = scalar_select %p590, %s31, 1
        %s592 = scalar_lea.vmem %s9, %s591
      $region60: #{tts_forward.4} parent=19 // pred_fallthru
        _
      // Predicated region
      $region61: #{tts_forward.4} parent=19 // pred_check
        %p593 = pneg %p315
      $region62: #{tts_forward.4} parent=19 // pred_check_branch
        %595 = sbr.rel (%p593) target = $region64
      $region63: #{tts_forward.4} parent=19 // pred_region
        %p596 = scmp.lt.s32.totalorder %s31, 1
        %s597 = scalar_select %p596, %s31, 1
        %s598 = smul.addr %s597, 4
        %s599 = smul.addr %s598, 4
        %s600 = scalar_lea.vmem %s10, %s599
      $region64: #{tts_forward.4} parent=19 // pred_fallthru
        _
      // Predicated region
      $region65: #{tts_forward.4} parent=19 // pred_check
        %p601 = pneg %p341
      $region66: #{tts_forward.4} parent=19 // pred_check_branch
        %603 = sbr.rel (%p601) target = $region68
      $region67: #{tts_forward.4} parent=19 // pred_region
        %p604 = scmp.lt.s32.totalorder %s31, 1
        %s605 = scalar_select %p604, %s31, 1
        %s606 = smul.addr %s605, 4
        %s607 = smul.addr %s606, 4
        %s608 = scalar_lea.vmem %s11, %s607
      $region68: #{tts_forward.4} parent=19 // pred_fallthru
        _
      // Predicated region
      $region69: #{tts_forward.4} parent=19 // pred_check
        %p609 = pneg %p367
      $region70: #{tts_forward.4} parent=19 // pred_check_branch
        %611 = sbr.rel (%p609) target = $region72
      $region71: #{tts_forward.4} parent=19 // pred_region
        %p612 = scmp.lt.s32.totalorder %s31, 1
        %s613 = scalar_select %p612, %s31, 1
        %s614 = smul.addr %s613, 4
        %s615 = smul.addr %s614, 4
        %s616 = scalar_lea.vmem %s12, %s615
      $region72: #{tts_forward.4} parent=19 // pred_fallthru
        _
      // Predicated region
      $region73: #{tts_forward.4} parent=19 // pred_check
        %p617 = pneg %p393
      $region74: #{tts_forward.4} parent=19 // pred_check_branch
        %619 = sbr.rel (%p617) target = $region76
      $region75: #{tts_forward.4} parent=19 // pred_region
        %p620 = scmp.lt.s32.totalorder %s31, 1
        %s621 = scalar_select %p620, %s31, 1
        %s622 = scalar_lea.vmem %s13, %s621
      $region76: #{tts_forward.4} parent=19 // pred_fallthru
        _
      // Predicated region
      $region77: #{tts_forward.4} parent=19 // pred_check
        %p623 = pneg %p419
      $region78: #{tts_forward.4} parent=19 // pred_check_branch
        %625 = sbr.rel (%p623) target = $region80
      $region79: #{tts_forward.4} parent=19 // pred_region
        %p626 = scmp.lt.s32.totalorder %s31, 1
        %s627 = scalar_select %p626, %s31, 1
        %s628 = smul.addr %s627, 4
        %s629 = smul.addr %s628, 4
        %s630 = scalar_lea.vmem %s14, %s629
      $region80: #{tts_forward.4} parent=19 // pred_fallthru
        _
      // Predicated region
      $region81: #{tts_forward.4} parent=19 // pred_check
        %p631 = pneg %p445
      $region82: #{tts_forward.4} parent=19 // pred_check_branch
        %633 = sbr.rel (%p631) target = $region84
      $region83: #{tts_forward.4} parent=19 // pred_region
        %p634 = scmp.lt.s32.totalorder %s31, 1
        %s635 = scalar_select %p634, %s31, 1
        %s636 = smul.addr %s635, 8
        %s637 = smul.addr %s636, 4
        %s638 = scalar_lea.vmem %s15, %s637
      $region84: #{tts_forward.4} parent=19 // pred_fallthru
        _
    $region20: #{tts_forward.4} parent=5 // pred_fallthru
      _
    %p639 = scmp.le.s32.totalorder 1, %s23
    %p640 = scmp.lt.s32.totalorder %s23, 5
    %p641 = pnand %p639, %p640
    %p642 = pneg %p641
    // Predicated region
    $region85: #{tts_forward.4} parent=5 // pred_check
      _
    $region86: #{tts_forward.4} parent=5 // pred_check_branch
      %644 = sbr.rel (%p641) target = $region88
    $region87: #{tts_forward.4} parent=5 // pred_region
      %s645 = ssub.s32 %s23, 1
      %p646 = scmp.lt.s32.totalorder %s32, 1
      %s647 = scalar_select %p646, %s32, 1
      %s648 = smul.addr %s647, 8
      %s649 = scalar_lea.vmem %s0, %s648
      %p650 = pneg %p61
      %p651 = pneg %p58
      %p652 = scmp.lt.s32.totalorder %s32, 1
      %s653 = scalar_select %p652, %s32, 1
      %s654 = smul.addr %s653, 2
      %s655 = smul.addr %s654, 4
      %s656 = scalar_lea.vmem %s1, %s655
      %p657 = pneg %p87
      %p658 = pneg %p84
      %p659 = scmp.lt.s32.totalorder %s32, 1
      %s660 = scalar_select %p659, %s32, 1
      %s661 = smul.addr %s660, 8
      %s662 = scalar_lea.vmem %s2, %s661
      %p663 = pneg %p113
      %p664 = pneg %p110
      %p665 = scmp.lt.s32.totalorder %s32, 1
      %s666 = scalar_select %p665, %s32, 1
      %s667 = smul.addr %s666, 8
      %s668 = scalar_lea.vmem %s3, %s667
      %p669 = pneg %p139
      %p670 = pneg %p136
      %p671 = scmp.lt.s32.totalorder %s32, 1
      %s672 = scalar_select %p671, %s32, 1
      %s673 = smul.addr %s672, 2
      %s674 = smul.addr %s673, 8
      %s675 = scalar_lea.vmem %s4, %s674
      %p676 = pneg %p165
      %p677 = pneg %p162
      %p678 = scmp.lt.s32.totalorder %s32, 1
      %s679 = scalar_select %p678, %s32, 1
      %s680 = smul.addr %s679, 2
      %s681 = smul.addr %s680, 8
      %s682 = scalar_lea.vmem %s5, %s681
      %p683 = pneg %p191
      %p684 = pneg %p188
      %p685 = scmp.lt.s32.totalorder %s33, 1
      %s686 = scalar_select %p685, %s33, 1
      %s687 = scalar_lea.vmem %s6, %s686
      %p688 = pneg %p217
      %p689 = pneg %p214
      %p690 = scmp.lt.s32.totalorder %s33, 1
      %s691 = scalar_select %p690, %s33, 1
      %s692 = smul.addr %s691, 4
      %s693 = smul.addr %s692, 4
      %s694 = scalar_lea.vmem %s7, %s693
      %p695 = pneg %p243
      %p696 = pneg %p240
      %p697 = scmp.lt.s32.totalorder %s33, 1
      %s698 = scalar_select %p697, %s33, 1
      %s699 = smul.addr %s698, 4
      %s700 = smul.addr %s699, 4
      %s701 = scalar_lea.vmem %s8, %s700
      %p702 = pneg %p269
      %p703 = pneg %p266
      %p704 = scmp.lt.s32.totalorder %s33, 1
      %s705 = scalar_select %p704, %s33, 1
      %s706 = scalar_lea.vmem %s9, %s705
      %p707 = pneg %p295
      %p708 = pneg %p292
      %p709 = scmp.lt.s32.totalorder %s33, 1
      %s710 = scalar_select %p709, %s33, 1
      %s711 = smul.addr %s710, 4
      %s712 = smul.addr %s711, 4
      %s713 = scalar_lea.vmem %s10, %s712
      %p714 = pneg %p321
      %p715 = pneg %p318
      %p716 = scmp.lt.s32.totalorder %s33, 1
      %s717 = scalar_select %p716, %s33, 1
      %s718 = smul.addr %s717, 4
      %s719 = smul.addr %s718, 4
      %s720 = scalar_lea.vmem %s11, %s719
      %p721 = pneg %p347
      %p722 = pneg %p344
      %p723 = scmp.lt.s32.totalorder %s33, 1
      %s724 = scalar_select %p723, %s33, 1
      %s725 = smul.addr %s724, 4
      %s726 = smul.addr %s725, 4
      %s727 = scalar_lea.vmem %s12, %s726
      %p728 = pneg %p373
      %p729 = pneg %p370
      %p730 = scmp.lt.s32.totalorder %s33, 1
      %s731 = scalar_select %p730, %s33, 1
      %s732 = scalar_lea.vmem %s13, %s731
      %p733 = pneg %p399
      %p734 = pneg %p396
      %p735 = scmp.lt.s32.totalorder %s33, 1
      %s736 = scalar_select %p735, %s33, 1
      %s737 = smul.addr %s736, 4
      %s738 = smul.addr %s737, 4
      %s739 = scalar_lea.vmem %s14, %s738
      %p740 = pneg %p425
      %p741 = pneg %p422
      %p742 = scmp.lt.s32.totalorder %s33, 1
      %s743 = scalar_select %p742, %s33, 1
      %s744 = smul.addr %s743, 8
      %s745 = smul.addr %s744, 4
      %s746 = scalar_lea.vmem %s15, %s745
      %p747 = pneg %p451
      %p748 = pneg %p448
      %p749 = pneg %p472
      %p750 = pneg %p469
      %p751 = pneg %p498
      %p752 = pneg %p495
      %p753 = scmp.lt.s32.totalorder %s32, 1
      %s754 = scalar_select %p753, %s32, 1
      %s755 = smul.addr %s754, 4
      %s756 = scalar_lea.vmem %s17, %s755
      %p757 = scmp.lt.s32.totalorder %s32, 1
      %s758 = scalar_select %p757, %s32, 1
      %s759 = smul.addr %s758, 8
      %s760 = scalar_lea.vmem %s0, %s759
      %p761 = scmp.lt.s32.totalorder %s32, 1
      %s762 = scalar_select %p761, %s32, 1
      %s763 = smul.addr %s762, 2
      %s764 = smul.addr %s763, 4
      %s765 = scalar_lea.vmem %s1, %s764
      %p766 = scmp.lt.s32.totalorder %s32, 1
      %s767 = scalar_select %p766, %s32, 1
      %s768 = smul.addr %s767, 8
      %s769 = scalar_lea.vmem %s2, %s768
      %p770 = scmp.lt.s32.totalorder %s32, 1
      %s771 = scalar_select %p770, %s32, 1
      %s772 = smul.addr %s771, 8
      %s773 = scalar_lea.vmem %s3, %s772
      %p774 = scmp.lt.s32.totalorder %s32, 1
      %s775 = scalar_select %p774, %s32, 1
      %s776 = smul.addr %s775, 2
      %s777 = smul.addr %s776, 8
      %s778 = scalar_lea.vmem %s4, %s777
      %p779 = scmp.lt.s32.totalorder %s32, 1
      %s780 = scalar_select %p779, %s32, 1
      %s781 = smul.addr %s780, 2
      %s782 = smul.addr %s781, 8
      %s783 = scalar_lea.vmem %s5, %s782
      %p784 = scmp.lt.s32.totalorder %s33, 1
      %s785 = scalar_select %p784, %s33, 1
      %s786 = scalar_lea.vmem %s6, %s785
      %p787 = scmp.lt.s32.totalorder %s33, 1
      %s788 = scalar_select %p787, %s33, 1
      %s789 = smul.addr %s788, 4
      %s790 = smul.addr %s789, 4
      %s791 = scalar_lea.vmem %s7, %s790
      %p792 = scmp.lt.s32.totalorder %s33, 1
      %s793 = scalar_select %p792, %s33, 1
      %s794 = smul.addr %s793, 4
      %s795 = smul.addr %s794, 4
      %s796 = scalar_lea.vmem %s8, %s795
      %p797 = scmp.lt.s32.totalorder %s33, 1
      %s798 = scalar_select %p797, %s33, 1
      %s799 = scalar_lea.vmem %s9, %s798
      %p800 = scmp.lt.s32.totalorder %s33, 1
      %s801 = scalar_select %p800, %s33, 1
      %s802 = smul.addr %s801, 4
      %s803 = smul.addr %s802, 4
      %s804 = scalar_lea.vmem %s10, %s803
      %p805 = scmp.lt.s32.totalorder %s33, 1
      %s806 = scalar_select %p805, %s33, 1
      %s807 = smul.addr %s806, 4
      %s808 = smul.addr %s807, 4
      %s809 = scalar_lea.vmem %s11, %s808
      %p810 = scmp.lt.s32.totalorder %s33, 1
      %s811 = scalar_select %p810, %s33, 1
      %s812 = smul.addr %s811, 4
      %s813 = smul.addr %s812, 4
      %s814 = scalar_lea.vmem %s12, %s813
      %p815 = scmp.lt.s32.totalorder %s33, 1
      %s816 = scalar_select %p815, %s33, 1
      %s817 = scalar_lea.vmem %s13, %s816
      %p818 = scmp.lt.s32.totalorder %s33, 1
      %s819 = scalar_select %p818, %s33, 1
      %s820 = smul.addr %s819, 4
      %s821 = smul.addr %s820, 4
      %s822 = scalar_lea.vmem %s14, %s821
      %p823 = scmp.lt.s32.totalorder %s33, 1
      %s824 = scalar_select %p823, %s33, 1
      %s825 = smul.addr %s824, 8
      %s826 = smul.addr %s825, 4
      %s827 = scalar_lea.vmem %s15, %s826
      %p828 = scmp.lt.s32.totalorder %s32, 1
      %s829 = scalar_select %p828, %s32, 1
      %s830 = smul.addr %s829, 4
      %s831 = scalar_lea.vmem %s17, %s830
      %p833 = scmp.eq.s32.totalorder %s33, 0
      // Predicated region
      $region89: #{tts_forward.4} parent=87 // pred_check
        %p834 = pneg %p833
      $region90: #{tts_forward.4} parent=87 // pred_check_branch
        %836 = sbr.rel (%p834) target = $region92
      $region91: #{tts_forward.4} parent=87 // pred_region
        %v837 = vld [vmem:[%s760] sm:$0xff]
        %vm838 = vcmask 261120
        %839 = vst.msk [vmem:[#allocation2] sm:$0xff] %vm838, %v837
      $region92: #{tts_forward.4} parent=87 // pred_fallthru
        _
      %v840 = vld [vmem:[#allocation2] sm:$0xff]
      %v841 = vld [vmem:[%s769] sm:$0xff]
      %v842 = vld [vmem:[%s773] sm:$0xff]
      %v843 = vld [vmem:[%s778] sm:$0xff]
      %v844 = vld [vmem:[%s778 + $0x8] sm:$0xff]
      %v845 = vld [vmem:[%s783] sm:$0xff]
      %v846 = vld [vmem:[%s783 + $0x8] sm:$0xff]
      %v847 = vld [vmem:[%s765] sm:$0xf]
      %v848 = vld [vmem:[%s765 + $0x4] sm:$0xf]
      %v849 = vld [vmem:[%s786] sm:$0x1]
      %v850 = vmul.f32 %v840, %v840
      %vm851 = vcmask 261120
      %v852 = vsel %vm851, %v850, 0.0
      %853 = vadd.xlane.f32.xlu0 %v852
      %v854 = vpop.xlane.xlu0 %853
      %v855 = vrcp.pop 32.0
      %v856 = vmul.f32 %v854, %v855
      %v857 = vadd.f32 %v856, 1e-05
      %v858 = vrsqrt.pop %v857
      %v859 = vmul.f32 %v840, %v858
      %v861 = vlaneseq
      %v862 = vshrl.u32 %v861, 7
      %v863 = vsub.s32 0, %v862
      %v864 = vrot.slane %v849, %v863
      %v866 = vmul.f32 %v859, %v864
      %v867 = vpack.c.bf16 %v866, %v866
      %v868 = vld [vmem:[%s791] sm:$0xf]
      %v869 = vld [vmem:[%s791 + $0x4] sm:$0xf]
      %v870 = vld [vmem:[%s791 + $0x8] sm:$0xf]
      %v871 = vld [vmem:[%s791 + $0xc] sm:$0xf]
      %v876 = vunpack.c.l.b16 %v868
      %v877 = vunpack.c.l.b16 %v869
      %v878 = vunpack.c.l.b16 %v870
      %v879 = vunpack.c.l.b16 %v871
      %v880 = vpack.c.b16 %v877, %v876
      %v881 = vpack.c.b16 %v879, %v878
      %v885 = vsel %vm851, %v867, 0
      %887 = vmatprep.subr.bf16.mxu0 0
      %888 = vmatpush1.bf16.msra.mxu0 %v880
      %889 = vmatprep.subr.bf16.mxu0 0
      %890 = vmatpush1.bf16.msra.mxu0 %v881
      %891 = vmatprep.subr.bf16.mxu0 0
      %892 = vmatpush1.bf16.msra.mxu0 0
      %893 = vmatprep.subr.bf16.mxu0 0
      %894 = vmatpush1.bf16.msra.mxu0 0
      %895 = vmatprep.subr.bf16.mxu0 0
      %896 = vmatpush1.bf16.msra.mxu0 0
      %897 = vmatprep.subr.bf16.mxu0 0
      %898 = vmatpush1.bf16.msra.mxu0 0
      %899 = vmatprep.subr.bf16.mxu0 0
      %900 = vmatpush1.bf16.msra.mxu0 0
      %901 = vmatprep.subr.bf16.mxu0 0
      %902 = vmatpush1.bf16.msra.mxu0 0
      %903 = vmatprep.subr.bf16.mxu0 0
      %904 = vmatpush1.bf16.msra.mxu0 0
      %905 = vmatprep.subr.bf16.mxu0 0
      %906 = vmatpush1.bf16.msra.mxu0 0
      %907 = vmatprep.subr.bf16.mxu0 0
      %908 = vmatpush1.bf16.msra.mxu0 0
      %909 = vmatprep.subr.bf16.mxu0 0
      %910 = vmatpush1.bf16.msra.mxu0 0
      %911 = vmatprep.subr.bf16.mxu0 0
      %912 = vmatpush1.bf16.msra.mxu0 0
      %913 = vmatprep.subr.bf16.mxu0 0
      %914 = vmatpush1.bf16.msra.mxu0 0
      %915 = vmatprep.subr.bf16.mxu0 0
      %916 = vmatpush1.bf16.msra.mxu0 0
      %917 = vmatprep.subr.bf16.mxu0 0
      %918 = vmatpush1.bf16.msra.mxu0 0
      %919 = vmatprep.mubr.bf16.mxu0 0
      %920 = vmatmul.mubr.bf16.gmra.mrb[0].mxu0 %v885
      %v921 = vpop.f32.mrb[0].mxu0
      %v922 = vadd.f32 0.0, %v921
      %v923 = vpop.f32.mrb[0].mxu0
      %v924 = vpop.f32.mrb[0].mxu0
      %v925 = vpop.f32.mrb[0].mxu0
      %926 = vdwg.mxu0
      %v927 = vlaneseq
      %v928 = vshrl.u32 %v927, 7
      %v929 = vlaneseq
      %v930 = vand.u32 %v929, 127
      %vm931 = vcmp.ge.s32.totalorder %v928, %v930
      %v932 = vsub.f32 0.0, %v922
      %934 = vrot.lane.b32.xlu0 %v932, 92
      %v935 = vpop.permute.xlu0 %934
      %938 = vrot.lane.b32.xlu0 %v922, 100
      %v939 = vpop.permute.xlu0 %938
      %vm941 = vcmask 31744
      %v942 = vsel %vm941, %v935, %v939
      %944 = vrot.lane.b32.xlu0 %v841, 32
      %v945 = vpop.permute.xlu0 %944
      %v947 = vmul.f32 %v922, %v945
      %v948 = vmul.f32 %v942, %v842
      %950 = vrot.lane.b32.xlu0 %v948, 32
      %v951 = vpop.permute.xlu0 %950
      %v953 = vadd.f32 %v947, %v951
      %954 = vrot.lane.b32.xlu0 %v932, 84
      %v955 = vpop.permute.xlu0 %954
      %957 = vrot.lane.b32.xlu0 %v922, 92
      %v958 = vpop.permute.xlu0 %957
      %v960 = vsel %vm941, %v955, %v958
      %961 = vrot.lane.b32.xlu0 %v841, 40
      %v962 = vpop.permute.xlu0 %961
      %v964 = vmul.f32 %v922, %v962
      %v965 = vmul.f32 %v960, %v842
      %967 = vrot.lane.b32.xlu0 %v965, 40
      %v968 = vpop.permute.xlu0 %967
      %v970 = vadd.f32 %v964, %v968
      %971 = vrot.lane.b32.xlu0 %v932, 124
      %v972 = vpop.permute.xlu0 %971
      %974 = vrot.lane.b32.xlu0 %v922, 4
      %v975 = vpop.permute.xlu0 %974
      %v977 = vsel %vm941, %v972, %v975
      %v978 = vmul.f32 %v922, %v841
      %v979 = vmul.f32 %v977, %v842
      %v980 = vadd.f32 %v978, %v979
      %v981 = vpack.c.bf16 %v980, %v980
      %v982 = vpack.c.bf16 %v953, %v953
      %984 = vrot.lane.b32.xlu0 %v982, 96
      %v985 = vpop.permute.xlu0 %984
      %vm986 = vcmask 64512
      %v988 = vsel %vm986, %v981, 0
      %v991 = vsel %vm986, %v985, 0
      %993 = vmatprep.subr.bf16.mxu0 0
      %994 = vmatpush1.bf16.xpose.msra.mxu0 %v991
      %995 = vmatprep.subr.bf16.mxu0 0
      %996 = vmatpush1.bf16.xpose.msra.mxu0 0
      %997 = vmatprep.subr.bf16.mxu0 0
      %998 = vmatpush1.bf16.xpose.msra.mxu0 0
      %999 = vmatprep.subr.bf16.mxu0 0
      %1000 = vmatpush1.bf16.xpose.msra.mxu0 0
      %1001 = vmatprep.subr.bf16.mxu0 0
      %1002 = vmatpush1.bf16.xpose.msra.mxu0 0
      %1003 = vmatprep.subr.bf16.mxu0 0
      %1004 = vmatpush1.bf16.xpose.msra.mxu0 0
      %1005 = vmatprep.subr.bf16.mxu0 0
      %1006 = vmatpush1.bf16.xpose.msra.mxu0 0
      %1007 = vmatprep.subr.bf16.mxu0 0
      %1008 = vmatpush1.bf16.xpose.msra.mxu0 0
      %1009 = vmatprep.subr.bf16.mxu0 0
      %1010 = vmatpush1.bf16.xpose.msra.mxu0 0
      %1011 = vmatprep.subr.bf16.mxu0 0
      %1012 = vmatpush1.bf16.xpose.msra.mxu0 0
      %1013 = vmatprep.subr.bf16.mxu0 0
      %1014 = vmatpush1.bf16.xpose.msra.mxu0 0
      %1015 = vmatprep.subr.bf16.mxu0 0
      %1016 = vmatpush1.bf16.xpose.msra.mxu0 0
      %1017 = vmatprep.subr.bf16.mxu0 0
      %1018 = vmatpush1.bf16.xpose.msra.mxu0 0
      %1019 = vmatprep.subr.bf16.mxu0 0
      %1020 = vmatpush1.bf16.xpose.msra.mxu0 0
      %1021 = vmatprep.subr.bf16.mxu0 0
      %1022 = vmatpush1.bf16.xpose.msra.mxu0 0
      %1023 = vmatprep.subr.bf16.mxu0 0
      %1024 = vmatpush1.bf16.xpose.msra.mxu0 0
      %1025 = vmatprep.mubr.bf16.mxu0 0
      %1026 = vmatmul.mubr.bf16.gmra.mrb[0].mxu0 %v988
      %v1027 = vpop.f32.mrb[0].mxu0
      %v1028 = vadd.f32 0.0, %v1027
      %v1029 = vpop.f32.mrb[0].mxu0
      %v1030 = vpop.f32.mrb[0].mxu0
      %v1031 = vpop.f32.mrb[0].mxu0
      %1032 = vdwg.mxu0
      %v1033 = vmul.f32 %v1028, 0.35355338
      %v1034 = vsel %vm931, %v1033, -1e+30
      %v1035 = vsel %vm986, %v1034, -inf
      %1036 = vmax.xlane.f32.xlu0 %v1035
      %v1037 = vpop.xlane.xlu0 %1036
      %v1038 = vsub.f32 %v1034, %v1037
      %v1039 = vmul.f32 %v1038, 1.442695
      %v1040 = vpow.pop %v1039
      %v1041 = vsel %vm986, %v1040, 0.0
      %1042 = vadd.xlane.f32.xlu0 %v1041
      %v1043 = vpop.xlane.xlu0 %1042
      %v1044 = vpack.c.bf16 %v1040, %v1040
      %v1045 = vpack.c.bf16 %v922, %v922
      %1047 = vrot.lane.b32.xlu0 %v1045, 80
      %v1048 = vpop.permute.xlu0 %1047
      %v1050 = vsel %vm986, %v1044, 0
      %vm1052 = vcmask 1043456
      %v1054 = vsel %vm1052, %v1048, 0
      %1056 = vmatprep.subr.bf16.mxu0 0
      %1057 = vmatpush1.bf16.msra.mxu0 %v1054
      %1058 = vmatprep.subr.bf16.mxu0 0
      %1059 = vmatpush1.bf16.msra.mxu0 0
      %1060 = vmatprep.subr.bf16.mxu0 0
      %1061 = vmatpush1.bf16.msra.mxu0 0
      %1062 = vmatprep.subr.bf16.mxu0 0
      %1063 = vmatpush1.bf16.msra.mxu0 0
      %1064 = vmatprep.subr.bf16.mxu0 0
      %1065 = vmatpush1.bf16.msra.mxu0 0
      %1066 = vmatprep.subr.bf16.mxu0 0
      %1067 = vmatpush1.bf16.msra.mxu0 0
      %1068 = vmatprep.subr.bf16.mxu0 0
      %1069 = vmatpush1.bf16.msra.mxu0 0
      %1070 = vmatprep.subr.bf16.mxu0 0
      %1071 = vmatpush1.bf16.msra.mxu0 0
      %1072 = vmatprep.subr.bf16.mxu0 0
      %1073 = vmatpush1.bf16.msra.mxu0 0
      %1074 = vmatprep.subr.bf16.mxu0 0
      %1075 = vmatpush1.bf16.msra.mxu0 0
      %1076 = vmatprep.subr.bf16.mxu0 0
      %1077 = vmatpush1.bf16.msra.mxu0 0
      %1078 = vmatprep.subr.bf16.mxu0 0
      %1079 = vmatpush1.bf16.msra.mxu0 0
      %1080 = vmatprep.subr.bf16.mxu0 0
      %1081 = vmatpush1.bf16.msra.mxu0 0
      %1082 = vmatprep.subr.bf16.mxu0 0
      %1083 = vmatpush1.bf16.msra.mxu0 0
      %1084 = vmatprep.subr.bf16.mxu0 0
      %1085 = vmatpush1.bf16.msra.mxu0 0
      %1086 = vmatprep.subr.bf16.mxu0 0
      %1087 = vmatpush1.bf16.msra.mxu0 0
      %1088 = vmatprep.mubr.bf16.mxu0 0
      %1089 = vmatmul.mubr.bf16.gmra.mrb[0].mxu0 %v1050
      %v1090 = vpop.f32.mrb[0].mxu0
      %v1091 = vadd.f32 0.0, %v1090
      %v1092 = vpop.f32.mrb[0].mxu0
      %v1093 = vpop.f32.mrb[0].mxu0
      %v1094 = vpop.f32.mrb[0].mxu0
      %1095 = vdwg.mxu0
      %v1096 = vrcp.pop %v1043
      %v1097 = vmul.f32 %v1091, %v1096
      %1098 = vrot.lane.b32.xlu0 %v932, 116
      %v1099 = vpop.permute.xlu0 %1098
      %1101 = vrot.lane.b32.xlu0 %v922, 124
      %v1102 = vpop.permute.xlu0 %1101
      %v1104 = vsel %vm941, %v1099, %v1102
      %1105 = vrot.lane.b32.xlu0 %v841, 8
      %v1106 = vpop.permute.xlu0 %1105
      %v1108 = vmul.f32 %v922, %v1106
      %v1109 = vmul.f32 %v1104, %v842
      %1111 = vrot.lane.b32.xlu0 %v1109, 8
      %v1112 = vpop.permute.xlu0 %1111
      %v1114 = vadd.f32 %v1108, %v1112
      %v1115 = vpack.c.bf16 %v1114, %v1114
      %1117 = vrot.lane.b32.xlu0 %v1115, 120
      %v1118 = vpop.permute.xlu0 %1117
      %v1120 = vsel %vm986, %v1118, 0
      %1122 = vmatprep.subr.bf16.mxu0 0
      %1123 = vmatpush1.bf16.xpose.msra.mxu0 %v991
      %1124 = vmatprep.subr.bf16.mxu0 0
      %1125 = vmatpush1.bf16.xpose.msra.mxu0 0
      %1126 = vmatprep.subr.bf16.mxu0 0
      %1127 = vmatpush1.bf16.xpose.msra.mxu0 0
      %1128 = vmatprep.subr.bf16.mxu0 0
      %1129 = vmatpush1.bf16.xpose.msra.mxu0 0
      %1130 = vmatprep.subr.bf16.mxu0 0
      %1131 = vmatpush1.bf16.xpose.msra.mxu0 0
      %1132 = vmatprep.subr.bf16.mxu0 0
      %1133 = vmatpush1.bf16.xpose.msra.mxu0 0
      %1134 = vmatprep.subr.bf16.mxu0 0
      %1135 = vmatpush1.bf16.xpose.msra.mxu0 0
      %1136 = vmatprep.subr.bf16.mxu0 0
      %1137 = vmatpush1.bf16.xpose.msra.mxu0 0
      %1138 = vmatprep.subr.bf16.mxu0 0
      %1139 = vmatpush1.bf16.xpose.msra.mxu0 0
      %1140 = vmatprep.subr.bf16.mxu0 0
      %1141 = vmatpush1.bf16.xpose.msra.mxu0 0
      %1142 = vmatprep.subr.bf16.mxu0 0
      %1143 = vmatpush1.bf16.xpose.msra.mxu0 0
      %1144 = vmatprep.subr.bf16.mxu0 0
      %1145 = vmatpush1.bf16.xpose.msra.mxu0 0
      %1146 = vmatprep.subr.bf16.mxu0 0
      %1147 = vmatpush1.bf16.xpose.msra.mxu0 0
      %1148 = vmatprep.subr.bf16.mxu0 0
      %1149 = vmatpush1.bf16.xpose.msra.mxu0 0
      %1150 = vmatprep.subr.bf16.mxu0 0
      %1151 = vmatpush1.bf16.xpose.msra.mxu0 0
      %1152 = vmatprep.subr.bf16.mxu0 0
      %1153 = vmatpush1.bf16.xpose.msra.mxu0 0
      %1154 = vmatprep.mubr.bf16.mxu0 0
      %1155 = vmatmul.mubr.bf16.gmra.mrb[0].mxu0 %v1120
      %v1156 = vpop.f32.mrb[0].mxu0
      %v1157 = vadd.f32 0.0, %v1156
      %v1158 = vpop.f32.mrb[0].mxu0
      %v1159 = vpop.f32.mrb[0].mxu0
      %v1160 = vpop.f32.mrb[0].mxu0
      %1161 = vdwg.mxu0
      %v1162 = vmul.f32 %v1157, 0.35355338
      %v1163 = vsel %vm931, %v1162, -1e+30
      %v1164 = vsel %vm986, %v1163, -inf
      %1165 = vmax.xlane.f32.xlu0 %v1164
      %v1166 = vpop.xlane.xlu0 %1165
      %v1167 = vsub.f32 %v1163, %v1166
      %v1168 = vmul.f32 %v1167, 1.442695
      %v1169 = vpow.pop %v1168
      %v1170 = vsel %vm986, %v1169, 0.0
      %1171 = vadd.xlane.f32.xlu0 %v1170
      %v1172 = vpop.xlane.xlu0 %1171
      %v1173 = vpack.c.bf16 %v1169, %v1169
      %v1175 = vsel %vm986, %v1173, 0
      %1177 = vmatprep.subr.bf16.mxu0 0
      %1178 = vmatpush1.bf16.msra.mxu0 %v1054
      %1179 = vmatprep.subr.bf16.mxu0 0
      %1180 = vmatpush1.bf16.msra.mxu0 0
      %1181 = vmatprep.subr.bf16.mxu0 0
      %1182 = vmatpush1.bf16.msra.mxu0 0
      %1183 = vmatprep.subr.bf16.mxu0 0
      %1184 = vmatpush1.bf16.msra.mxu0 0
      %1185 = vmatprep.subr.bf16.mxu0 0
      %1186 = vmatpush1.bf16.msra.mxu0 0
      %1187 = vmatprep.subr.bf16.mxu0 0
      %1188 = vmatpush1.bf16.msra.mxu0 0
      %1189 = vmatprep.subr.bf16.mxu0 0
      %1190 = vmatpush1.bf16.msra.mxu0 0
      %1191 = vmatprep.subr.bf16.mxu0 0
      %1192 = vmatpush1.bf16.msra.mxu0 0
      %1193 = vmatprep.subr.bf16.mxu0 0
      %1194 = vmatpush1.bf16.msra.mxu0 0
      %1195 = vmatprep.subr.bf16.mxu0 0
      %1196 = vmatpush1.bf16.msra.mxu0 0
      %1197 = vmatprep.subr.bf16.mxu0 0
      %1198 = vmatpush1.bf16.msra.mxu0 0
      %1199 = vmatprep.subr.bf16.mxu0 0
      %1200 = vmatpush1.bf16.msra.mxu0 0
      %1201 = vmatprep.subr.bf16.mxu0 0
      %1202 = vmatpush1.bf16.msra.mxu0 0
      %1203 = vmatprep.subr.bf16.mxu0 0
      %1204 = vmatpush1.bf16.msra.mxu0 0
      %1205 = vmatprep.subr.bf16.mxu0 0
      %1206 = vmatpush1.bf16.msra.mxu0 0
      %1207 = vmatprep.subr.bf16.mxu0 0
      %1208 = vmatpush1.bf16.msra.mxu0 0
      %1209 = vmatprep.mubr.bf16.mxu0 0
      %1210 = vmatmul.mubr.bf16.gmra.mrb[0].mxu0 %v1175
      %v1211 = vpop.f32.mrb[0].mxu0
      %v1212 = vadd.f32 0.0, %v1211
      %v1213 = vpop.f32.mrb[0].mxu0
      %v1214 = vpop.f32.mrb[0].mxu0
      %v1215 = vpop.f32.mrb[0].mxu0
      %1216 = vdwg.mxu0
      %v1217 = vrcp.pop %v1172
      %v1218 = vmul.f32 %v1212, %v1217
      %1219 = vrot.lane.b32.xlu0 %v932, 108
      %v1220 = vpop.permute.xlu0 %1219
      %1222 = vrot.lane.b32.xlu0 %v922, 116
      %v1223 = vpop.permute.xlu0 %1222
      %v1225 = vsel %vm941, %v1220, %v1223
      %1226 = vrot.lane.b32.xlu0 %v841, 16
      %v1227 = vpop.permute.xlu0 %1226
      %v1229 = vmul.f32 %v922, %v1227
      %v1230 = vmul.f32 %v1225, %v842
      %1232 = vrot.lane.b32.xlu0 %v1230, 16
      %v1233 = vpop.permute.xlu0 %1232
      %v1235 = vadd.f32 %v1229, %v1233
      %v1236 = vpack.c.bf16 %v1235, %v1235
      %v1237 = vpack.c.bf16 %v970, %v970
      %1239 = vrot.lane.b32.xlu0 %v1236, 112
      %v1240 = vpop.permute.xlu0 %1239
      %1242 = vrot.lane.b32.xlu0 %v1237, 88
      %v1243 = vpop.permute.xlu0 %1242
      %v1245 = vsel %vm986, %v1240, 0
      %v1248 = vsel %vm986, %v1243, 0
      %1250 = vmatprep.subr.bf16.mxu0 0
      %1251 = vmatpush1.bf16.xpose.msra.mxu0 %v1248
      %1252 = vmatprep.subr.bf16.mxu0 0
      %1253 = vmatpush1.bf16.xpose.msra.mxu0 0
      %1254 = vmatprep.subr.bf16.mxu0 0
      %1255 = vmatpush1.bf16.xpose.msra.mxu0 0
      %1256 = vmatprep.subr.bf16.mxu0 0
      %1257 = vmatpush1.bf16.xpose.msra.mxu0 0
      %1258 = vmatprep.subr.bf16.mxu0 0
      %1259 = vmatpush1.bf16.xpose.msra.mxu0 0
      %1260 = vmatprep.subr.bf16.mxu0 0
      %1261 = vmatpush1.bf16.xpose.msra.mxu0 0
      %1262 = vmatprep.subr.bf16.mxu0 0
      %1263 = vmatpush1.bf16.xpose.msra.mxu0 0
      %1264 = vmatprep.subr.bf16.mxu0 0
      %1265 = vmatpush1.bf16.xpose.msra.mxu0 0
      %1266 = vmatprep.subr.bf16.mxu0 0
      %1267 = vmatpush1.bf16.xpose.msra.mxu0 0
      %1268 = vmatprep.subr.bf16.mxu0 0
      %1269 = vmatpush1.bf16.xpose.msra.mxu0 0
      %1270 = vmatprep.subr.bf16.mxu0 0
      %1271 = vmatpush1.bf16.xpose.msra.mxu0 0
      %1272 = vmatprep.subr.bf16.mxu0 0
      %1273 = vmatpush1.bf16.xpose.msra.mxu0 0
      %1274 = vmatprep.subr.bf16.mxu0 0
      %1275 = vmatpush1.bf16.xpose.msra.mxu0 0
      %1276 = vmatprep.subr.bf16.mxu0 0
      %1277 = vmatpush1.bf16.xpose.msra.mxu0 0
      %1278 = vmatprep.subr.bf16.mxu0 0
      %1279 = vmatpush1.bf16.xpose.msra.mxu0 0
      %1280 = vmatprep.subr.bf16.mxu0 0
      %1281 = vmatpush1.bf16.xpose.msra.mxu0 0
      %1282 = vmatprep.mubr.bf16.mxu0 0
      %1283 = vmatmul.mubr.bf16.gmra.mrb[0].mxu0 %v1245
      %v1284 = vpop.f32.mrb[0].mxu0
      %v1285 = vadd.f32 0.0, %v1284
      %v1286 = vpop.f32.mrb[0].mxu0
      %v1287 = vpop.f32.mrb[0].mxu0
      %v1288 = vpop.f32.mrb[0].mxu0
      %1289 = vdwg.mxu0
      %v1290 = vmul.f32 %v1285, 0.35355338
      %v1291 = vsel %vm931, %v1290, -1e+30
      %v1292 = vsel %vm986, %v1291, -inf
      %1293 = vmax.xlane.f32.xlu0 %v1292
      %v1294 = vpop.xlane.xlu0 %1293
      %v1295 = vsub.f32 %v1291, %v1294
      %v1296 = vmul.f32 %v1295, 1.442695
      %v1297 = vpow.pop %v1296
      %v1298 = vsel %vm986, %v1297, 0.0
      %1299 = vadd.xlane.f32.xlu0 %v1298
      %v1300 = vpop.xlane.xlu0 %1299
      %v1301 = vpack.c.bf16 %v1297, %v1297
      %1302 = vrot.lane.b32.xlu0 %v1045, 72
      %v1303 = vpop.permute.xlu0 %1302
      %v1305 = vsel %vm986, %v1301, 0
      %v1308 = vsel %vm1052, %v1303, 0
      %1310 = vmatprep.subr.bf16.mxu0 0
      %1311 = vmatpush1.bf16.msra.mxu0 %v1308
      %1312 = vmatprep.subr.bf16.mxu0 0
      %1313 = vmatpush1.bf16.msra.mxu0 0
      %1314 = vmatprep.subr.bf16.mxu0 0
      %1315 = vmatpush1.bf16.msra.mxu0 0
      %1316 = vmatprep.subr.bf16.mxu0 0
      %1317 = vmatpush1.bf16.msra.mxu0 0
      %1318 = vmatprep.subr.bf16.mxu0 0
      %1319 = vmatpush1.bf16.msra.mxu0 0
      %1320 = vmatprep.subr.bf16.mxu0 0
      %1321 = vmatpush1.bf16.msra.mxu0 0
      %1322 = vmatprep.subr.bf16.mxu0 0
      %1323 = vmatpush1.bf16.msra.mxu0 0
      %1324 = vmatprep.subr.bf16.mxu0 0
      %1325 = vmatpush1.bf16.msra.mxu0 0
      %1326 = vmatprep.subr.bf16.mxu0 0
      %1327 = vmatpush1.bf16.msra.mxu0 0
      %1328 = vmatprep.subr.bf16.mxu0 0
      %1329 = vmatpush1.bf16.msra.mxu0 0
      %1330 = vmatprep.subr.bf16.mxu0 0
      %1331 = vmatpush1.bf16.msra.mxu0 0
      %1332 = vmatprep.subr.bf16.mxu0 0
      %1333 = vmatpush1.bf16.msra.mxu0 0
      %1334 = vmatprep.subr.bf16.mxu0 0
      %1335 = vmatpush1.bf16.msra.mxu0 0
      %1336 = vmatprep.subr.bf16.mxu0 0
      %1337 = vmatpush1.bf16.msra.mxu0 0
      %1338 = vmatprep.subr.bf16.mxu0 0
      %1339 = vmatpush1.bf16.msra.mxu0 0
      %1340 = vmatprep.subr.bf16.mxu0 0
      %1341 = vmatpush1.bf16.msra.mxu0 0
      %1342 = vmatprep.mubr.bf16.mxu0 0
      %1343 = vmatmul.mubr.bf16.gmra.mrb[0].mxu0 %v1305
      %v1344 = vpop.f32.mrb[0].mxu0
      %v1345 = vadd.f32 0.0, %v1344
      %v1346 = vpop.f32.mrb[0].mxu0
      %v1347 = vpop.f32.mrb[0].mxu0
      %v1348 = vpop.f32.mrb[0].mxu0
      %1349 = vdwg.mxu0
      %v1350 = vrcp.pop %v1300
      %v1351 = vmul.f32 %v1345, %v1350
      %1352 = vrot.lane.b32.xlu0 %v932, 100
      %v1353 = vpop.permute.xlu0 %1352
      %1355 = vrot.lane.b32.xlu0 %v922, 108
      %v1356 = vpop.permute.xlu0 %1355
      %v1358 = vsel %vm941, %v1353, %v1356
      %1359 = vrot.lane.b32.xlu0 %v841, 24
      %v1360 = vpop.permute.xlu0 %1359
      %v1362 = vmul.f32 %v922, %v1360
      %v1363 = vmul.f32 %v1358, %v842
      %1365 = vrot.lane.b32.xlu0 %v1363, 24
      %v1366 = vpop.permute.xlu0 %1365
      %v1368 = vadd.f32 %v1362, %v1366
      %v1369 = vpack.c.bf16 %v1368, %v1368
      %1371 = vrot.lane.b32.xlu0 %v1369, 104
      %v1372 = vpop.permute.xlu0 %1371
      %v1374 = vsel %vm986, %v1372, 0
      %1376 = vmatprep.subr.bf16.mxu0 0
      %1377 = vmatpush1.bf16.xpose.msra.mxu0 %v1248
      %1378 = vmatprep.subr.bf16.mxu0 0
      %1379 = vmatpush1.bf16.xpose.msra.mxu0 0
      %1380 = vmatprep.subr.bf16.mxu0 0
      %1381 = vmatpush1.bf16.xpose.msra.mxu0 0
      %1382 = vmatprep.subr.bf16.mxu0 0
      %1383 = vmatpush1.bf16.xpose.msra.mxu0 0
      %1384 = vmatprep.subr.bf16.mxu0 0
      %1385 = vmatpush1.bf16.xpose.msra.mxu0 0
      %1386 = vmatprep.subr.bf16.mxu0 0
      %1387 = vmatpush1.bf16.xpose.msra.mxu0 0
      %1388 = vmatprep.subr.bf16.mxu0 0
      %1389 = vmatpush1.bf16.xpose.msra.mxu0 0
      %1390 = vmatprep.subr.bf16.mxu0 0
      %1391 = vmatpush1.bf16.xpose.msra.mxu0 0
      %1392 = vmatprep.subr.bf16.mxu0 0
      %1393 = vmatpush1.bf16.xpose.msra.mxu0 0
      %1394 = vmatprep.subr.bf16.mxu0 0
      %1395 = vmatpush1.bf16.xpose.msra.mxu0 0
      %1396 = vmatprep.subr.bf16.mxu0 0
      %1397 = vmatpush1.bf16.xpose.msra.mxu0 0
      %1398 = vmatprep.subr.bf16.mxu0 0
      %1399 = vmatpush1.bf16.xpose.msra.mxu0 0
      %1400 = vmatprep.subr.bf16.mxu0 0
      %1401 = vmatpush1.bf16.xpose.msra.mxu0 0
      %1402 = vmatprep.subr.bf16.mxu0 0
      %1403 = vmatpush1.bf16.xpose.msra.mxu0 0
      %1404 = vmatprep.subr.bf16.mxu0 0
      %1405 = vmatpush1.bf16.xpose.msra.mxu0 0
      %1406 = vmatprep.subr.bf16.mxu0 0
      %1407 = vmatpush1.bf16.xpose.msra.mxu0 0
      %1408 = vmatprep.mubr.bf16.mxu0 0
      %1409 = vmatmul.mubr.bf16.gmra.mrb[0].mxu0 %v1374
      %v1410 = vpop.f32.mrb[0].mxu0
      %v1411 = vadd.f32 0.0, %v1410
      %v1412 = vpop.f32.mrb[0].mxu0
      %v1413 = vpop.f32.mrb[0].mxu0
      %v1414 = vpop.f32.mrb[0].mxu0
      %1415 = vdwg.mxu0
      %v1416 = vmul.f32 %v1411, 0.35355338
      %v1417 = vsel %vm931, %v1416, -1e+30
      %v1418 = vsel %vm986, %v1417, -inf
      %1419 = vmax.xlane.f32.xlu0 %v1418
      %v1420 = vpop.xlane.xlu0 %1419
      %v1421 = vsub.f32 %v1417, %v1420
      %v1422 = vmul.f32 %v1421, 1.442695
      %v1423 = vpow.pop %v1422
      %v1424 = vsel %vm986, %v1423, 0.0
      %1425 = vadd.xlane.f32.xlu0 %v1424
      %v1426 = vpop.xlane.xlu0 %1425
      %v1427 = vpack.c.bf16 %v1423, %v1423
      %v1429 = vsel %vm986, %v1427, 0
      %1431 = vmatprep.subr.bf16.mxu0 0
      %1432 = vmatpush1.bf16.msra.mxu0 %v1308
      %1433 = vmatprep.subr.bf16.mxu0 0
      %1434 = vmatpush1.bf16.msra.mxu0 0
      %1435 = vmatprep.subr.bf16.mxu0 0
      %1436 = vmatpush1.bf16.msra.mxu0 0
      %1437 = vmatprep.subr.bf16.mxu0 0
      %1438 = vmatpush1.bf16.msra.mxu0 0
      %1439 = vmatprep.subr.bf16.mxu0 0
      %1440 = vmatpush1.bf16.msra.mxu0 0
      %1441 = vmatprep.subr.bf16.mxu0 0
      %1442 = vmatpush1.bf16.msra.mxu0 0
      %1443 = vmatprep.subr.bf16.mxu0 0
      %1444 = vmatpush1.bf16.msra.mxu0 0
      %1445 = vmatprep.subr.bf16.mxu0 0
      %1446 = vmatpush1.bf16.msra.mxu0 0
      %1447 = vmatprep.subr.bf16.mxu0 0
      %1448 = vmatpush1.bf16.msra.mxu0 0
      %1449 = vmatprep.subr.bf16.mxu0 0
      %1450 = vmatpush1.bf16.msra.mxu0 0
      %1451 = vmatprep.subr.bf16.mxu0 0
      %1452 = vmatpush1.bf16.msra.mxu0 0
      %1453 = vmatprep.subr.bf16.mxu0 0
      %1454 = vmatpush1.bf16.msra.mxu0 0
      %1455 = vmatprep.subr.bf16.mxu0 0
      %1456 = vmatpush1.bf16.msra.mxu0 0
      %1457 = vmatprep.subr.bf16.mxu0 0
      %1458 = vmatpush1.bf16.msra.mxu0 0
      %1459 = vmatprep.subr.bf16.mxu0 0
      %1460 = vmatpush1.bf16.msra.mxu0 0
      %1461 = vmatprep.subr.bf16.mxu0 0
      %1462 = vmatpush1.bf16.msra.mxu0 0
      %1463 = vmatprep.mubr.bf16.mxu0 0
      %1464 = vmatmul.mubr.bf16.gmra.mrb[0].mxu0 %v1429
      %v1465 = vpop.f32.mrb[0].mxu0
      %v1466 = vadd.f32 0.0, %v1465
      %v1467 = vpop.f32.mrb[0].mxu0
      %v1468 = vpop.f32.mrb[0].mxu0
      %v1469 = vpop.f32.mrb[0].mxu0
      %1470 = vdwg.mxu0
      %v1471 = vrcp.pop %v1426
      %v1472 = vmul.f32 %v1466, %v1471
      %1474 = vrot.lane.b32.xlu0 %v1218, 8
      %v1475 = vpop.permute.xlu0 %1474
      %1478 = vrot.lane.b32.xlu0 %v1351, 16
      %v1479 = vpop.permute.xlu0 %1478
      %1482 = vrot.lane.b32.xlu0 %v1472, 24
      %v1483 = vpop.permute.xlu0 %1482
      %v1485 = vsel %vm986, %v1097, %v1475
      %vm1486 = vcmask 130048
      %v1487 = vsel %vm1486, %v1485, %v1479
      %vm1488 = vcmask 195584
      %v1489 = vsel %vm1488, %v1487, %v1483
      %v1490 = vpack.c.bf16 %v1489, %v1489
      %v1491 = vld [vmem:[%s796] sm:$0xf]
      %v1492 = vld [vmem:[%s796 + $0x4] sm:$0xf]
      %v1493 = vld [vmem:[%s796 + $0x8] sm:$0xf]
      %v1494 = vld [vmem:[%s796 + $0xc] sm:$0xf]
      %v1499 = vunpack.c.l.b16 %v1491
      %v1500 = vunpack.c.l.b16 %v1492
      %v1501 = vunpack.c.l.b16 %v1493
      %v1502 = vunpack.c.l.b16 %v1494
      %v1503 = vpack.c.b16 %v1500, %v1499
      %v1504 = vpack.c.b16 %v1502, %v1501
      %v1508 = vsel %vm851, %v1490, 0
      %1510 = vmatprep.subr.bf16.mxu0 0
      %1511 = vmatpush1.bf16.msra.mxu0 %v1503
      %1512 = vmatprep.subr.bf16.mxu0 0
      %1513 = vmatpush1.bf16.msra.mxu0 %v1504
      %1514 = vmatprep.subr.bf16.mxu0 0
      %1515 = vmatpush1.bf16.msra.mxu0 0
      %1516 = vmatprep.subr.bf16.mxu0 0
      %1517 = vmatpush1.bf16.msra.mxu0 0
      %1518 = vmatprep.subr.bf16.mxu0 0
      %1519 = vmatpush1.bf16.msra.mxu0 0
      %1520 = vmatprep.subr.bf16.mxu0 0
      %1521 = vmatpush1.bf16.msra.mxu0 0
      %1522 = vmatprep.subr.bf16.mxu0 0
      %1523 = vmatpush1.bf16.msra.mxu0 0
      %1524 = vmatprep.subr.bf16.mxu0 0
      %1525 = vmatpush1.bf16.msra.mxu0 0
      %1526 = vmatprep.subr.bf16.mxu0 0
      %1527 = vmatpush1.bf16.msra.mxu0 0
      %1528 = vmatprep.subr.bf16.mxu0 0
      %1529 = vmatpush1.bf16.msra.mxu0 0
      %1530 = vmatprep.subr.bf16.mxu0 0
      %1531 = vmatpush1.bf16.msra.mxu0 0
      %1532 = vmatprep.subr.bf16.mxu0 0
      %1533 = vmatpush1.bf16.msra.mxu0 0
      %1534 = vmatprep.subr.bf16.mxu0 0
      %1535 = vmatpush1.bf16.msra.mxu0 0
      %1536 = vmatprep.subr.bf16.mxu0 0
      %1537 = vmatpush1.bf16.msra.mxu0 0
      %1538 = vmatprep.subr.bf16.mxu0 0
      %1539 = vmatpush1.bf16.msra.mxu0 0
      %1540 = vmatprep.subr.bf16.mxu0 0
      %1541 = vmatpush1.bf16.msra.mxu0 0
      %1542 = vmatprep.mubr.bf16.mxu0 0
      %1543 = vmatmul.mubr.bf16.gmra.mrb[0].mxu0 %v1508
      %v1544 = vpop.f32.mrb[0].mxu0
      %v1545 = vadd.f32 0.0, %v1544
      %v1546 = vpop.f32.mrb[0].mxu0
      %v1547 = vpop.f32.mrb[0].mxu0
      %v1548 = vpop.f32.mrb[0].mxu0
      %1549 = vdwg.mxu0
      %v1550 = vadd.f32 %v840, %v1545
      %v1551 = vld [vmem:[%s799] sm:$0x1]
      %v1552 = vmul.f32 %v1550, %v1550
      %v1553 = vsel %vm851, %v1552, 0.0
      %1554 = vadd.xlane.f32.xlu0 %v1553
      %v1555 = vpop.xlane.xlu0 %1554
      %v1556 = vmul.f32 %v1555, %v855
      %v1557 = vadd.f32 %v1556, 1e-05
      %v1558 = vrsqrt.pop %v1557
      %v1559 = vmul.f32 %v1550, %v1558
      %v1561 = vlaneseq
      %v1562 = vshrl.u32 %v1561, 7
      %v1563 = vsub.s32 0, %v1562
      %v1564 = vrot.slane %v1551, %v1563
      %v1566 = vmul.f32 %v1559, %v1564
      %v1567 = vpack.c.bf16 %v1566, %v1566
      %v1568 = vld [vmem:[%s804] sm:$0xf]
      %v1569 = vld [vmem:[%s804 + $0x4] sm:$0xf]
      %v1570 = vld [vmem:[%s804 + $0x8] sm:$0xf]
      %v1571 = vld [vmem:[%s804 + $0xc] sm:$0xf]
      %v1576 = vunpack.c.l.b16 %v1568
      %v1577 = vunpack.c.l.b16 %v1569
      %v1578 = vunpack.c.l.b16 %v1570
      %v1579 = vunpack.c.l.b16 %v1571
      %v1580 = vpack.c.b16 %v1577, %v1576
      %v1581 = vpack.c.b16 %v1579, %v1578
      %v1585 = vsel %vm851, %v1567, 0
      %1587 = vmatprep.subr.bf16.mxu0 0
      %1588 = vmatpush1.bf16.msra.mxu0 %v1580
      %1589 = vmatprep.subr.bf16.mxu0 0
      %1590 = vmatpush1.bf16.msra.mxu0 %v1581
      %1591 = vmatprep.subr.bf16.mxu0 0
      %1592 = vmatpush1.bf16.msra.mxu0 0
      %1593 = vmatprep.subr.bf16.mxu0 0
      %1594 = vmatpush1.bf16.msra.mxu0 0
      %1595 = vmatprep.subr.bf16.mxu0 0
      %1596 = vmatpush1.bf16.msra.mxu0 0
      %1597 = vmatprep.subr.bf16.mxu0 0
      %1598 = vmatpush1.bf16.msra.mxu0 0
      %1599 = vmatprep.subr.bf16.mxu0 0
      %1600 = vmatpush1.bf16.msra.mxu0 0
      %1601 = vmatprep.subr.bf16.mxu0 0
      %1602 = vmatpush1.bf16.msra.mxu0 0
      %1603 = vmatprep.subr.bf16.mxu0 0
      %1604 = vmatpush1.bf16.msra.mxu0 0
      %1605 = vmatprep.subr.bf16.mxu0 0
      %1606 = vmatpush1.bf16.msra.mxu0 0
      %1607 = vmatprep.subr.bf16.mxu0 0
      %1608 = vmatpush1.bf16.msra.mxu0 0
      %1609 = vmatprep.subr.bf16.mxu0 0
      %1610 = vmatpush1.bf16.msra.mxu0 0
      %1611 = vmatprep.subr.bf16.mxu0 0
      %1612 = vmatpush1.bf16.msra.mxu0 0
      %1613 = vmatprep.subr.bf16.mxu0 0
      %1614 = vmatpush1.bf16.msra.mxu0 0
      %1615 = vmatprep.subr.bf16.mxu0 0
      %1616 = vmatpush1.bf16.msra.mxu0 0
      %1617 = vmatprep.subr.bf16.mxu0 0
      %1618 = vmatpush1.bf16.msra.mxu0 0
      %1619 = vmatprep.mubr.bf16.mxu0 0
      %1620 = vmatmul.mubr.bf16.gmra.mrb[0].mxu0 %v1585
      %v1621 = vpop.f32.mrb[0].mxu0
      %v1622 = vadd.f32 0.0, %v1621
      %v1623 = vpop.f32.mrb[0].mxu0
      %v1624 = vpop.f32.mrb[0].mxu0
      %v1625 = vpop.f32.mrb[0].mxu0
      %1626 = vdwg.mxu0
      %v1627 = vld [vmem:[%s809] sm:$0xf]
      %v1628 = vld [vmem:[%s809 + $0x4] sm:$0xf]
      %v1629 = vld [vmem:[%s809 + $0x8] sm:$0xf]
      %v1630 = vld [vmem:[%s809 + $0xc] sm:$0xf]
      %v1633 = vunpack.c.l.b16 %v847
      %v1634 = vunpack.c.l.b16 %v848
      %v1635 = vpack.c.b16 %v1634, %v1633
      %v1640 = vunpack.c.l.b16 %v1627
      %v1641 = vunpack.c.l.b16 %v1628
      %v1642 = vunpack.c.l.b16 %v1629
      %v1643 = vunpack.c.l.b16 %v1630
      %v1644 = vpack.c.b16 %v1641, %v1640
      %v1645 = vpack.c.b16 %v1643, %v1642
      %v1649 = vsel %vm851, %v1635, 0
      %1651 = vmatprep.subr.bf16.mxu0 0
      %1652 = vmatpush1.bf16.msra.mxu0 %v1644
      %1653 = vmatprep.subr.bf16.mxu0 0
      %1654 = vmatpush1.bf16.msra.mxu0 %v1645
      %1655 = vmatprep.subr.bf16.mxu0 0
      %1656 = vmatpush1.bf16.msra.mxu0 0
      %1657 = vmatprep.subr.bf16.mxu0 0
      %1658 = vmatpush1.bf16.msra.mxu0 0
      %1659 = vmatprep.subr.bf16.mxu0 0
      %1660 = vmatpush1.bf16.msra.mxu0 0
      %1661 = vmatprep.subr.bf16.mxu0 0
      %1662 = vmatpush1.bf16.msra.mxu0 0
      %1663 = vmatprep.subr.bf16.mxu0 0
      %1664 = vmatpush1.bf16.msra.mxu0 0
      %1665 = vmatprep.subr.bf16.mxu0 0
      %1666 = vmatpush1.bf16.msra.mxu0 0
      %1667 = vmatprep.subr.bf16.mxu0 0
      %1668 = vmatpush1.bf16.msra.mxu0 0
      %1669 = vmatprep.subr.bf16.mxu0 0
      %1670 = vmatpush1.bf16.msra.mxu0 0
      %1671 = vmatprep.subr.bf16.mxu0 0
      %1672 = vmatpush1.bf16.msra.mxu0 0
      %1673 = vmatprep.subr.bf16.mxu0 0
      %1674 = vmatpush1.bf16.msra.mxu0 0
      %1675 = vmatprep.subr.bf16.mxu0 0
      %1676 = vmatpush1.bf16.msra.mxu0 0
      %1677 = vmatprep.subr.bf16.mxu0 0
      %1678 = vmatpush1.bf16.msra.mxu0 0
      %1679 = vmatprep.subr.bf16.mxu0 0
      %1680 = vmatpush1.bf16.msra.mxu0 0
      %1681 = vmatprep.subr.bf16.mxu0 0
      %1682 = vmatpush1.bf16.msra.mxu0 0
      %1683 = vmatprep.mubr.bf16.mxu0 0
      %1684 = vmatmul.mubr.bf16.gmra.mrb[0].mxu0 %v1649
      %v1685 = vpop.f32.mrb[0].mxu0
      %v1686 = vadd.f32 0.0, %v1685
      %v1687 = vpop.f32.mrb[0].mxu0
      %v1688 = vpop.f32.mrb[0].mxu0
      %v1689 = vadd.f32 0.0, %v1688
      %v1690 = vpop.f32.mrb[0].mxu0
      %1691 = vdwg.mxu0
      %v1692 = vsub.f32 0.0, %v1686
      %v1693 = vsub.f32 0.0, %v1689
      %1696 = vrot.lane.b32.xlu0 %v1692, 124
      %v1697 = vpop.permute.xlu0 %1696
      %1698 = vrot.lane.b32.xlu0 %v1693, 124
      %v1699 = vpop.permute.xlu0 %1698
      %1704 = vrot.lane.b32.xlu0 %v1686, 4
      %v1705 = vpop.permute.xlu0 %1704
      %1706 = vrot.lane.b32.xlu0 %v1689, 4
      %v1707 = vpop.permute.xlu0 %1706
      %v1710 = vsel %vm941, %v1697, %v1705
      %v1711 = vsel %vm941, %v1699, %v1707
      %v1712 = vmul.f32 %v1686, %v843
      %v1713 = vmul.f32 %v1689, %v844
      %v1714 = vmul.f32 %v1710, %v845
      %v1715 = vmul.f32 %v1711, %v846
      %v1716 = vadd.f32 %v1712, %v1714
      %v1717 = vadd.f32 %v1713, %v1715
      %1718 = vrot.lane.b32.xlu0 %v1692, 116
      %v1719 = vpop.permute.xlu0 %1718
      %1720 = vrot.lane.b32.xlu0 %v1693, 116
      %v1721 = vpop.permute.xlu0 %1720
      %1724 = vrot.lane.b32.xlu0 %v1686, 124
      %v1725 = vpop.permute.xlu0 %1724
      %1726 = vrot.lane.b32.xlu0 %v1689, 124
      %v1727 = vpop.permute.xlu0 %1726
      %v1730 = vsel %vm941, %v1719, %v1725
      %v1731 = vsel %vm941, %v1721, %v1727
      %1734 = vrot.lane.b32.xlu0 %v843, 8
      %v1735 = vpop.permute.xlu0 %1734
      %1736 = vrot.lane.b32.xlu0 %v844, 8
      %v1737 = vpop.permute.xlu0 %1736
      %v1740 = vmul.f32 %v1686, %v1735
      %v1741 = vmul.f32 %v1689, %v1737
      %v1742 = vmul.f32 %v1730, %v845
      %v1743 = vmul.f32 %v1731, %v846
      %1746 = vrot.lane.b32.xlu0 %v1742, 8
      %v1747 = vpop.permute.xlu0 %1746
      %1748 = vrot.lane.b32.xlu0 %v1743, 8
      %v1749 = vpop.permute.xlu0 %1748
      %v1752 = vadd.f32 %v1740, %v1747
      %v1753 = vadd.f32 %v1741, %v1749
      %1754 = vrot.lane.b32.xlu0 %v1692, 108
      %v1755 = vpop.permute.xlu0 %1754
      %1756 = vrot.lane.b32.xlu0 %v1693, 108
      %v1757 = vpop.permute.xlu0 %1756
      %1760 = vrot.lane.b32.xlu0 %v1686, 116
      %v1761 = vpop.permute.xlu0 %1760
      %1762 = vrot.lane.b32.xlu0 %v1689, 116
      %v1763 = vpop.permute.xlu0 %1762
      %v1766 = vsel %vm941, %v1755, %v1761
      %v1767 = vsel %vm941, %v1757, %v1763
      %1768 = vrot.lane.b32.xlu0 %v843, 16
      %v1769 = vpop.permute.xlu0 %1768
      %1770 = vrot.lane.b32.xlu0 %v844, 16
      %v1771 = vpop.permute.xlu0 %1770
      %v1774 = vmul.f32 %v1686, %v1769
      %v1775 = vmul.f32 %v1689, %v1771
      %v1776 = vmul.f32 %v1766, %v845
      %v1777 = vmul.f32 %v1767, %v846
      %1780 = vrot.lane.b32.xlu0 %v1776, 16
      %v1781 = vpop.permute.xlu0 %1780
      %1782 = vrot.lane.b32.xlu0 %v1777, 16
      %v1783 = vpop.permute.xlu0 %1782
      %v1786 = vadd.f32 %v1774, %v1781
      %v1787 = vadd.f32 %v1775, %v1783
      %1788 = vrot.lane.b32.xlu0 %v1692, 100
      %v1789 = vpop.permute.xlu0 %1788
      %1790 = vrot.lane.b32.xlu0 %v1693, 100
      %v1791 = vpop.permute.xlu0 %1790
      %1794 = vrot.lane.b32.xlu0 %v1686, 108
      %v1795 = vpop.permute.xlu0 %1794
      %1796 = vrot.lane.b32.xlu0 %v1689, 108
      %v1797 = vpop.permute.xlu0 %1796
      %v1800 = vsel %vm941, %v1789, %v1795
      %v1801 = vsel %vm941, %v1791, %v1797
      %1802 = vrot.lane.b32.xlu0 %v843, 24
      %v1803 = vpop.permute.xlu0 %1802
      %1804 = vrot.lane.b32.xlu0 %v844, 24
      %v1805 = vpop.permute.xlu0 %1804
      %v1808 = vmul.f32 %v1686, %v1803
      %v1809 = vmul.f32 %v1689, %v1805
      %v1810 = vmul.f32 %v1800, %v845
      %v1811 = vmul.f32 %v1801, %v846
      %1814 = vrot.lane.b32.xlu0 %v1810, 24
      %v1815 = vpop.permute.xlu0 %1814
      %1816 = vrot.lane.b32.xlu0 %v1811, 24
      %v1817 = vpop.permute.xlu0 %1816
      %v1820 = vadd.f32 %v1808, %v1815
      %v1821 = vadd.f32 %v1809, %v1817
      %v1822 = vsub.f32 0.0, %v1622
      %1824 = vrot.lane.b32.xlu0 %v1822, 124
      %v1825 = vpop.permute.xlu0 %1824
      %1828 = vrot.lane.b32.xlu0 %v1622, 4
      %v1829 = vpop.permute.xlu0 %1828
      %v1831 = vsel %vm941, %v1825, %v1829
      %v1832 = vmul.f32 %v1622, %v841
      %v1833 = vmul.f32 %v1831, %v842
      %v1834 = vadd.f32 %v1832, %v1833
      %v1835 = vpack.c.bf16 %v1834, %v1834
      %v1836 = vpack.c.bf16 %v1717, %v1716
      %v1838 = vsel %vm986, %v1835, 0
      %v1841 = vsel %vm986, %v1836, 0
      %1843 = vmatprep.subr.bf16.mxu0 0
      %1844 = vmatpush1.bf16.xpose.msra.mxu0 %v1841
      %1845 = vmatprep.subr.bf16.mxu0 0
      %1846 = vmatpush1.bf16.xpose.msra.mxu0 0
      %1847 = vmatprep.subr.bf16.mxu0 0
      %1848 = vmatpush1.bf16.xpose.msra.mxu0 0
      %1849 = vmatprep.subr.bf16.mxu0 0
      %1850 = vmatpush1.bf16.xpose.msra.mxu0 0
      %1851 = vmatprep.subr.bf16.mxu0 0
      %1852 = vmatpush1.bf16.xpose.msra.mxu0 0
      %1853 = vmatprep.subr.bf16.mxu0 0
      %1854 = vmatpush1.bf16.xpose.msra.mxu0 0
      %1855 = vmatprep.subr.bf16.mxu0 0
      %1856 = vmatpush1.bf16.xpose.msra.mxu0 0
      %1857 = vmatprep.subr.bf16.mxu0 0
      %1858 = vmatpush1.bf16.xpose.msra.mxu0 0
      %1859 = vmatprep.subr.bf16.mxu0 0
      %1860 = vmatpush1.bf16.xpose.msra.mxu0 0
      %1861 = vmatprep.subr.bf16.mxu0 0
      %1862 = vmatpush1.bf16.xpose.msra.mxu0 0
      %1863 = vmatprep.subr.bf16.mxu0 0
      %1864 = vmatpush1.bf16.xpose.msra.mxu0 0
      %1865 = vmatprep.subr.bf16.mxu0 0
      %1866 = vmatpush1.bf16.xpose.msra.mxu0 0
      %1867 = vmatprep.subr.bf16.mxu0 0
      %1868 = vmatpush1.bf16.xpose.msra.mxu0 0
      %1869 = vmatprep.subr.bf16.mxu0 0
      %1870 = vmatpush1.bf16.xpose.msra.mxu0 0
      %1871 = vmatprep.subr.bf16.mxu0 0
      %1872 = vmatpush1.bf16.xpose.msra.mxu0 0
      %1873 = vmatprep.subr.bf16.mxu0 0
      %1874 = vmatpush1.bf16.xpose.msra.mxu0 0
      %1875 = vmatprep.mubr.bf16.mxu0 0
      %1876 = vmatmul.mubr.bf16.gmra.mrb[0].mxu0 %v1838
      %v1877 = vpop.f32.mrb[0].mxu0
      %v1878 = vadd.f32 0.0, %v1877
      %v1879 = vpop.f32.mrb[0].mxu0
      %v1880 = vpop.f32.mrb[0].mxu0
      %v1881 = vpop.f32.mrb[0].mxu0
      %1882 = vdwg.mxu0
      %v1883 = vmul.f32 %v1878, 0.35355338
      %v1884 = vsel %vm1486, %v1883, -inf
      %1885 = vmax.xlane.f32.xlu0 %v1884
      %v1886 = vpop.xlane.xlu0 %1885
      %v1887 = vsub.f32 %v1883, %v1886
      %v1888 = vmul.f32 %v1887, 1.442695
      %v1889 = vpow.pop %v1888
      %v1890 = vsel %vm1486, %v1889, 0.0
      %1891 = vadd.xlane.f32.xlu0 %v1890
      %v1892 = vpop.xlane.xlu0 %1891
      %v1893 = vpack.c.bf16 %v1889, %v1889
      %v1894 = vpack.c.bf16 %v1689, %v1686
      %1896 = vrot.lane.b32.xlu0 %v1894, 96
      %v1897 = vpop.permute.xlu0 %1896
      %v1900 = vsel %vm1486, %v1893, 0
      %1902 = vmatprep.subr.bf16.mxu0 0
      %1903 = vmatpush1.bf16.msra.mxu0 %v1897
      %1904 = vmatprep.subr.bf16.mxu0 0
      %1905 = vmatpush1.bf16.msra.mxu0 0
      %1906 = vmatprep.subr.bf16.mxu0 0
      %1907 = vmatpush1.bf16.msra.mxu0 0
      %1908 = vmatprep.subr.bf16.mxu0 0
      %1909 = vmatpush1.bf16.msra.mxu0 0
      %1910 = vmatprep.subr.bf16.mxu0 0
      %1911 = vmatpush1.bf16.msra.mxu0 0
      %1912 = vmatprep.subr.bf16.mxu0 0
      %1913 = vmatpush1.bf16.msra.mxu0 0
      %1914 = vmatprep.subr.bf16.mxu0 0
      %1915 = vmatpush1.bf16.msra.mxu0 0
      %1916 = vmatprep.subr.bf16.mxu0 0
      %1917 = vmatpush1.bf16.msra.mxu0 0
      %1918 = vmatprep.subr.bf16.mxu0 0
      %1919 = vmatpush1.bf16.msra.mxu0 0
      %1920 = vmatprep.subr.bf16.mxu0 0
      %1921 = vmatpush1.bf16.msra.mxu0 0
      %1922 = vmatprep.subr.bf16.mxu0 0
      %1923 = vmatpush1.bf16.msra.mxu0 0
      %1924 = vmatprep.subr.bf16.mxu0 0
      %1925 = vmatpush1.bf16.msra.mxu0 0
      %1926 = vmatprep.subr.bf16.mxu0 0
      %1927 = vmatpush1.bf16.msra.mxu0 0
      %1928 = vmatprep.subr.bf16.mxu0 0
      %1929 = vmatpush1.bf16.msra.mxu0 0
      %1930 = vmatprep.subr.bf16.mxu0 0
      %1931 = vmatpush1.bf16.msra.mxu0 0
      %1932 = vmatprep.subr.bf16.mxu0 0
      %1933 = vmatpush1.bf16.msra.mxu0 0
      %1934 = vmatprep.mubr.bf16.mxu0 0
      %1935 = vmatmul.mubr.bf16.gmra.mrb[0].mxu0 %v1900
      %v1936 = vpop.f32.mrb[0].mxu0
      %v1937 = vadd.f32 0.0, %v1936
      %v1938 = vpop.f32.mrb[0].mxu0
      %v1939 = vpop.f32.mrb[0].mxu0
      %v1940 = vpop.f32.mrb[0].mxu0
      %1941 = vdwg.mxu0
      %v1942 = vrcp.pop %v1892
      %v1943 = vmul.f32 %v1937, %v1942
      %1944 = vrot.lane.b32.xlu0 %v1822, 116
      %v1945 = vpop.permute.xlu0 %1944
      %1947 = vrot.lane.b32.xlu0 %v1622, 124
      %v1948 = vpop.permute.xlu0 %1947
      %v1950 = vsel %vm941, %v1945, %v1948
      %v1951 = vmul.f32 %v1622, %v1106
      %v1952 = vmul.f32 %v1950, %v842
      %1954 = vrot.lane.b32.xlu0 %v1952, 8
      %v1955 = vpop.permute.xlu0 %1954
      %v1957 = vadd.f32 %v1951, %v1955
      %v1958 = vpack.c.bf16 %v1957, %v1957
      %v1959 = vpack.c.bf16 %v1753, %v1752
      %1961 = vrot.lane.b32.xlu0 %v1958, 120
      %v1962 = vpop.permute.xlu0 %1961
      %1964 = vrot.lane.b32.xlu0 %v1959, 120
      %v1965 = vpop.permute.xlu0 %1964
      %v1967 = vsel %vm986, %v1962, 0
      %v1970 = vsel %vm986, %v1965, 0
      %1972 = vmatprep.subr.bf16.mxu0 0
      %1973 = vmatpush1.bf16.xpose.msra.mxu0 %v1970
      %1974 = vmatprep.subr.bf16.mxu0 0
      %1975 = vmatpush1.bf16.xpose.msra.mxu0 0
      %1976 = vmatprep.subr.bf16.mxu0 0
      %1977 = vmatpush1.bf16.xpose.msra.mxu0 0
      %1978 = vmatprep.subr.bf16.mxu0 0
      %1979 = vmatpush1.bf16.xpose.msra.mxu0 0
      %1980 = vmatprep.subr.bf16.mxu0 0
      %1981 = vmatpush1.bf16.xpose.msra.mxu0 0
      %1982 = vmatprep.subr.bf16.mxu0 0
      %1983 = vmatpush1.bf16.xpose.msra.mxu0 0
      %1984 = vmatprep.subr.bf16.mxu0 0
      %1985 = vmatpush1.bf16.xpose.msra.mxu0 0
      %1986 = vmatprep.subr.bf16.mxu0 0
      %1987 = vmatpush1.bf16.xpose.msra.mxu0 0
      %1988 = vmatprep.subr.bf16.mxu0 0
      %1989 = vmatpush1.bf16.xpose.msra.mxu0 0
      %1990 = vmatprep.subr.bf16.mxu0 0
      %1991 = vmatpush1.bf16.xpose.msra.mxu0 0
      %1992 = vmatprep.subr.bf16.mxu0 0
      %1993 = vmatpush1.bf16.xpose.msra.mxu0 0
      %1994 = vmatprep.subr.bf16.mxu0 0
      %1995 = vmatpush1.bf16.xpose.msra.mxu0 0
      %1996 = vmatprep.subr.bf16.mxu0 0
      %1997 = vmatpush1.bf16.xpose.msra.mxu0 0
      %1998 = vmatprep.subr.bf16.mxu0 0
      %1999 = vmatpush1.bf16.xpose.msra.mxu0 0
      %2000 = vmatprep.subr.bf16.mxu0 0
      %2001 = vmatpush1.bf16.xpose.msra.mxu0 0
      %2002 = vmatprep.subr.bf16.mxu0 0
      %2003 = vmatpush1.bf16.xpose.msra.mxu0 0
      %2004 = vmatprep.mubr.bf16.mxu0 0
      %2005 = vmatmul.mubr.bf16.gmra.mrb[0].mxu0 %v1967
      %v2006 = vpop.f32.mrb[0].mxu0
      %v2007 = vadd.f32 0.0, %v2006
      %v2008 = vpop.f32.mrb[0].mxu0
      %v2009 = vpop.f32.mrb[0].mxu0
      %v2010 = vpop.f32.mrb[0].mxu0
      %2011 = vdwg.mxu0
      %v2012 = vmul.f32 %v2007, 0.35355338
      %v2013 = vsel %vm1486, %v2012, -inf
      %2014 = vmax.xlane.f32.xlu0 %v2013
      %v2015 = vpop.xlane.xlu0 %2014
      %v2016 = vsub.f32 %v2012, %v2015
      %v2017 = vmul.f32 %v2016, 1.442695
      %v2018 = vpow.pop %v2017
      %v2019 = vsel %vm1486, %v2018, 0.0
      %2020 = vadd.xlane.f32.xlu0 %v2019
      %v2021 = vpop.xlane.xlu0 %2020
      %v2022 = vpack.c.bf16 %v2018, %v2018
      %2023 = vrot.lane.b32.xlu0 %v1894, 88
      %v2024 = vpop.permute.xlu0 %2023
      %v2027 = vsel %vm1486, %v2022, 0
      %2029 = vmatprep.subr.bf16.mxu0 0
      %2030 = vmatpush1.bf16.msra.mxu0 %v2024
      %2031 = vmatprep.subr.bf16.mxu0 0
      %2032 = vmatpush1.bf16.msra.mxu0 0
      %2033 = vmatprep.subr.bf16.mxu0 0
      %2034 = vmatpush1.bf16.msra.mxu0 0
      %2035 = vmatprep.subr.bf16.mxu0 0
      %2036 = vmatpush1.bf16.msra.mxu0 0
      %2037 = vmatprep.subr.bf16.mxu0 0
      %2038 = vmatpush1.bf16.msra.mxu0 0
      %2039 = vmatprep.subr.bf16.mxu0 0
      %2040 = vmatpush1.bf16.msra.mxu0 0
      %2041 = vmatprep.subr.bf16.mxu0 0
      %2042 = vmatpush1.bf16.msra.mxu0 0
      %2043 = vmatprep.subr.bf16.mxu0 0
      %2044 = vmatpush1.bf16.msra.mxu0 0
      %2045 = vmatprep.subr.bf16.mxu0 0
      %2046 = vmatpush1.bf16.msra.mxu0 0
      %2047 = vmatprep.subr.bf16.mxu0 0
      %2048 = vmatpush1.bf16.msra.mxu0 0
      %2049 = vmatprep.subr.bf16.mxu0 0
      %2050 = vmatpush1.bf16.msra.mxu0 0
      %2051 = vmatprep.subr.bf16.mxu0 0
      %2052 = vmatpush1.bf16.msra.mxu0 0
      %2053 = vmatprep.subr.bf16.mxu0 0
      %2054 = vmatpush1.bf16.msra.mxu0 0
      %2055 = vmatprep.subr.bf16.mxu0 0
      %2056 = vmatpush1.bf16.msra.mxu0 0
      %2057 = vmatprep.subr.bf16.mxu0 0
      %2058 = vmatpush1.bf16.msra.mxu0 0
      %2059 = vmatprep.subr.bf16.mxu0 0
      %2060 = vmatpush1.bf16.msra.mxu0 0
      %2061 = vmatprep.mubr.bf16.mxu0 0
      %2062 = vmatmul.mubr.bf16.gmra.mrb[0].mxu0 %v2027
      %v2063 = vpop.f32.mrb[0].mxu0
      %v2064 = vadd.f32 0.0, %v2063
      %v2065 = vpop.f32.mrb[0].mxu0
      %v2066 = vpop.f32.mrb[0].mxu0
      %v2067 = vpop.f32.mrb[0].mxu0
      %2068 = vdwg.mxu0
      %v2069 = vrcp.pop %v2021
      %v2070 = vmul.f32 %v2064, %v2069
      %2071 = vrot.lane.b32.xlu0 %v1822, 108
      %v2072 = vpop.permute.xlu0 %2071
      %2074 = vrot.lane.b32.xlu0 %v1622, 116
      %v2075 = vpop.permute.xlu0 %2074
      %v2077 = vsel %vm941, %v2072, %v2075
      %v2078 = vmul.f32 %v1622, %v1227
      %v2079 = vmul.f32 %v2077, %v842
      %2081 = vrot.lane.b32.xlu0 %v2079, 16
      %v2082 = vpop.permute.xlu0 %2081
      %v2084 = vadd.f32 %v2078, %v2082
      %v2085 = vpack.c.bf16 %v2084, %v2084
      %v2086 = vpack.c.bf16 %v1787, %v1786
      %2088 = vrot.lane.b32.xlu0 %v2085, 112
      %v2089 = vpop.permute.xlu0 %2088
      %2091 = vrot.lane.b32.xlu0 %v2086, 112
      %v2092 = vpop.permute.xlu0 %2091
      %v2094 = vsel %vm986, %v2089, 0
      %v2097 = vsel %vm986, %v2092, 0
      %2099 = vmatprep.subr.bf16.mxu0 0
      %2100 = vmatpush1.bf16.xpose.msra.mxu0 %v2097
      %2101 = vmatprep.subr.bf16.mxu0 0
      %2102 = vmatpush1.bf16.xpose.msra.mxu0 0
      %2103 = vmatprep.subr.bf16.mxu0 0
      %2104 = vmatpush1.bf16.xpose.msra.mxu0 0
      %2105 = vmatprep.subr.bf16.mxu0 0
      %2106 = vmatpush1.bf16.xpose.msra.mxu0 0
      %2107 = vmatprep.subr.bf16.mxu0 0
      %2108 = vmatpush1.bf16.xpose.msra.mxu0 0
      %2109 = vmatprep.subr.bf16.mxu0 0
      %2110 = vmatpush1.bf16.xpose.msra.mxu0 0
      %2111 = vmatprep.subr.bf16.mxu0 0
      %2112 = vmatpush1.bf16.xpose.msra.mxu0 0
      %2113 = vmatprep.subr.bf16.mxu0 0
      %2114 = vmatpush1.bf16.xpose.msra.mxu0 0
      %2115 = vmatprep.subr.bf16.mxu0 0
      %2116 = vmatpush1.bf16.xpose.msra.mxu0 0
      %2117 = vmatprep.subr.bf16.mxu0 0
      %2118 = vmatpush1.bf16.xpose.msra.mxu0 0
      %2119 = vmatprep.subr.bf16.mxu0 0
      %2120 = vmatpush1.bf16.xpose.msra.mxu0 0
      %2121 = vmatprep.subr.bf16.mxu0 0
      %2122 = vmatpush1.bf16.xpose.msra.mxu0 0
      %2123 = vmatprep.subr.bf16.mxu0 0
      %2124 = vmatpush1.bf16.xpose.msra.mxu0 0
      %2125 = vmatprep.subr.bf16.mxu0 0
      %2126 = vmatpush1.bf16.xpose.msra.mxu0 0
      %2127 = vmatprep.subr.bf16.mxu0 0
      %2128 = vmatpush1.bf16.xpose.msra.mxu0 0
      %2129 = vmatprep.subr.bf16.mxu0 0
      %2130 = vmatpush1.bf16.xpose.msra.mxu0 0
      %2131 = vmatprep.mubr.bf16.mxu0 0
      %2132 = vmatmul.mubr.bf16.gmra.mrb[0].mxu0 %v2094
      %v2133 = vpop.f32.mrb[0].mxu0
      %v2134 = vadd.f32 0.0, %v2133
      %v2135 = vpop.f32.mrb[0].mxu0
      %v2136 = vpop.f32.mrb[0].mxu0
      %v2137 = vpop.f32.mrb[0].mxu0
      %2138 = vdwg.mxu0
      %v2139 = vmul.f32 %v2134, 0.35355338
      %v2140 = vsel %vm1486, %v2139, -inf
      %2141 = vmax.xlane.f32.xlu0 %v2140
      %v2142 = vpop.xlane.xlu0 %2141
      %v2143 = vsub.f32 %v2139, %v2142
      %v2144 = vmul.f32 %v2143, 1.442695
      %v2145 = vpow.pop %v2144
      %v2146 = vsel %vm1486, %v2145, 0.0
      %2147 = vadd.xlane.f32.xlu0 %v2146
      %v2148 = vpop.xlane.xlu0 %2147
      %v2149 = vpack.c.bf16 %v2145, %v2145
      %2150 = vrot.lane.b32.xlu0 %v1894, 80
      %v2151 = vpop.permute.xlu0 %2150
      %v2154 = vsel %vm1486, %v2149, 0
      %2156 = vmatprep.subr.bf16.mxu0 0
      %2157 = vmatpush1.bf16.msra.mxu0 %v2151
      %2158 = vmatprep.subr.bf16.mxu0 0
      %2159 = vmatpush1.bf16.msra.mxu0 0
      %2160 = vmatprep.subr.bf16.mxu0 0
      %2161 = vmatpush1.bf16.msra.mxu0 0
      %2162 = vmatprep.subr.bf16.mxu0 0
      %2163 = vmatpush1.bf16.msra.mxu0 0
      %2164 = vmatprep.subr.bf16.mxu0 0
      %2165 = vmatpush1.bf16.msra.mxu0 0
      %2166 = vmatprep.subr.bf16.mxu0 0
      %2167 = vmatpush1.bf16.msra.mxu0 0
      %2168 = vmatprep.subr.bf16.mxu0 0
      %2169 = vmatpush1.bf16.msra.mxu0 0
      %2170 = vmatprep.subr.bf16.mxu0 0
      %2171 = vmatpush1.bf16.msra.mxu0 0
      %2172 = vmatprep.subr.bf16.mxu0 0
      %2173 = vmatpush1.bf16.msra.mxu0 0
      %2174 = vmatprep.subr.bf16.mxu0 0
      %2175 = vmatpush1.bf16.msra.mxu0 0
      %2176 = vmatprep.subr.bf16.mxu0 0
      %2177 = vmatpush1.bf16.msra.mxu0 0
      %2178 = vmatprep.subr.bf16.mxu0 0
      %2179 = vmatpush1.bf16.msra.mxu0 0
      %2180 = vmatprep.subr.bf16.mxu0 0
      %2181 = vmatpush1.bf16.msra.mxu0 0
      %2182 = vmatprep.subr.bf16.mxu0 0
      %2183 = vmatpush1.bf16.msra.mxu0 0
      %2184 = vmatprep.subr.bf16.mxu0 0
      %2185 = vmatpush1.bf16.msra.mxu0 0
      %2186 = vmatprep.subr.bf16.mxu0 0
      %2187 = vmatpush1.bf16.msra.mxu0 0
      %2188 = vmatprep.mubr.bf16.mxu0 0
      %2189 = vmatmul.mubr.bf16.gmra.mrb[0].mxu0 %v2154
      %v2190 = vpop.f32.mrb[0].mxu0
      %v2191 = vadd.f32 0.0, %v2190
      %v2192 = vpop.f32.mrb[0].mxu0
      %v2193 = vpop.f32.mrb[0].mxu0
      %v2194 = vpop.f32.mrb[0].mxu0
      %2195 = vdwg.mxu0
      %v2196 = vrcp.pop %v2148
      %v2197 = vmul.f32 %v2191, %v2196
      %2198 = vrot.lane.b32.xlu0 %v1822, 100
      %v2199 = vpop.permute.xlu0 %2198
      %2201 = vrot.lane.b32.xlu0 %v1622, 108
      %v2202 = vpop.permute.xlu0 %2201
      %v2204 = vsel %vm941, %v2199, %v2202
      %v2205 = vmul.f32 %v1622, %v1360
      %v2206 = vmul.f32 %v2204, %v842
      %2208 = vrot.lane.b32.xlu0 %v2206, 24
      %v2209 = vpop.permute.xlu0 %2208
      %v2211 = vadd.f32 %v2205, %v2209
      %v2212 = vpack.c.bf16 %v2211, %v2211
      %v2213 = vpack.c.bf16 %v1821, %v1820
      %2215 = vrot.lane.b32.xlu0 %v2212, 104
      %v2216 = vpop.permute.xlu0 %2215
      %2218 = vrot.lane.b32.xlu0 %v2213, 104
      %v2219 = vpop.permute.xlu0 %2218
      %v2221 = vsel %vm986, %v2216, 0
      %v2224 = vsel %vm986, %v2219, 0
      %2226 = vmatprep.subr.bf16.mxu0 0
      %2227 = vmatpush1.bf16.xpose.msra.mxu0 %v2224
      %2228 = vmatprep.subr.bf16.mxu0 0
      %2229 = vmatpush1.bf16.xpose.msra.mxu0 0
      %2230 = vmatprep.subr.bf16.mxu0 0
      %2231 = vmatpush1.bf16.xpose.msra.mxu0 0
      %2232 = vmatprep.subr.bf16.mxu0 0
      %2233 = vmatpush1.bf16.xpose.msra.mxu0 0
      %2234 = vmatprep.subr.bf16.mxu0 0
      %2235 = vmatpush1.bf16.xpose.msra.mxu0 0
      %2236 = vmatprep.subr.bf16.mxu0 0
      %2237 = vmatpush1.bf16.xpose.msra.mxu0 0
      %2238 = vmatprep.subr.bf16.mxu0 0
      %2239 = vmatpush1.bf16.xpose.msra.mxu0 0
      %2240 = vmatprep.subr.bf16.mxu0 0
      %2241 = vmatpush1.bf16.xpose.msra.mxu0 0
      %2242 = vmatprep.subr.bf16.mxu0 0
      %2243 = vmatpush1.bf16.xpose.msra.mxu0 0
      %2244 = vmatprep.subr.bf16.mxu0 0
      %2245 = vmatpush1.bf16.xpose.msra.mxu0 0
      %2246 = vmatprep.subr.bf16.mxu0 0
      %2247 = vmatpush1.bf16.xpose.msra.mxu0 0
      %2248 = vmatprep.subr.bf16.mxu0 0
      %2249 = vmatpush1.bf16.xpose.msra.mxu0 0
      %2250 = vmatprep.subr.bf16.mxu0 0
      %2251 = vmatpush1.bf16.xpose.msra.mxu0 0
      %2252 = vmatprep.subr.bf16.mxu0 0
      %2253 = vmatpush1.bf16.xpose.msra.mxu0 0
      %2254 = vmatprep.subr.bf16.mxu0 0
      %2255 = vmatpush1.bf16.xpose.msra.mxu0 0
      %2256 = vmatprep.subr.bf16.mxu0 0
      %2257 = vmatpush1.bf16.xpose.msra.mxu0 0
      %2258 = vmatprep.mubr.bf16.mxu0 0
      %2259 = vmatmul.mubr.bf16.gmra.mrb[0].mxu0 %v2221
      %v2260 = vpop.f32.mrb[0].mxu0
      %v2261 = vadd.f32 0.0, %v2260
      %v2262 = vpop.f32.mrb[0].mxu0
      %v2263 = vpop.f32.mrb[0].mxu0
      %v2264 = vpop.f32.mrb[0].mxu0
      %2265 = vdwg.mxu0
      %v2266 = vmul.f32 %v2261, 0.35355338
      %v2267 = vsel %vm1486, %v2266, -inf
      %2268 = vmax.xlane.f32.xlu0 %v2267
      %v2269 = vpop.xlane.xlu0 %2268
      %v2270 = vsub.f32 %v2266, %v2269
      %v2271 = vmul.f32 %v2270, 1.442695
      %v2272 = vpow.pop %v2271
      %v2273 = vsel %vm1486, %v2272, 0.0
      %2274 = vadd.xlane.f32.xlu0 %v2273
      %v2275 = vpop.xlane.xlu0 %2274
      %v2276 = vpack.c.bf16 %v2272, %v2272
      %2277 = vrot.lane.b32.xlu0 %v1894, 72
      %v2278 = vpop.permute.xlu0 %2277
      %v2281 = vsel %vm1486, %v2276, 0
      %2283 = vmatprep.subr.bf16.mxu0 0
      %2284 = vmatpush1.bf16.msra.mxu0 %v2278
      %2285 = vmatprep.subr.bf16.mxu0 0
      %2286 = vmatpush1.bf16.msra.mxu0 0
      %2287 = vmatprep.subr.bf16.mxu0 0
      %2288 = vmatpush1.bf16.msra.mxu0 0
      %2289 = vmatprep.subr.bf16.mxu0 0
      %2290 = vmatpush1.bf16.msra.mxu0 0
      %2291 = vmatprep.subr.bf16.mxu0 0
      %2292 = vmatpush1.bf16.msra.mxu0 0
      %2293 = vmatprep.subr.bf16.mxu0 0
      %2294 = vmatpush1.bf16.msra.mxu0 0
      %2295 = vmatprep.subr.bf16.mxu0 0
      %2296 = vmatpush1.bf16.msra.mxu0 0
      %2297 = vmatprep.subr.bf16.mxu0 0
      %2298 = vmatpush1.bf16.msra.mxu0 0
      %2299 = vmatprep.subr.bf16.mxu0 0
      %2300 = vmatpush1.bf16.msra.mxu0 0
      %2301 = vmatprep.subr.bf16.mxu0 0
      %2302 = vmatpush1.bf16.msra.mxu0 0
      %2303 = vmatprep.subr.bf16.mxu0 0
      %2304 = vmatpush1.bf16.msra.mxu0 0
      %2305 = vmatprep.subr.bf16.mxu0 0
      %2306 = vmatpush1.bf16.msra.mxu0 0
      %2307 = vmatprep.subr.bf16.mxu0 0
      %2308 = vmatpush1.bf16.msra.mxu0 0
      %2309 = vmatprep.subr.bf16.mxu0 0
      %2310 = vmatpush1.bf16.msra.mxu0 0
      %2311 = vmatprep.subr.bf16.mxu0 0
      %2312 = vmatpush1.bf16.msra.mxu0 0
      %2313 = vmatprep.subr.bf16.mxu0 0
      %2314 = vmatpush1.bf16.msra.mxu0 0
      %2315 = vmatprep.mubr.bf16.mxu0 0
      %2316 = vmatmul.mubr.bf16.gmra.mrb[0].mxu0 %v2281
      %v2317 = vpop.f32.mrb[0].mxu0
      %v2318 = vadd.f32 0.0, %v2317
      %v2319 = vpop.f32.mrb[0].mxu0
      %v2320 = vpop.f32.mrb[0].mxu0
      %v2321 = vpop.f32.mrb[0].mxu0
      %2322 = vdwg.mxu0
      %v2323 = vrcp.pop %v2275
      %v2324 = vmul.f32 %v2318, %v2323
      %2326 = vrot.lane.b32.xlu0 %v2070, 8
      %v2327 = vpop.permute.xlu0 %2326
      %2330 = vrot.lane.b32.xlu0 %v2197, 16
      %v2331 = vpop.permute.xlu0 %2330
      %2334 = vrot.lane.b32.xlu0 %v2324, 24
      %v2335 = vpop.permute.xlu0 %2334
      %v2337 = vsel %vm986, %v1943, %v2327
      %v2338 = vsel %vm1486, %v2337, %v2331
      %v2339 = vsel %vm1488, %v2338, %v2335
      %v2340 = vpack.c.bf16 %v2339, %v2339
      %v2341 = vld [vmem:[%s814] sm:$0xf]
      %v2342 = vld [vmem:[%s814 + $0x4] sm:$0xf]
      %v2343 = vld [vmem:[%s814 + $0x8] sm:$0xf]
      %v2344 = vld [vmem:[%s814 + $0xc] sm:$0xf]
      %v2349 = vunpack.c.l.b16 %v2341
      %v2350 = vunpack.c.l.b16 %v2342
      %v2351 = vunpack.c.l.b16 %v2343
      %v2352 = vunpack.c.l.b16 %v2344
      %v2353 = vpack.c.b16 %v2350, %v2349
      %v2354 = vpack.c.b16 %v2352, %v2351
      %v2358 = vsel %vm851, %v2340, 0
      %2360 = vmatprep.subr.bf16.mxu0 0
      %2361 = vmatpush1.bf16.msra.mxu0 %v2353
      %2362 = vmatprep.subr.bf16.mxu0 0
      %2363 = vmatpush1.bf16.msra.mxu0 %v2354
      %2364 = vmatprep.subr.bf16.mxu0 0
      %2365 = vmatpush1.bf16.msra.mxu0 0
      %2366 = vmatprep.subr.bf16.mxu0 0
      %2367 = vmatpush1.bf16.msra.mxu0 0
      %2368 = vmatprep.subr.bf16.mxu0 0
      %2369 = vmatpush1.bf16.msra.mxu0 0
      %2370 = vmatprep.subr.bf16.mxu0 0
      %2371 = vmatpush1.bf16.msra.mxu0 0
      %2372 = vmatprep.subr.bf16.mxu0 0
      %2373 = vmatpush1.bf16.msra.mxu0 0
      %2374 = vmatprep.subr.bf16.mxu0 0
      %2375 = vmatpush1.bf16.msra.mxu0 0
      %2376 = vmatprep.subr.bf16.mxu0 0
      %2377 = vmatpush1.bf16.msra.mxu0 0
      %2378 = vmatprep.subr.bf16.mxu0 0
      %2379 = vmatpush1.bf16.msra.mxu0 0
      %2380 = vmatprep.subr.bf16.mxu0 0
      %2381 = vmatpush1.bf16.msra.mxu0 0
      %2382 = vmatprep.subr.bf16.mxu0 0
      %2383 = vmatpush1.bf16.msra.mxu0 0
      %2384 = vmatprep.subr.bf16.mxu0 0
      %2385 = vmatpush1.bf16.msra.mxu0 0
      %2386 = vmatprep.subr.bf16.mxu0 0
      %2387 = vmatpush1.bf16.msra.mxu0 0
      %2388 = vmatprep.subr.bf16.mxu0 0
      %2389 = vmatpush1.bf16.msra.mxu0 0
      %2390 = vmatprep.subr.bf16.mxu0 0
      %2391 = vmatpush1.bf16.msra.mxu0 0
      %2392 = vmatprep.mubr.bf16.mxu0 0
      %2393 = vmatmul.mubr.bf16.gmra.mrb[0].mxu0 %v2358
      %v2394 = vpop.f32.mrb[0].mxu0
      %v2395 = vadd.f32 0.0, %v2394
      %v2396 = vpop.f32.mrb[0].mxu0
      %v2397 = vpop.f32.mrb[0].mxu0
      %v2398 = vpop.f32.mrb[0].mxu0
      %2399 = vdwg.mxu0
      %v2400 = vadd.f32 %v1550, %v2395
      %v2401 = vld [vmem:[%s817] sm:$0x1]
      %v2402 = vmul.f32 %v2400, %v2400
      %v2403 = vsel %vm851, %v2402, 0.0
      %2404 = vadd.xlane.f32.xlu0 %v2403
      %v2405 = vpop.xlane.xlu0 %2404
      %v2406 = vmul.f32 %v2405, %v855
      %v2407 = vadd.f32 %v2406, 1e-05
      %v2408 = vrsqrt.pop %v2407
      %v2409 = vmul.f32 %v2400, %v2408
      %v2411 = vlaneseq
      %v2412 = vshrl.u32 %v2411, 7
      %v2413 = vsub.s32 0, %v2412
      %v2414 = vrot.slane %v2401, %v2413
      %v2416 = vmul.f32 %v2409, %v2414
      %v2417 = vld [vmem:[%s822] sm:$0xf]
      %v2418 = vld [vmem:[%s822 + $0x4] sm:$0xf]
      %v2419 = vld [vmem:[%s822 + $0x8] sm:$0xf]
      %v2420 = vld [vmem:[%s822 + $0xc] sm:$0xf]
      %v2421 = vld [vmem:[%s827] sm:$0xf]
      %v2422 = vld [vmem:[%s827 + $0x4] sm:$0xf]
      %v2423 = vld [vmem:[%s827 + $0x8] sm:$0xf]
      %v2424 = vld [vmem:[%s827 + $0xc] sm:$0xf]
      %v2425 = vld [vmem:[%s827 + $0x10] sm:$0xf]
      %v2426 = vld [vmem:[%s827 + $0x14] sm:$0xf]
      %v2427 = vld [vmem:[%s827 + $0x18] sm:$0xf]
      %v2428 = vld [vmem:[%s827 + $0x1c] sm:$0xf]
      %v2429 = vpack.c.bf16 %v2416, %v2416
      %v2434 = vunpack.c.l.b16 %v2417
      %v2435 = vunpack.c.l.b16 %v2418
      %v2436 = vunpack.c.l.b16 %v2419
      %v2437 = vunpack.c.l.b16 %v2420
      %v2438 = vpack.c.b16 %v2435, %v2434
      %v2439 = vpack.c.b16 %v2437, %v2436
      %v2443 = vsel %vm851, %v2429, 0
      %2445 = vmatprep.subr.bf16.mxu0 0
      %2446 = vmatpush1.bf16.msra.mxu0 %v2438
      %2447 = vmatprep.subr.bf16.mxu0 0
      %2448 = vmatpush1.bf16.msra.mxu0 %v2439
      %2449 = vmatprep.subr.bf16.mxu0 0
      %2450 = vmatpush1.bf16.msra.mxu0 0
      %2451 = vmatprep.subr.bf16.mxu0 0
      %2452 = vmatpush1.bf16.msra.mxu0 0
      %2453 = vmatprep.subr.bf16.mxu0 0
      %2454 = vmatpush1.bf16.msra.mxu0 0
      %2455 = vmatprep.subr.bf16.mxu0 0
      %2456 = vmatpush1.bf16.msra.mxu0 0
      %2457 = vmatprep.subr.bf16.mxu0 0
      %2458 = vmatpush1.bf16.msra.mxu0 0
      %2459 = vmatprep.subr.bf16.mxu0 0
      %2460 = vmatpush1.bf16.msra.mxu0 0
      %2461 = vmatprep.subr.bf16.mxu0 0
      %2462 = vmatpush1.bf16.msra.mxu0 0
      %2463 = vmatprep.subr.bf16.mxu0 0
      %2464 = vmatpush1.bf16.msra.mxu0 0
      %2465 = vmatprep.subr.bf16.mxu0 0
      %2466 = vmatpush1.bf16.msra.mxu0 0
      %2467 = vmatprep.subr.bf16.mxu0 0
      %2468 = vmatpush1.bf16.msra.mxu0 0
      %2469 = vmatprep.subr.bf16.mxu0 0
      %2470 = vmatpush1.bf16.msra.mxu0 0
      %2471 = vmatprep.subr.bf16.mxu0 0
      %2472 = vmatpush1.bf16.msra.mxu0 0
      %2473 = vmatprep.subr.bf16.mxu0 0
      %2474 = vmatpush1.bf16.msra.mxu0 0
      %2475 = vmatprep.subr.bf16.mxu0 0
      %2476 = vmatpush1.bf16.msra.mxu0 0
      %2477 = vmatprep.mubr.bf16.mxu0 0
      %2478 = vmatmul.mubr.bf16.gmra.mrb[0].mxu0 %v2443
      %v2479 = vpop.f32.mrb[0].mxu0
      %v2480 = vadd.f32 0.0, %v2479
      %v2481 = vpop.f32.mrb[0].mxu0
      %v2482 = vpop.f32.mrb[0].mxu0
      %v2483 = vpop.f32.mrb[0].mxu0
      %2484 = vdwg.mxu0
      %v2485 = vxor.u32 %v2480, 2147483648
      %v2486 = vmul.f32 %v2485, 1.442695
      %v2487 = vpow.pop %v2486
      %v2488 = vadd.f32 %v2487, 1.0
      %v2489 = vrcp.pop %v2488
      %v2490 = vmul.f32 1.0, %v2489
      %v2491 = vmul.f32 %v2480, %v2490
      %2493 = vrot.lane.b32.xlu0 %v2480, 64
      %v2494 = vpop.permute.xlu0 %2493
      %v2496 = vmul.f32 %v2491, %v2494
      %v2497 = vpack.c.bf16 %v2496, %v2496
      %v2506 = vunpack.c.l.b16 %v2421
      %v2507 = vunpack.c.l.b16 %v2422
      %v2508 = vunpack.c.l.b16 %v2423
      %v2509 = vunpack.c.l.b16 %v2424
      %v2510 = vunpack.c.l.b16 %v2425
      %v2511 = vunpack.c.l.b16 %v2426
      %v2512 = vunpack.c.l.b16 %v2427
      %v2513 = vunpack.c.l.b16 %v2428
      %v2514 = vpack.c.b16 %v2507, %v2506
      %v2515 = vpack.c.b16 %v2509, %v2508
      %v2516 = vpack.c.b16 %v2511, %v2510
      %v2517 = vpack.c.b16 %v2513, %v2512
      %vm2522 = vcmask 523264
      %v2524 = vsel %vm2522, %v2497, 0
      %2526 = vmatprep.subr.bf16.mxu0 0
      %2527 = vmatpush1.bf16.msra.mxu0 %v2514
      %2528 = vmatprep.subr.bf16.mxu0 0
      %2529 = vmatpush1.bf16.msra.mxu0 %v2515
      %2530 = vmatprep.subr.bf16.mxu0 0
      %2531 = vmatpush1.bf16.msra.mxu0 %v2516
      %2532 = vmatprep.subr.bf16.mxu0 0
      %2533 = vmatpush1.bf16.msra.mxu0 %v2517
      %2534 = vmatprep.subr.bf16.mxu0 0
      %2535 = vmatpush1.bf16.msra.mxu0 0
      %2536 = vmatprep.subr.bf16.mxu0 0
      %2537 = vmatpush1.bf16.msra.mxu0 0
      %2538 = vmatprep.subr.bf16.mxu0 0
      %2539 = vmatpush1.bf16.msra.mxu0 0
      %2540 = vmatprep.subr.bf16.mxu0 0
      %2541 = vmatpush1.bf16.msra.mxu0 0
      %2542 = vmatprep.subr.bf16.mxu0 0
      %2543 = vmatpush1.bf16.msra.mxu0 0
      %2544 = vmatprep.subr.bf16.mxu0 0
      %2545 = vmatpush1.bf16.msra.mxu0 0
      %2546 = vmatprep.subr.bf16.mxu0 0
      %2547 = vmatpush1.bf16.msra.mxu0 0
      %2548 = vmatprep.subr.bf16.mxu0 0
      %2549 = vmatpush1.bf16.msra.mxu0 0
      %2550 = vmatprep.subr.bf16.mxu0 0
      %2551 = vmatpush1.bf16.msra.mxu0 0
      %2552 = vmatprep.subr.bf16.mxu0 0
      %2553 = vmatpush1.bf16.msra.mxu0 0
      %2554 = vmatprep.subr.bf16.mxu0 0
      %2555 = vmatpush1.bf16.msra.mxu0 0
      %2556 = vmatprep.subr.bf16.mxu0 0
      %2557 = vmatpush1.bf16.msra.mxu0 0
      %2558 = vmatprep.mubr.bf16.mxu0 0
      %2559 = vmatmul.mubr.bf16.gmra.mrb[0].mxu0 %v2524
      %v2560 = vpop.f32.mrb[0].mxu0
      %v2561 = vadd.f32 0.0, %v2560
      %v2562 = vpop.f32.mrb[0].mxu0
      %v2563 = vpop.f32.mrb[0].mxu0
      %v2564 = vpop.f32.mrb[0].mxu0
      %2565 = vdwg.mxu0
      %v2566 = vadd.f32 %v2400, %v2561
      %2567 = vst.msk [vmem:[#allocation2] sm:$0xff] %vm851, %v2566
      %p2568 = scmp.eq.s32.totalorder %s33, 1
      // Predicated region
      $region93: #{tts_forward.4} parent=87 // pred_check
        %p2569 = pneg %p2568
      $region94: #{tts_forward.4} parent=87 // pred_check_branch
        %2571 = sbr.rel (%p2569) target = $region96
      $region95: #{tts_forward.4} parent=87 // pred_region
        %v2572 = vld [vmem:[%s16] sm:$0x1]
        %v2573 = vmul.f32 %v2566, %v2566
        %v2574 = vsel %vm851, %v2573, 0.0
        %2575 = vadd.xlane.f32.xlu0 %v2574
        %v2576 = vpop.xlane.xlu0 %2575
        %v2577 = vmul.f32 %v2576, %v855
        %v2578 = vadd.f32 %v2577, 1e-05
        %v2579 = vrsqrt.pop %v2578
        %v2580 = vmul.f32 %v2566, %v2579
        %v2582 = vlaneseq
        %v2583 = vshrl.u32 %v2582, 7
        %v2584 = vsub.s32 0, %v2583
        %v2585 = vrot.slane %v2572, %v2584
        %v2587 = vmul.f32 %v2580, %v2585
        %v2588 = vpack.c.bf16 %v2587, %v2587
        %vm2589 = vcmask 257024
        %2590 = vst.msk [vmem:[%s831] sm:$0xf] %vm2589, %v2588
      $region96: #{tts_forward.4} parent=87 // pred_fallthru
        _
      %p2591 = scmp.lt.s32.totalorder %s32, 1
      %s2592 = scalar_select %p2591, %s32, 1
      %s2593 = smul.addr %s2592, 4
      %s2594 = scalar_lea.vmem %s17, %s2593
      // Predicated region
      $region97: #{tts_forward.4} parent=87 // pred_check
        %p2595 = pneg %p495
      $region98: #{tts_forward.4} parent=87 // pred_check_branch
        %2597 = sbr.rel (%p2595) target = $region100
      $region99: #{tts_forward.4} parent=87 // pred_region
        _
      $region100: #{tts_forward.4} parent=87 // pred_fallthru
        _
    $region88: #{tts_forward.4} parent=5 // pred_fallthru
      _
    %p2598 = scmp.le.s32.totalorder 2, %s23
    // Predicated region
    $region101: #{tts_forward.4} parent=5 // pred_check
      %p2599 = pneg %p2598
    $region102: #{tts_forward.4} parent=5 // pred_check_branch
      %2601 = sbr.rel (%p2599) target = $region104
    $region103: #{tts_forward.4} parent=5 // pred_region
      %s2602 = ssub.s32 %s23, 2
      // Predicated region
      $region105: #{tts_forward.4} parent=103 // pred_check
        %p2603 = pneg %p501
      $region106: #{tts_forward.4} parent=103 // pred_check_branch
        %2605 = sbr.rel (%p2603) target = $region108
      $region107: #{tts_forward.4} parent=103 // pred_region
        %p2606 = scmp.lt.s32.totalorder %s34, 1
        %s2607 = scalar_select %p2606, %s34, 1
        %s2608 = smul.addr %s2607, 4
        %s2609 = scalar_lea.vmem %s17, %s2608
      $region108: #{tts_forward.4} parent=103 // pred_fallthru
        _
    $region104: #{tts_forward.4} parent=5 // pred_fallthru
      _
  $region6: #{tts_forward.4} parent=0 // loop_footer
    %s27 = sadd.s32 1, %s23
  $region7: #{tts_forward.4} parent=0 // loop_footer_branch
    %22 = sbr.rel target = $region3
  $region8: #{tts_forward.4} parent=0 // loop_exit
    _

</llo_original>
